<compile_context>
chip_gen: v7x
topology: tpu7x:2x2x1
jax: 0.10.0
libtpu: 0.0.40
codegen_flags: <defaults>
</compile_context>

<pallas_src>
import jax
import jax.numpy as jnp
from jax.experimental import pallas as pl
from jax.experimental.pallas import tpu as pltpu


C_STEM = 128        # synthetic conv-stem output channels per backbone
K_TAPS = 27         # 3x3x3 real im2col taps
K_PAD = 32          # taps padded to 32 lanes per backbone (64 fused)
CTX_F = 2048        # resnet50 feature dim
BOD_F = 512         # resnet18 feature dim
D_CAT = CTX_F + BOD_F   # 2560
D_H1 = 1024
D_H2 = 512
HEAD_PAD = 128      # lane-dense merged head width (3 + 26 = 29 real columns)


# ----------------------------------------------------------------------------
# Fused + pipelined kernel factory (closes over static B / HW / tile sizes).
# ----------------------------------------------------------------------------
def emotic_fused_forward(patches, params, *, batch, hw, fusion_tile=256):
    """patches: (B*HW, 64) bf16 (ctx taps lanes [0:32], body taps [32:64])."""
    B, HW = batch, hw
    TB = B                              # one batch tile at small B
    NB = B // TB
    NJ = D_H1 // fusion_tile            # fusion-width tiles

    def kernel(patch_ref, stem_w_ref, stem_b_ref, ctx_wp_ref, bod_wp_ref,
               w1_ref, b1_ref, w2_ref, w34_ref, tail_b_ref,
               out_ref, feats_ref, h2_ref):
        j = pl.program_id(1)

        # --- backbones: only once per batch tile, under the first fusion tile.
        @pl.when(j == 0)
        def _backbones():
            # fused conv stems for both images: one GEMM, block-diagonal weight
            ch = jnp.dot(patch_ref[...], stem_w_ref[...],
                         preferred_element_type=jnp.float32)        # (TB*HW, 256)
            ch = jnp.maximum(ch + stem_b_ref[...], 0.0)
            # global average pool: reshape + mean (XLU), no pooling-matrix GEMM
            pooled = jnp.mean(ch.reshape(TB, HW, 2 * C_STEM), axis=1)  # (TB, 256)
            pooled = pooled.astype(jnp.bfloat16)
            ctx_feats = jnp.dot(pooled[:, :C_STEM], ctx_wp_ref[...],
                                preferred_element_type=jnp.float32)  # (TB, 2048)
            bod_feats = jnp.dot(pooled[:, C_STEM:], bod_wp_ref[...],
                                preferred_element_type=jnp.float32)  # (TB, 512)
            # torch.cat([ctx, body]) realized as two slab writes (no concat op)
            feats_ref[:, :CTX_F] = ctx_feats.astype(jnp.bfloat16)
            feats_ref[:, CTX_F:] = bod_feats.astype(jnp.bfloat16)
            h2_ref[...] = jnp.zeros_like(h2_ref)

        # --- fusion MLP, one tile of W1 columns / W2 rows per grid step.
        h1 = (jnp.dot(feats_ref[...], w1_ref[...],
                      preferred_element_type=jnp.float32) + b1_ref[...])
        h1 = jnp.maximum(h1, 0.0)                                     # (TB, TN)
        h2_ref[...] += jnp.dot(h1.astype(jnp.bfloat16), w2_ref[...],
                               preferred_element_type=jnp.float32)    # (TB, 512)

        # --- finalize: bias + ReLU + merged heads on the last fusion tile.
        @pl.when(j == pl.num_programs(1) - 1)
        def _heads():
            h2 = jnp.maximum(h2_ref[...] + tail_b_ref[:, :D_H2], 0.0)
            out_ref[...] = (jnp.dot(h2.astype(jnp.bfloat16), w34_ref[...],
                                    preferred_element_type=jnp.float32)
                            + tail_b_ref[:, D_H2:])

    grid_spec = pltpu.PrefetchScalarGridSpec(
        num_scalar_prefetch=0,
        grid=(NB, NJ),
        in_specs=[
            pl.BlockSpec((TB * HW, 2 * K_PAD), lambda b, j: (b, 0)),     # patches
            pl.BlockSpec((2 * K_PAD, 2 * C_STEM), lambda b, j: (0, 0)),  # stem_w
            pl.BlockSpec((1, 2 * C_STEM), lambda b, j: (0, 0)),          # stem_b
            pl.BlockSpec((C_STEM, CTX_F), lambda b, j: (0, 0)),          # ctx_wp
            pl.BlockSpec((C_STEM, BOD_F), lambda b, j: (0, 0)),          # bod_wp
            pl.BlockSpec((D_CAT, fusion_tile), lambda b, j: (0, j)),     # w1 tile
            pl.BlockSpec((1, fusion_tile), lambda b, j: (0, j)),         # b1 tile
            pl.BlockSpec((fusion_tile, D_H2), lambda b, j: (j, 0)),      # w2 tile
            pl.BlockSpec((D_H2, HEAD_PAD), lambda b, j: (0, 0)),         # w34
            pl.BlockSpec((1, D_H2 + HEAD_PAD), lambda b, j: (0, 0)),     # b2|b34
        ],
        out_specs=pl.BlockSpec((TB, HEAD_PAD), lambda b, j: (b, 0)),
        scratch_shapes=[
            pltpu.VMEM((TB, D_CAT), jnp.bfloat16),   # combined features slab
            pltpu.VMEM((TB, D_H2), jnp.float32),     # h2 accumulator
        ],
    )
    return pl.pallas_call(
        kernel,
        out_shape=jax.ShapeDtypeStruct((B, HEAD_PAD), jnp.float32),
        grid_spec=grid_spec,
        compiler_params=pltpu.CompilerParams(
            dimension_semantics=("parallel", "arbitrary"),
            vmem_limit_bytes=32 * 1024 * 1024,   # ~6 MiB actually needed
        ),
    )(patches, params["stem_w"], params["stem_b"], params["ctx_wp"],
      params["bod_wp"], params["w1"], params["b1"], params["w2"],
      params["w34"], params["tail_b"])


# ----------------------------------------------------------------------------
# Glue: im2col (+ lane padding) and parameter construction.
# ----------------------------------------------------------------------------
def im2col_3x3_same(x_nhwc):
    """x: (B, H, W, 3) -> (B*H*W, 32) patches; 3x3 conv, stride 1, SAME pad."""
    B, H, W, C = x_nhwc.shape
    patches = jax.lax.conv_general_dilated_patches(
        x_nhwc, filter_shape=(3, 3), window_strides=(1, 1), padding="SAME",
        dimension_numbers=("NHWC", "HWIO", "NHWC"))          # (B, H, W, 27)
    patches = patches.reshape(B * H * W, C * 9)
    return jnp.pad(patches, ((0, 0), (0, K_PAD - C * 9)))


def init_params(key):
    """Deterministic synthetic parameters (shapes follow the module __init__)."""
    ks = jax.random.split(key, 12)
    scale = 0.02
    f32, bf16 = jnp.float32, jnp.bfloat16

    # fused block-diagonal stem weight (64, 256); padded tap rows are exactly 0
    ctx_wc = scale * jax.random.normal(ks[0], (K_TAPS, C_STEM), f32)
    bod_wc = scale * jax.random.normal(ks[1], (K_TAPS, C_STEM), f32)
    stem_w = (jnp.zeros((2 * K_PAD, 2 * C_STEM), f32)
              .at[:K_TAPS, :C_STEM].set(ctx_wc)
              .at[K_PAD:K_PAD + K_TAPS, C_STEM:].set(bod_wc))
    stem_b = jnp.concatenate(
        [scale * jax.random.normal(ks[2], (1, C_STEM), f32),
         scale * jax.random.normal(ks[3], (1, C_STEM), f32)], axis=1)

    # backbone stand-in projections: 128 -> 2048 (resnet50) / 128 -> 512 (resnet18)
    ctx_wp = (scale * jax.random.normal(ks[4], (C_STEM, CTX_F), f32)).astype(bf16)
    bod_wp = (scale * jax.random.normal(ks[5], (C_STEM, BOD_F), f32)).astype(bf16)

    # fusion Linear(2560, 1024) stored (in, out); rows [0:2048]=ctx, [2048:]=body
    w1 = (scale * jax.random.normal(ks[6], (D_CAT, D_H1), f32)).astype(bf16)
    b1 = scale * jax.random.normal(ks[7], (1, D_H1), f32)
    # fusion Linear(1024, 512)
    w2 = (scale * jax.random.normal(ks[8], (D_H1, D_H2), f32)).astype(bf16)
    b2 = jnp.zeros((1, D_H2), f32)

    # heads Linear(512,3) / Linear(512,26) merged lane-dense into (512, 128)
    w3 = scale * jax.random.normal(ks[9], (D_H2, 3), f32)
    w4 = scale * jax.random.normal(ks[10], (D_H2, 26), f32)
    w34 = (jnp.zeros((D_H2, HEAD_PAD), f32)
           .at[:, :3].set(w3).at[:, 3:29].set(w4)).astype(bf16)
    b34 = jnp.zeros((1, HEAD_PAD), f32)

    return {
        "stem_w": stem_w.astype(bf16),
        "stem_b": stem_b,
        "ctx_wp": ctx_wp,
        "bod_wp": bod_wp,
        "w1": w1,
        "b1": b1,
        "w2": w2,
        "w34": w34,
        "tail_b": jnp.concatenate([b2, b34], axis=1),   # packed (1, 640)
    }


@jax.jit
def multimodal_emotic_forward(params, context_nchw, body_nchw):
    # NCHW (PyTorch convention) -> NHWC for the TPU kernel.
    ctx = jnp.transpose(context_nchw, (0, 2, 3, 1)).astype(jnp.float32)
    bod = jnp.transpose(body_nchw, (0, 2, 3, 1)).astype(jnp.float32)
    B, H, W, _ = ctx.shape
    HW = H * W

    # Both images' im2col patches packed along lanes: (B*HW, 64) bf16.
    # TODO(synk): if wrapper ops dominate at tiny batch, build taps in-kernel
    #             with pltpu.roll instead of conv_general_dilated_patches.
    patches = jnp.concatenate(
        [im2col_3x3_same(ctx), im2col_3x3_same(bod)], axis=1).astype(jnp.bfloat16)

    heads = emotic_fused_forward(patches, params, batch=B, hw=HW)   # (B, 128) f32
    cont_output = heads[:, :3]
    cat_output = heads[:, 3:3 + 26]
    return cont_output, cat_output


if __name__ == "__main__":
    key = jax.random.PRNGKey(0)
    pkey, ckey, bkey = jax.random.split(key, 3)

    params = init_params(pkey)

    B, C, H, W = 2, 3, 16, 16
    context = jax.random.normal(ckey, (B, C, H, W), jnp.float32)   # NCHW
    body = jax.random.normal(bkey, (B, C, H, W), jnp.float32)      # NCHW

    cont_out, cat_out = multimodal_emotic_forward(params, context, body)
    jax.block_until_ready((cont_out, cat_out))

    assert cont_out.shape == (B, 3), cont_out.shape
    assert cat_out.shape == (B, 26), cat_out.shape
    assert bool(jnp.all(jnp.isfinite(cont_out))) and bool(jnp.all(jnp.isfinite(cat_out)))
    print("KERNEL_OK")
</pallas_src>

<mosaic_0001>
module attributes {stable_mosaic.version = 11 : i64} {
  func.func @kernel(%arg0: i32, %arg1: i32, %arg2: memref<512x64xbf16, #tpu.memory_space<vmem>>, %arg3: memref<64x256xbf16, #tpu.memory_space<vmem>>, %arg4: memref<1x256xf32, #tpu.memory_space<vmem>>, %arg5: memref<128x2048xbf16, #tpu.memory_space<vmem>>, %arg6: memref<128x512xbf16, #tpu.memory_space<vmem>>, %arg7: memref<2560x256xbf16, #tpu.memory_space<vmem>>, %arg8: memref<1x256xf32, #tpu.memory_space<vmem>>, %arg9: memref<256x512xbf16, #tpu.memory_space<vmem>>, %arg10: memref<512x128xbf16, #tpu.memory_space<vmem>>, %arg11: memref<1x640xf32, #tpu.memory_space<vmem>>, %arg12: memref<2x128xf32, #tpu.memory_space<vmem>>, %arg13: memref<2x2560xbf16, #tpu.memory_space<vmem>>, %arg14: memref<2x512xf32, #tpu.memory_space<vmem>>) attributes {dimension_semantics = [#tpu.dimension_semantics<parallel>, #tpu.dimension_semantics<arbitrary>], iteration_bounds = array<i64: 1, 4>, scalar_prefetch = 0 : i64, scratch_operands = 2 : i64, tpu.core_type = #tpu.core_type<tc>, window_params = [{transform_indices = @transform_0, window_bounds = array<i64: 512, 64>}, {pipeline_mode = #tpu.pipeline_mode<synchronous>, transform_indices = @transform_1, window_bounds = array<i64: 64, 256>}, {pipeline_mode = #tpu.pipeline_mode<synchronous>, transform_indices = @transform_2, window_bounds = array<i64: 1, 256>}, {pipeline_mode = #tpu.pipeline_mode<synchronous>, transform_indices = @transform_3, window_bounds = array<i64: 128, 2048>}, {pipeline_mode = #tpu.pipeline_mode<synchronous>, transform_indices = @transform_4, window_bounds = array<i64: 128, 512>}, {transform_indices = @transform_5, window_bounds = array<i64: 2560, 256>}, {transform_indices = @transform_6, window_bounds = array<i64: 1, 256>}, {transform_indices = @transform_7, window_bounds = array<i64: 256, 512>}, {pipeline_mode = #tpu.pipeline_mode<synchronous>, transform_indices = @transform_8, window_bounds = array<i64: 512, 128>}, {pipeline_mode = #tpu.pipeline_mode<synchronous>, transform_indices = @transform_9, window_bounds = array<i64: 1, 640>}, {transform_indices = @transform_10, window_bounds = array<i64: 2, 128>}]} {
    %c0_i32 = arith.constant 0 : i32
    %0 = arith.cmpi eq, %arg1, %c0_i32 : i32
    %1 = arith.extui %0 : i1 to i32
    %c0_i32_0 = arith.constant 0 : i32
    %2 = arith.cmpi ne, %1, %c0_i32_0 : i32
    scf.if %2 {
      %c0_15 = arith.constant 0 : index
      %c0_16 = arith.constant 0 : index
      %20 = vector.load %arg2[%c0_15, %c0_16] : memref<512x64xbf16, #tpu.memory_space<vmem>>, vector<512x64xbf16>
      %c0_17 = arith.constant 0 : index
      %c0_18 = arith.constant 0 : index
      %21 = vector.load %arg3[%c0_17, %c0_18] : memref<64x256xbf16, #tpu.memory_space<vmem>>, vector<64x256xbf16>
      %cst_19 = arith.constant dense<0.000000e+00> : vector<512x256xf32>
      %22 = tpu.matmul %20, %21, %cst_19 {dimension_numbers = #tpu.dot_dimension_numbers<[1], [0], [0], [1], [0, 0, 1, 1], [], []>} : vector<512x64xbf16>, vector<64x256xbf16>, vector<512x256xf32> -> vector<512x256xf32>
      %c0_20 = arith.constant 0 : index
      %c0_21 = arith.constant 0 : index
      %23 = vector.load %arg4[%c0_20, %c0_21] : memref<1x256xf32, #tpu.memory_space<vmem>>, vector<1x256xf32>
      %24 = vector.broadcast %23 : vector<1x256xf32> to vector<512x256xf32>
      %25 = arith.addf %22, %24 : vector<512x256xf32>
      %cst_22 = arith.constant 0.000000e+00 : f32
      %26 = vector.broadcast %cst_22 : f32 to vector<512x256xf32>
      %27 = arith.maximumf %25, %26 : vector<512x256xf32>
      %28 = vector.shape_cast %27 : vector<512x256xf32> to vector<2x256x256xf32>
      %cst_23 = arith.constant dense<0.000000e+00> : vector<2x256xf32>
      %29 = vector.multi_reduction <add>, %28, %cst_23 [1] : vector<2x256x256xf32> to vector<2x256xf32>
      %cst_24 = arith.constant 2.560000e+02 : f32
      %30 = vector.broadcast %cst_24 : f32 to vector<2x256xf32>
      %31 = arith.divf %29, %30 : vector<2x256xf32>
      %32 = arith.truncf %31 : vector<2x256xf32> to vector<2x256xbf16>
      %33 = vector.extract_strided_slice %32 {offsets = [0, 0], sizes = [2, 128], strides = [1, 1]} : vector<2x256xbf16> to vector<2x128xbf16>
      %c0_25 = arith.constant 0 : index
      %c0_26 = arith.constant 0 : index
      %34 = vector.load %arg5[%c0_25, %c0_26] : memref<128x2048xbf16, #tpu.memory_space<vmem>>, vector<128x2048xbf16>
      %cst_27 = arith.constant dense<0.000000e+00> : vector<2x2048xf32>
      %35 = tpu.matmul %33, %34, %cst_27 {dimension_numbers = #tpu.dot_dimension_numbers<[1], [0], [0], [1], [0, 0, 1, 1], [], []>} : vector<2x128xbf16>, vector<128x2048xbf16>, vector<2x2048xf32> -> vector<2x2048xf32>
      %36 = vector.extract_strided_slice %32 {offsets = [0, 128], sizes = [2, 128], strides = [1, 1]} : vector<2x256xbf16> to vector<2x128xbf16>
      %c0_28 = arith.constant 0 : index
      %c0_29 = arith.constant 0 : index
      %37 = vector.load %arg6[%c0_28, %c0_29] : memref<128x512xbf16, #tpu.memory_space<vmem>>, vector<128x512xbf16>
      %cst_30 = arith.constant dense<0.000000e+00> : vector<2x512xf32>
      %38 = tpu.matmul %36, %37, %cst_30 {dimension_numbers = #tpu.dot_dimension_numbers<[1], [0], [0], [1], [0, 0, 1, 1], [], []>} : vector<2x128xbf16>, vector<128x512xbf16>, vector<2x512xf32> -> vector<2x512xf32>
      %39 = arith.truncf %35 : vector<2x2048xf32> to vector<2x2048xbf16>
      %c0_31 = arith.constant 0 : index
      %c0_32 = arith.constant 0 : index
      %40 = vector.load %arg13[%c0_31, %c0_32] : memref<2x2560xbf16, #tpu.memory_space<vmem>>, vector<2x2048xbf16>
      tpu.vector_store %arg13[%c0_31, %c0_32], %39 {strides = array<i32>} : memref<2x2560xbf16, #tpu.memory_space<vmem>>, vector<2x2048xbf16>,
      %41 = arith.truncf %38 : vector<2x512xf32> to vector<2x512xbf16>
      %c0_33 = arith.constant 0 : index
      %c2048 = arith.constant 2048 : index
      %42 = vector.load %arg13[%c0_33, %c2048] : memref<2x2560xbf16, #tpu.memory_space<vmem>>, vector<2x512xbf16>
      tpu.vector_store %arg13[%c0_33, %c2048], %41 {strides = array<i32>} : memref<2x2560xbf16, #tpu.memory_space<vmem>>, vector<2x512xbf16>,
      %cst_34 = arith.constant 0.000000e+00 : f32
      %43 = vector.broadcast %cst_34 : f32 to vector<2x512xf32>
      %c0_35 = arith.constant 0 : index
      %c0_36 = arith.constant 0 : index
      %44 = vector.load %arg14[%c0_35, %c0_36] : memref<2x512xf32, #tpu.memory_space<vmem>>, vector<2x512xf32>
      tpu.vector_store %arg14[%c0_35, %c0_36], %43 {strides = array<i32>} : memref<2x512xf32, #tpu.memory_space<vmem>>, vector<2x512xf32>,
    } else {
    }
    %c0 = arith.constant 0 : index
    %c0_1 = arith.constant 0 : index
    %3 = vector.load %arg13[%c0, %c0_1] : memref<2x2560xbf16, #tpu.memory_space<vmem>>, vector<2x2560xbf16>
    %c0_2 = arith.constant 0 : index
    %c0_3 = arith.constant 0 : index
    %4 = vector.load %arg7[%c0_2, %c0_3] : memref<2560x256xbf16, #tpu.memory_space<vmem>>, vector<2560x256xbf16>
    %cst = arith.constant dense<0.000000e+00> : vector<2x256xf32>
    %5 = tpu.matmul %3, %4, %cst {dimension_numbers = #tpu.dot_dimension_numbers<[1], [0], [0], [1], [0, 0, 1, 1], [], []>} : vector<2x2560xbf16>, vector<2560x256xbf16>, vector<2x256xf32> -> vector<2x256xf32>
    %c0_4 = arith.constant 0 : index
    %c0_5 = arith.constant 0 : index
    %6 = vector.load %arg8[%c0_4, %c0_5] : memref<1x256xf32, #tpu.memory_space<vmem>>, vector<1x256xf32>
    %7 = vector.broadcast %6 : vector<1x256xf32> to vector<2x256xf32>
    %8 = arith.addf %5, %7 : vector<2x256xf32>
    %cst_6 = arith.constant 0.000000e+00 : f32
    %9 = vector.broadcast %cst_6 : f32 to vector<2x256xf32>
    %10 = arith.maximumf %8, %9 : vector<2x256xf32>
    %c0_7 = arith.constant 0 : index
    %c0_8 = arith.constant 0 : index
    %11 = vector.load %arg14[%c0_7, %c0_8] : memref<2x512xf32, #tpu.memory_space<vmem>>, vector<2x512xf32>
    %12 = arith.truncf %10 : vector<2x256xf32> to vector<2x256xbf16>
    %c0_9 = arith.constant 0 : index
    %c0_10 = arith.constant 0 : index
    %13 = vector.load %arg9[%c0_9, %c0_10] : memref<256x512xbf16, #tpu.memory_space<vmem>>, vector<256x512xbf16>
    %cst_11 = arith.constant dense<0.000000e+00> : vector<2x512xf32>
    %14 = tpu.matmul %12, %13, %cst_11 {dimension_numbers = #tpu.dot_dimension_numbers<[1], [0], [0], [1], [0, 0, 1, 1], [], []>} : vector<2x256xbf16>, vector<256x512xbf16>, vector<2x512xf32> -> vector<2x512xf32>
    %15 = arith.addf %11, %14 : vector<2x512xf32>
    %c0_12 = arith.constant 0 : index
    %c0_13 = arith.constant 0 : index
    %16 = vector.load %arg14[%c0_12, %c0_13] : memref<2x512xf32, #tpu.memory_space<vmem>>, vector<2x512xf32>
    tpu.vector_store %arg14[%c0_12, %c0_13], %15 {strides = array<i32>} : memref<2x512xf32, #tpu.memory_space<vmem>>, vector<2x512xf32>,
    %c3_i32 = arith.constant 3 : i32
    %17 = arith.cmpi eq, %arg1, %c3_i32 : i32
    %18 = arith.extui %17 : i1 to i32
    %c0_i32_14 = arith.constant 0 : i32
    %19 = arith.cmpi ne, %18, %c0_i32_14 : i32
    scf.if %19 {
      %c0_15 = arith.constant 0 : index
      %c0_16 = arith.constant 0 : index
      %20 = vector.load %arg14[%c0_15, %c0_16] : memref<2x512xf32, #tpu.memory_space<vmem>>, vector<2x512xf32>
      %c0_17 = arith.constant 0 : index
      %c0_18 = arith.constant 0 : index
      %21 = vector.load %arg11[%c0_17, %c0_18] : memref<1x640xf32, #tpu.memory_space<vmem>>, vector<1x512xf32>
      %22 = vector.broadcast %21 : vector<1x512xf32> to vector<2x512xf32>
      %23 = arith.addf %20, %22 : vector<2x512xf32>
      %cst_19 = arith.constant 0.000000e+00 : f32
      %24 = vector.broadcast %cst_19 : f32 to vector<2x512xf32>
      %25 = arith.maximumf %23, %24 : vector<2x512xf32>
      %26 = arith.truncf %25 : vector<2x512xf32> to vector<2x512xbf16>
      %c0_20 = arith.constant 0 : index
      %c0_21 = arith.constant 0 : index
      %27 = vector.load %arg10[%c0_20, %c0_21] : memref<512x128xbf16, #tpu.memory_space<vmem>>, vector<512x128xbf16>
      %cst_22 = arith.constant dense<0.000000e+00> : vector<2x128xf32>
      %28 = tpu.matmul %26, %27, %cst_22 {dimension_numbers = #tpu.dot_dimension_numbers<[1], [0], [0], [1], [0, 0, 1, 1], [], []>} : vector<2x512xbf16>, vector<512x128xbf16>, vector<2x128xf32> -> vector<2x128xf32>
      %c0_23 = arith.constant 0 : index
      %c512 = arith.constant 512 : index
      %29 = vector.load %arg11[%c0_23, %c512] : memref<1x640xf32, #tpu.memory_space<vmem>>, vector<1x128xf32>
      %30 = vector.broadcast %29 : vector<1x128xf32> to vector<2x128xf32>
      %31 = arith.addf %28, %30 : vector<2x128xf32>
      %c0_24 = arith.constant 0 : index
      %c0_25 = arith.constant 0 : index
      %32 = vector.load %arg12[%c0_24, %c0_25] : memref<2x128xf32, #tpu.memory_space<vmem>>, vector<2x128xf32>
      tpu.vector_store %arg12[%c0_24, %c0_25], %31 {strides = array<i32>} : memref<2x128xf32, #tpu.memory_space<vmem>>, vector<2x128xf32>,
    } else {
    }
    return
  }
  func.func @transform_0(%arg0: i32, %arg1: i32) -> (i32, i32) {
    %c0_i32 = arith.constant 0 : i32
    %c0_i32_0 = arith.constant 0 : i32
    return %arg0, %c0_i32 : i32, i32
  }
  func.func @transform_1(%arg0: i32, %arg1: i32) -> (i32, i32) {
    %c0_i32 = arith.constant 0 : i32
    %c0_i32_0 = arith.constant 0 : i32
    %c0_i32_1 = arith.constant 0 : i32
    return %c0_i32, %c0_i32_0 : i32, i32
  }
  func.func @transform_2(%arg0: i32, %arg1: i32) -> (i32, i32) {
    %c0_i32 = arith.constant 0 : i32
    %c0_i32_0 = arith.constant 0 : i32
    %c0_i32_1 = arith.constant 0 : i32
    return %c0_i32, %c0_i32_0 : i32, i32
  }
  func.func @transform_3(%arg0: i32, %arg1: i32) -> (i32, i32) {
    %c0_i32 = arith.constant 0 : i32
    %c0_i32_0 = arith.constant 0 : i32
    %c0_i32_1 = arith.constant 0 : i32
    return %c0_i32, %c0_i32_0 : i32, i32
  }
  func.func @transform_4(%arg0: i32, %arg1: i32) -> (i32, i32) {
    %c0_i32 = arith.constant 0 : i32
    %c0_i32_0 = arith.constant 0 : i32
    %c0_i32_1 = arith.constant 0 : i32
    return %c0_i32, %c0_i32_0 : i32, i32
  }
  func.func @transform_5(%arg0: i32, %arg1: i32) -> (i32, i32) {
    %c0_i32 = arith.constant 0 : i32
    %c0_i32_0 = arith.constant 0 : i32
    return %c0_i32, %arg1 : i32, i32
  }
  func.func @transform_6(%arg0: i32, %arg1: i32) -> (i32, i32) {
    %c0_i32 = arith.constant 0 : i32
    %c0_i32_0 = arith.constant 0 : i32
    return %c0_i32, %arg1 : i32, i32
  }
  func.func @transform_7(%arg0: i32, %arg1: i32) -> (i32, i32) {
    %c0_i32 = arith.constant 0 : i32
    %c0_i32_0 = arith.constant 0 : i32
    return %arg1, %c0_i32 : i32, i32
  }
  func.func @transform_8(%arg0: i32, %arg1: i32) -> (i32, i32) {
    %c0_i32 = arith.constant 0 : i32
    %c0_i32_0 = arith.constant 0 : i32
    %c0_i32_1 = arith.constant 0 : i32
    return %c0_i32, %c0_i32_0 : i32, i32
  }
  func.func @transform_9(%arg0: i32, %arg1: i32) -> (i32, i32) {
    %c0_i32 = arith.constant 0 : i32
    %c0_i32_0 = arith.constant 0 : i32
    %c0_i32_1 = arith.constant 0 : i32
    return %c0_i32, %c0_i32_0 : i32, i32
  }
  func.func @transform_10(%arg0: i32, %arg1: i32) -> (i32, i32) {
    %c0_i32 = arith.constant 0 : i32
    %c0_i32_0 = arith.constant 0 : i32
    return %arg0, %c0_i32 : i32, i32
  }
}

</mosaic_0001>

<llo_original>
// kernel: multimodal_emotic_forward.1
$region0: #{multimodal_emotic_forward.1}
  #allocation0 [shape = 'u32[]', space=smem, size = 0x4, offset = 0x4, fixed_abs, tag = 'smem constant byte address 0x4 - core index']
  #allocation1 [shape = 'u32[144,128]{1,0:T(1,128)}', space=vmem, size = 0x12000, scoped, tag = 'internal scratch']
  #allocation2 [shape = 'bf16[2,2560]{1,0:T(2,128)(2,1)}', space=vmem, size = 0x2800, scoped, tag = 'scratch operand']
  #allocation3 [shape = 'f32[2,512]{1,0:T(2,128)}', space=vmem, size = 0x1000, scoped, tag = 'scratch operand']
  %s0 = inlined_call_operand.vmem [shape: bf16[512,64], index: 0, kind: input, shape index: {}]
  %s1 = inlined_call_operand.hbm [shape: bf16[64,256], index: 1, kind: input, shape index: {}]
  %s2 = inlined_call_operand.hbm [shape: f32[1,256], index: 2, kind: input, shape index: {}]
  %s3 = inlined_call_operand.hbm [shape: bf16[128,2048], index: 3, kind: input, shape index: {}]
  %s4 = inlined_call_operand.hbm [shape: bf16[128,512], index: 4, kind: input, shape index: {}]
  %s5 = inlined_call_operand.hbm [shape: bf16[2560,1024], index: 5, kind: input, shape index: {}]
  %s6 = inlined_call_operand.hbm [shape: f32[1,1024], index: 6, kind: input, shape index: {}]
  %s7 = inlined_call_operand.hbm [shape: bf16[1024,512], index: 7, kind: input, shape index: {}]
  %s8 = inlined_call_operand.hbm [shape: bf16[512,128], index: 8, kind: input, shape index: {}]
  %s9 = inlined_call_operand.hbm [shape: f32[1,640], index: 9, kind: input, shape index: {}]
  %s10 = inlined_call_operand.vmem [shape: f32[2,128], index: 10, kind: output, shape index: {}]
  %s11 = sld [smem:[#allocation0]]
  $region117: #{multimodal_emotic_forward.1} parent=0
    _
  %s13 = ssub.s32 1, %s11
  %s14 = scalar_select 0, %s13, %s11
  $region1: #{multimodal_emotic_forward.1} parent=0
    #allocation4 [shape = 'u8[32768]{0}', space=vmem, size = 0x8000, scoped, tag = 'input window, operand 1, single buffered']
    #allocation5 [shape = 's32[2]{0}', space=sflag, size = 0x8, scoped, tag = 'scoped memory for multimodal_emotic_forward.1']
    #allocation6 [shape = 'u8[1024]{0}', space=vmem, size = 0x400, scoped, tag = 'input window, operand 2, single buffered']
    #allocation7 [shape = 's32[1]{0}', space=sflag, size = 0x4, scoped, tag = 'scoped memory for multimodal_emotic_forward.1']
    #allocation8 [shape = 'u8[524288]{0}', space=vmem, size = 0x80000, scoped, tag = 'input window, operand 3, single buffered']
    #allocation9 [shape = 'u8[131072]{0}', space=vmem, size = 0x20000, scoped, tag = 'input window, operand 4, single buffered']
    #allocation10 [shape = 's32[1]{0}', space=sflag, size = 0x4, scoped, tag = 'scoped memory for multimodal_emotic_forward.1']
    #allocation11 [shape = 'u8[2621440]{0}', space=vmem, size = 0x280000, scoped, tag = 'input window, operand 5']
    #allocation12 [shape = 'u8[2048]{0}', space=vmem, size = 0x800, scoped, tag = 'input window, operand 6']
    #allocation13 [shape = 'u8[524288]{0}', space=vmem, size = 0x80000, scoped, tag = 'input window, operand 7']
    #allocation14 [shape = 'u8[131072]{0}', space=vmem, size = 0x20000, scoped, tag = 'input window, operand 8, single buffered']
    #allocation15 [shape = 'u8[2560]{0}', space=vmem, size = 0xc00, scoped, tag = 'input window, operand 9, single buffered']
    %15 = vsyncpa [#allocation5], 0
    %16 = vsyncpa [#allocation7], 0
    %17 = vsyncpa [#allocation10], 0
    loop: start=0, step=1, limit=6
    $region2: #{multimodal_emotic_forward.1} parent=1 // loop_pre_header
      _
    $region3: #{multimodal_emotic_forward.1} parent=1 // loop_header
      %s19 = sphi 0, %s23
      %p20 = scmp.ge.s32.totalorder %s19, 6
      %s26 = sphi 0, %s38
      %s27 = sphi 0, %s34
      %s28 = sphi 0, %s26
      %s29 = sphi 0, %s27
      %s30 = sphi 0, %s28
      %s31 = sphi 0, %s29
      %s41 = sphi 0, %s43
      %s44 = sphi 0, %s41
      %s45 = sphi 0, %s44
      %s61 = sphi 0, %s45
      %s65 = sphi 0, %s65
      %s67 = sphi 0, %s65
      %s68 = sphi 0, %s67
      %s82 = sphi 0, %s68
      %s86 = sphi 0, %s86
      %s88 = sphi 0, %s86
      %s89 = sphi 0, %s88
      %s103 = sphi 0, %s89
      %s107 = sphi 0, %s107
      %s109 = sphi 0, %s107
      %s110 = sphi 0, %s109
      %s124 = sphi 0, %s110
      %s128 = sphi 0, %s128
      %s130 = sphi 0, %s128
      %s131 = sphi 0, %s130
      %s145 = sphi 0, %s131
      %s151 = sphi 0, %s153
      %s154 = sphi 0, %s151
      %s155 = sphi 0, %s154
      %s171 = sphi 0, %s155
      %s177 = sphi 0, %s179
      %s180 = sphi 0, %s177
      %s181 = sphi 0, %s180
      %s197 = sphi 0, %s181
      %s203 = sphi 0, %s205
      %s206 = sphi 0, %s203
      %s207 = sphi 0, %s206
      %s223 = sphi 0, %s207
      %s227 = sphi 0, %s227
      %s229 = sphi 0, %s227
      %s230 = sphi 0, %s229
      %s244 = sphi 0, %s230
      %s248 = sphi 0, %s248
      %s250 = sphi 0, %s248
      %s251 = sphi 0, %s250
      %s265 = sphi 0, %s251
      %s271 = sphi 0, %s273
      %s274 = sphi 0, %s271
      %s275 = sphi 0, %s274
      %s291 = sphi 0, %s275
    $region4: #{multimodal_emotic_forward.1} parent=1 // loop_header_branch
      %22 = sbr.rel (%p20) target = $region8
    $region5: #{multimodal_emotic_forward.1} parent=1 // loop_body
      %s24 = ssub.s32 %s19, 1
      %s25 = ssub.s32 %s19, 2
      %s32 = sadd.s32 1, %s27
      %p33 = scmp.ge.s32.totalorder %s32, 4
      %s34 = scalar_select %p33, 0, %s32
      %s35 = sadd.s32 1, %s26
      %s36 = scalar_select %p33, %s35, %s26
      %p37 = scmp.ge.s32.totalorder %s36, 1
      %s38 = scalar_select %p37, 0, %s36
      %s39 = ssub.s32 %s26, %s38
      %p40 = scmp.eq.s32.totalorder %s39, 0
      %s42 = sadd.s32 %s41, 1
      %s43 = scalar_select %p40, %s41, %s42
      %p46 = pneg %p40
      %p47 = scmp.eq.s32.totalorder %s19, 3
      %p48 = por %p46, %p47
      %p49 = scmp.ne.s32.totalorder %s41, %s44
      %p50 = scmp.eq.s32.totalorder %s19, 0
      %p51 = por %p49, %p50
      %p52 = scmp.ne.s32.totalorder %s41, %s44
      %p53 = scmp.eq.s32.totalorder %s24, 3
      %p54 = por %p52, %p53
      %p55 = scmp.ne.s32.totalorder %s44, %s45
      %p56 = scmp.eq.s32.totalorder %s24, 0
      %p57 = por %p55, %p56
      %p58 = scmp.ne.s32.totalorder %s44, %s45
      %p59 = scmp.eq.s32.totalorder %s25, 3
      %p60 = por %p58, %p59
      %p62 = scmp.ne.s32.totalorder %s45, %s61
      %p63 = scmp.eq.s32.totalorder %s25, 0
      %p64 = por %p62, %p63
      %s66 = sadd.s32 %s65, 1
      %p69 = scmp.eq.s32.totalorder %s19, 3
      %p70 = scmp.ne.s32.totalorder %s65, %s67
      %p71 = scmp.eq.s32.totalorder %s19, 0
      %p72 = por %p70, %p71
      %p73 = scmp.ne.s32.totalorder %s65, %s67
      %p74 = scmp.eq.s32.totalorder %s24, 3
      %p75 = por %p73, %p74
      %p76 = scmp.ne.s32.totalorder %s67, %s68
      %p77 = scmp.eq.s32.totalorder %s24, 0
      %p78 = por %p76, %p77
      %p79 = scmp.ne.s32.totalorder %s67, %s68
      %p80 = scmp.eq.s32.totalorder %s25, 3
      %p81 = por %p79, %p80
      %p83 = scmp.ne.s32.totalorder %s68, %s82
      %p84 = scmp.eq.s32.totalorder %s25, 0
      %p85 = por %p83, %p84
      %s87 = sadd.s32 %s86, 1
      %p90 = scmp.eq.s32.totalorder %s19, 3
      %p91 = scmp.ne.s32.totalorder %s86, %s88
      %p92 = scmp.eq.s32.totalorder %s19, 0
      %p93 = por %p91, %p92
      %p94 = scmp.ne.s32.totalorder %s86, %s88
      %p95 = scmp.eq.s32.totalorder %s24, 3
      %p96 = por %p94, %p95
      %p97 = scmp.ne.s32.totalorder %s88, %s89
      %p98 = scmp.eq.s32.totalorder %s24, 0
      %p99 = por %p97, %p98
      %p100 = scmp.ne.s32.totalorder %s88, %s89
      %p101 = scmp.eq.s32.totalorder %s25, 3
      %p102 = por %p100, %p101
      %p104 = scmp.ne.s32.totalorder %s89, %s103
      %p105 = scmp.eq.s32.totalorder %s25, 0
      %p106 = por %p104, %p105
      %s108 = sadd.s32 %s107, 1
      %p111 = scmp.eq.s32.totalorder %s19, 3
      %p112 = scmp.ne.s32.totalorder %s107, %s109
      %p113 = scmp.eq.s32.totalorder %s19, 0
      %p114 = por %p112, %p113
      %p115 = scmp.ne.s32.totalorder %s107, %s109
      %p116 = scmp.eq.s32.totalorder %s24, 3
      %p117 = por %p115, %p116
      %p118 = scmp.ne.s32.totalorder %s109, %s110
      %p119 = scmp.eq.s32.totalorder %s24, 0
      %p120 = por %p118, %p119
      %p121 = scmp.ne.s32.totalorder %s109, %s110
      %p122 = scmp.eq.s32.totalorder %s25, 3
      %p123 = por %p121, %p122
      %p125 = scmp.ne.s32.totalorder %s110, %s124
      %p126 = scmp.eq.s32.totalorder %s25, 0
      %p127 = por %p125, %p126
      %s129 = sadd.s32 %s128, 1
      %p132 = scmp.eq.s32.totalorder %s19, 3
      %p133 = scmp.ne.s32.totalorder %s128, %s130
      %p134 = scmp.eq.s32.totalorder %s19, 0
      %p135 = por %p133, %p134
      %p136 = scmp.ne.s32.totalorder %s128, %s130
      %p137 = scmp.eq.s32.totalorder %s24, 3
      %p138 = por %p136, %p137
      %p139 = scmp.ne.s32.totalorder %s130, %s131
      %p140 = scmp.eq.s32.totalorder %s24, 0
      %p141 = por %p139, %p140
      %p142 = scmp.ne.s32.totalorder %s130, %s131
      %p143 = scmp.eq.s32.totalorder %s25, 3
      %p144 = por %p142, %p143
      %p146 = scmp.ne.s32.totalorder %s131, %s145
      %p147 = scmp.eq.s32.totalorder %s25, 0
      %p148 = por %p146, %p147
      %s149 = ssub.s32 %s27, %s34
      %p150 = scmp.eq.s32.totalorder %s149, 0
      %s152 = sadd.s32 %s151, 1
      %s153 = scalar_select %p150, %s151, %s152
      %p156 = pneg %p150
      %p157 = scmp.eq.s32.totalorder %s19, 3
      %p158 = por %p156, %p157
      %p159 = scmp.ne.s32.totalorder %s151, %s154
      %p160 = scmp.eq.s32.totalorder %s19, 0
      %p161 = por %p159, %p160
      %p162 = scmp.ne.s32.totalorder %s151, %s154
      %p163 = scmp.eq.s32.totalorder %s24, 3
      %p164 = por %p162, %p163
      %p165 = scmp.ne.s32.totalorder %s154, %s155
      %p166 = scmp.eq.s32.totalorder %s24, 0
      %p167 = por %p165, %p166
      %p168 = scmp.ne.s32.totalorder %s154, %s155
      %p169 = scmp.eq.s32.totalorder %s25, 3
      %p170 = por %p168, %p169
      %p172 = scmp.ne.s32.totalorder %s155, %s171
      %p173 = scmp.eq.s32.totalorder %s25, 0
      %p174 = por %p172, %p173
      %s175 = ssub.s32 %s27, %s34
      %p176 = scmp.eq.s32.totalorder %s175, 0
      %s178 = sadd.s32 %s177, 1
      %s179 = scalar_select %p176, %s177, %s178
      %p182 = pneg %p176
      %p183 = scmp.eq.s32.totalorder %s19, 3
      %p184 = por %p182, %p183
      %p185 = scmp.ne.s32.totalorder %s177, %s180
      %p186 = scmp.eq.s32.totalorder %s19, 0
      %p187 = por %p185, %p186
      %p188 = scmp.ne.s32.totalorder %s177, %s180
      %p189 = scmp.eq.s32.totalorder %s24, 3
      %p190 = por %p188, %p189
      %p191 = scmp.ne.s32.totalorder %s180, %s181
      %p192 = scmp.eq.s32.totalorder %s24, 0
      %p193 = por %p191, %p192
      %p194 = scmp.ne.s32.totalorder %s180, %s181
      %p195 = scmp.eq.s32.totalorder %s25, 3
      %p196 = por %p194, %p195
      %p198 = scmp.ne.s32.totalorder %s181, %s197
      %p199 = scmp.eq.s32.totalorder %s25, 0
      %p200 = por %p198, %p199
      %s201 = ssub.s32 %s27, %s34
      %p202 = scmp.eq.s32.totalorder %s201, 0
      %s204 = sadd.s32 %s203, 1
      %s205 = scalar_select %p202, %s203, %s204
      %p208 = pneg %p202
      %p209 = scmp.eq.s32.totalorder %s19, 3
      %p210 = por %p208, %p209
      %p211 = scmp.ne.s32.totalorder %s203, %s206
      %p212 = scmp.eq.s32.totalorder %s19, 0
      %p213 = por %p211, %p212
      %p214 = scmp.ne.s32.totalorder %s203, %s206
      %p215 = scmp.eq.s32.totalorder %s24, 3
      %p216 = por %p214, %p215
      %p217 = scmp.ne.s32.totalorder %s206, %s207
      %p218 = scmp.eq.s32.totalorder %s24, 0
      %p219 = por %p217, %p218
      %p220 = scmp.ne.s32.totalorder %s206, %s207
      %p221 = scmp.eq.s32.totalorder %s25, 3
      %p222 = por %p220, %p221
      %p224 = scmp.ne.s32.totalorder %s207, %s223
      %p225 = scmp.eq.s32.totalorder %s25, 0
      %p226 = por %p224, %p225
      %s228 = sadd.s32 %s227, 1
      %p231 = scmp.eq.s32.totalorder %s19, 3
      %p232 = scmp.ne.s32.totalorder %s227, %s229
      %p233 = scmp.eq.s32.totalorder %s19, 0
      %p234 = por %p232, %p233
      %p235 = scmp.ne.s32.totalorder %s227, %s229
      %p236 = scmp.eq.s32.totalorder %s24, 3
      %p237 = por %p235, %p236
      %p238 = scmp.ne.s32.totalorder %s229, %s230
      %p239 = scmp.eq.s32.totalorder %s24, 0
      %p240 = por %p238, %p239
      %p241 = scmp.ne.s32.totalorder %s229, %s230
      %p242 = scmp.eq.s32.totalorder %s25, 3
      %p243 = por %p241, %p242
      %p245 = scmp.ne.s32.totalorder %s230, %s244
      %p246 = scmp.eq.s32.totalorder %s25, 0
      %p247 = por %p245, %p246
      %s249 = sadd.s32 %s248, 1
      %p252 = scmp.eq.s32.totalorder %s19, 3
      %p253 = scmp.ne.s32.totalorder %s248, %s250
      %p254 = scmp.eq.s32.totalorder %s19, 0
      %p255 = por %p253, %p254
      %p256 = scmp.ne.s32.totalorder %s248, %s250
      %p257 = scmp.eq.s32.totalorder %s24, 3
      %p258 = por %p256, %p257
      %p259 = scmp.ne.s32.totalorder %s250, %s251
      %p260 = scmp.eq.s32.totalorder %s24, 0
      %p261 = por %p259, %p260
      %p262 = scmp.ne.s32.totalorder %s250, %s251
      %p263 = scmp.eq.s32.totalorder %s25, 3
      %p264 = por %p262, %p263
      %p266 = scmp.ne.s32.totalorder %s251, %s265
      %p267 = scmp.eq.s32.totalorder %s25, 0
      %p268 = por %p266, %p267
      %s269 = ssub.s32 %s26, %s38
      %p270 = scmp.eq.s32.totalorder %s269, 0
      %s272 = sadd.s32 %s271, 1
      %s273 = scalar_select %p270, %s271, %s272
      %p276 = pneg %p270
      %p277 = scmp.eq.s32.totalorder %s19, 3
      %p278 = por %p276, %p277
      %p279 = scmp.ne.s32.totalorder %s271, %s274
      %p280 = scmp.eq.s32.totalorder %s19, 0
      %p281 = por %p279, %p280
      %p282 = scmp.ne.s32.totalorder %s271, %s274
      %p283 = scmp.eq.s32.totalorder %s24, 3
      %p284 = por %p282, %p283
      %p285 = scmp.ne.s32.totalorder %s274, %s275
      %p286 = scmp.eq.s32.totalorder %s24, 0
      %p287 = por %p285, %p286
      %p288 = scmp.ne.s32.totalorder %s274, %s275
      %p289 = scmp.eq.s32.totalorder %s25, 3
      %p290 = por %p288, %p289
      %p292 = scmp.ne.s32.totalorder %s275, %s291
      %p293 = scmp.eq.s32.totalorder %s25, 0
      %p294 = por %p292, %p293
      %p295 = scmp.le.s32.totalorder 1, %s19
      %p296 = scmp.lt.s32.totalorder %s19, 5
      %p297 = pnand %p295, %p296
      %p298 = pneg %p297
      // Predicated region
      $region9: #{multimodal_emotic_forward.1} parent=5 // pred_check
        _
      $region10: #{multimodal_emotic_forward.1} parent=5 // pred_check_branch
        %300 = sbr.rel (%p297) target = $region12
      $region11: #{multimodal_emotic_forward.1} parent=5 // pred_region
        %s301 = ssub.s32 %s19, 1
        // Predicated region
        $region13: #{multimodal_emotic_forward.1} parent=11 // pred_check
          %p302 = pneg %p57
        $region14: #{multimodal_emotic_forward.1} parent=11 // pred_check_branch
          %304 = sbr.rel (%p302) target = $region16
        $region15: #{multimodal_emotic_forward.1} parent=11 // pred_region
          %s305 = smul.u32 64, %s28
          %p306 = scmp.lt.s32.totalorder %s305, 63
          %s307 = scalar_select %p306, %s305, 63
          %s308 = smul.addr %s307, 4
          %s309 = scalar_lea.vmem %s0, %s308
          %s310 = smul.u32 64, %s28
        $region16: #{multimodal_emotic_forward.1} parent=11 // pred_fallthru
          _
        // Predicated region
        $region17: #{multimodal_emotic_forward.1} parent=11 // pred_check
          %p311 = pneg %p78
        $region18: #{multimodal_emotic_forward.1} parent=11 // pred_check_branch
          %313 = sbr.rel (%p311) target = $region20
        $region19: #{multimodal_emotic_forward.1} parent=11 // pred_region
          %s315 = ssub.s32 1024, 1024
          %316 = vsyncadd [#allocation5], %s315
          %s317 = sshll.u32 [#allocation4], 4
          %s318 = int_to_ptr.vmem [resolvable:$true] %s317
          %323 = dma.hbm_to_vmem [thread:$0]  %s1, 1024, %s318, [#allocation5], 128, 128, 8
        $region20: #{multimodal_emotic_forward.1} parent=11 // pred_fallthru
          _
        // Predicated region
        $region21: #{multimodal_emotic_forward.1} parent=11 // pred_check
          %p324 = pneg %p99
        $region22: #{multimodal_emotic_forward.1} parent=11 // pred_check_branch
          %326 = sbr.rel (%p324) target = $region24
        $region23: #{multimodal_emotic_forward.1} parent=11 // pred_region
          %s328 = ssub.s32 32, 32
          %329 = vsyncadd [#allocation7], %s328
          %s331 = sshll.u32 [#allocation6], 4
          %s332 = int_to_ptr.vmem [resolvable:$true] %s331
          %334 = dma.hbm_to_vmem [thread:$0]  %s2, 32, %s332, [#allocation7]
        $region24: #{multimodal_emotic_forward.1} parent=11 // pred_fallthru
          _
        // Predicated region
        $region25: #{multimodal_emotic_forward.1} parent=11 // pred_check
          %p335 = pneg %p120
        $region26: #{multimodal_emotic_forward.1} parent=11 // pred_check_branch
          %337 = sbr.rel (%p335) target = $region28
        $region27: #{multimodal_emotic_forward.1} parent=11 // pred_region
          %s339 = ssub.s32 16384, 16384
          %340 = vsyncadd [#allocation7], %s339
          %s341 = sshll.u32 [#allocation8], 4
          %s342 = int_to_ptr.vmem [resolvable:$true] %s341
          %347 = dma.hbm_to_vmem [thread:$0]  %s3, 16384, %s342, [#allocation7], 1024, 1024, 64
        $region28: #{multimodal_emotic_forward.1} parent=11 // pred_fallthru
          _
        // Predicated region
        $region29: #{multimodal_emotic_forward.1} parent=11 // pred_check
          %p348 = pneg %p141
        $region30: #{multimodal_emotic_forward.1} parent=11 // pred_check_branch
          %350 = sbr.rel (%p348) target = $region32
        $region31: #{multimodal_emotic_forward.1} parent=11 // pred_region
          %s352 = ssub.s32 4096, 4096
          %353 = vsyncadd [#allocation10], %s352
          %s354 = sshll.u32 [#allocation9], 4
          %s355 = int_to_ptr.vmem [resolvable:$true] %s354
          %360 = dma.hbm_to_vmem [thread:$0]  %s4, 4096, %s355, [#allocation10], 256, 256, 16
        $region32: #{multimodal_emotic_forward.1} parent=11 // pred_fallthru
          _
        // Predicated region
        $region33: #{multimodal_emotic_forward.1} parent=11 // pred_check
          %p361 = pneg %p240
        $region34: #{multimodal_emotic_forward.1} parent=11 // pred_check_branch
          %363 = sbr.rel (%p361) target = $region36
        $region35: #{multimodal_emotic_forward.1} parent=11 // pred_region
          %s365 = ssub.s32 4096, 4096
          %366 = vsyncadd [#allocation7], %s365
          %s367 = sshll.u32 [#allocation14], 4
          %s368 = int_to_ptr.vmem [resolvable:$true] %s367
          %373 = dma.hbm_to_vmem [thread:$0]  %s8, 4096, %s368, [#allocation7], 64, 64, 4
        $region36: #{multimodal_emotic_forward.1} parent=11 // pred_fallthru
          _
        // Predicated region
        $region37: #{multimodal_emotic_forward.1} parent=11 // pred_check
          %p374 = pneg %p261
        $region38: #{multimodal_emotic_forward.1} parent=11 // pred_check_branch
          %376 = sbr.rel (%p374) target = $region40
        $region39: #{multimodal_emotic_forward.1} parent=11 // pred_region
          %s378 = ssub.s32 80, 80
          %379 = vsyncadd [#allocation10], %s378
          %s381 = sshll.u32 [#allocation15], 4
          %s382 = int_to_ptr.vmem [resolvable:$true] %s381
          %384 = dma.hbm_to_vmem [thread:$0]  %s9, 80, %s382, [#allocation10]
        $region40: #{multimodal_emotic_forward.1} parent=11 // pred_fallthru
          _
      $region12: #{multimodal_emotic_forward.1} parent=5 // pred_fallthru
        _
      %p385 = scmp.lt.s32.totalorder %s19, 4
      // Predicated region
      $region41: #{multimodal_emotic_forward.1} parent=5 // pred_check
        %p386 = pneg %p385
      $region42: #{multimodal_emotic_forward.1} parent=5 // pred_check_branch
        %388 = sbr.rel (%p386) target = $region44
      $region43: #{multimodal_emotic_forward.1} parent=5 // pred_region
        // Predicated region
        $region45: #{multimodal_emotic_forward.1} parent=43 // pred_check
          %p389 = pneg %p161
        $region46: #{multimodal_emotic_forward.1} parent=43 // pred_check_branch
          %391 = sbr.rel (%p389) target = $region48
        $region47: #{multimodal_emotic_forward.1} parent=43 // pred_region
          %s392 = sand.u32 %s19, 1
          %s393 = scalar_lea.sflag [#allocation5], %s392
          %s394 = sand.u32 %s151, 1
          %s395 = smul.addr %s394, 2560
          %s396 = scalar_lea.vmem [#allocation11], %s395
          %s397 = smul.u32 2, %s27
          %s399 = ssub.s32 40960, 40960
          %400 = vsyncadd %s393, %s399
          %s401 = smul.addr %s397, 64
          %s402 = scalar_lea.hbm %s5, %s401
          %s403 = sshll.u32 %s396, 4
          %s404 = int_to_ptr.vmem [resolvable:$true] %s403
          %409 = dma.hbm_to_vmem [thread:$0]  %s402, 40960, %s404, %s393, 512, 128, 8
        $region48: #{multimodal_emotic_forward.1} parent=43 // pred_fallthru
          _
        // Predicated region
        $region49: #{multimodal_emotic_forward.1} parent=43 // pred_check
          %p410 = pneg %p187
        $region50: #{multimodal_emotic_forward.1} parent=43 // pred_check_branch
          %412 = sbr.rel (%p410) target = $region52
        $region51: #{multimodal_emotic_forward.1} parent=43 // pred_region
          %s413 = sand.u32 %s19, 1
          %s414 = scalar_lea.sflag [#allocation5], %s413
          %s415 = sand.u32 %s177, 1
          %s416 = smul.addr %s415, 2
          %s417 = scalar_lea.vmem [#allocation12], %s416
          %s418 = smul.u32 2, %s27
          %s420 = ssub.s32 32, 32
          %421 = vsyncadd %s414, %s420
          %s422 = smul.addr %s418, 16
          %s423 = scalar_lea.hbm %s6, %s422
          %s425 = sshll.u32 %s417, 4
          %s426 = int_to_ptr.vmem [resolvable:$true] %s425
          %428 = dma.hbm_to_vmem [thread:$0]  %s423, 32, %s426, %s414
        $region52: #{multimodal_emotic_forward.1} parent=43 // pred_fallthru
          _
        // Predicated region
        $region53: #{multimodal_emotic_forward.1} parent=43 // pred_check
          %p429 = pneg %p213
        $region54: #{multimodal_emotic_forward.1} parent=43 // pred_check_branch
          %431 = sbr.rel (%p429) target = $region56
        $region55: #{multimodal_emotic_forward.1} parent=43 // pred_region
          %s432 = sand.u32 %s19, 1
          %s433 = scalar_lea.sflag [#allocation5], %s432
          %s434 = sand.u32 %s203, 1
          %s435 = smul.addr %s434, 512
          %s436 = scalar_lea.vmem [#allocation13], %s435
          %s437 = smul.u32 32, %s27
          %s439 = ssub.s32 8192, 8192
          %440 = vsyncadd %s433, %s439
          %s441 = smul.addr %s437, 4
          %s442 = smul.addr %s441, 64
          %s443 = scalar_lea.hbm %s7, %s442
          %s444 = sshll.u32 %s436, 4
          %s445 = int_to_ptr.vmem [resolvable:$true] %s444
          %450 = dma.hbm_to_vmem [thread:$0]  %s443, 8192, %s445, %s433, 256, 256, 16
        $region56: #{multimodal_emotic_forward.1} parent=43 // pred_fallthru
          _
      $region44: #{multimodal_emotic_forward.1} parent=5 // pred_fallthru
        _
      %p451 = scmp.le.s32.totalorder 1, %s19
      %p452 = scmp.lt.s32.totalorder %s19, 5
      %p453 = pnand %p451, %p452
      %p454 = pneg %p453
      // Predicated region
      $region57: #{multimodal_emotic_forward.1} parent=5 // pred_check
        _
      $region58: #{multimodal_emotic_forward.1} parent=5 // pred_check_branch
        %456 = sbr.rel (%p453) target = $region60
      $region59: #{multimodal_emotic_forward.1} parent=5 // pred_region
        %s457 = ssub.s32 %s19, 1
        // Predicated region
        $region61: #{multimodal_emotic_forward.1} parent=59 // pred_check
          %p458 = pneg %p78
        $region62: #{multimodal_emotic_forward.1} parent=59 // pred_check_branch
          %460 = sbr.rel (%p458) target = $region64
        $region63: #{multimodal_emotic_forward.1} parent=59 // pred_region
          %461 = dma.done [#allocation5], 1024
        $region64: #{multimodal_emotic_forward.1} parent=59 // pred_fallthru
          _
        // Predicated region
        $region65: #{multimodal_emotic_forward.1} parent=59 // pred_check
          %p462 = pneg %p99
        $region66: #{multimodal_emotic_forward.1} parent=59 // pred_check_branch
          %464 = sbr.rel (%p462) target = $region68
        $region67: #{multimodal_emotic_forward.1} parent=59 // pred_region
          %465 = dma.done [#allocation7], 32
        $region68: #{multimodal_emotic_forward.1} parent=59 // pred_fallthru
          _
        // Predicated region
        $region69: #{multimodal_emotic_forward.1} parent=59 // pred_check
          %p466 = pneg %p120
        $region70: #{multimodal_emotic_forward.1} parent=59 // pred_check_branch
          %468 = sbr.rel (%p466) target = $region72
        $region71: #{multimodal_emotic_forward.1} parent=59 // pred_region
          %469 = dma.done [#allocation7], 16384
        $region72: #{multimodal_emotic_forward.1} parent=59 // pred_fallthru
          _
        // Predicated region
        $region73: #{multimodal_emotic_forward.1} parent=59 // pred_check
          %p470 = pneg %p141
        $region74: #{multimodal_emotic_forward.1} parent=59 // pred_check_branch
          %472 = sbr.rel (%p470) target = $region76
        $region75: #{multimodal_emotic_forward.1} parent=59 // pred_region
          %473 = dma.done [#allocation10], 4096
        $region76: #{multimodal_emotic_forward.1} parent=59 // pred_fallthru
          _
        %s474 = sand.u32 %s24, 1
        %s475 = scalar_lea.sflag [#allocation5], %s474
        %s476 = sand.u32 %s154, 1
        %s477 = smul.addr %s476, 2560
        %s478 = scalar_lea.vmem [#allocation11], %s477
        // Predicated region
        $region77: #{multimodal_emotic_forward.1} parent=59 // pred_check
          %p479 = pneg %p167
        $region78: #{multimodal_emotic_forward.1} parent=59 // pred_check_branch
          %481 = sbr.rel (%p479) target = $region80
        $region79: #{multimodal_emotic_forward.1} parent=59 // pred_region
          %482 = dma.done %s475, 40960
        $region80: #{multimodal_emotic_forward.1} parent=59 // pred_fallthru
          _
        %s483 = sand.u32 %s24, 1
        %s484 = scalar_lea.sflag [#allocation5], %s483
        %s485 = sand.u32 %s180, 1
        %s486 = smul.addr %s485, 2
        %s487 = scalar_lea.vmem [#allocation12], %s486
        // Predicated region
        $region81: #{multimodal_emotic_forward.1} parent=59 // pred_check
          %p488 = pneg %p193
        $region82: #{multimodal_emotic_forward.1} parent=59 // pred_check_branch
          %490 = sbr.rel (%p488) target = $region84
        $region83: #{multimodal_emotic_forward.1} parent=59 // pred_region
          %491 = dma.done %s484, 32
        $region84: #{multimodal_emotic_forward.1} parent=59 // pred_fallthru
          _
        %s492 = sand.u32 %s24, 1
        %s493 = scalar_lea.sflag [#allocation5], %s492
        %s494 = sand.u32 %s206, 1
        %s495 = smul.addr %s494, 512
        %s496 = scalar_lea.vmem [#allocation13], %s495
        // Predicated region
        $region85: #{multimodal_emotic_forward.1} parent=59 // pred_check
          %p497 = pneg %p219
        $region86: #{multimodal_emotic_forward.1} parent=59 // pred_check_branch
          %499 = sbr.rel (%p497) target = $region88
        $region87: #{multimodal_emotic_forward.1} parent=59 // pred_region
          %500 = dma.done %s493, 8192
        $region88: #{multimodal_emotic_forward.1} parent=59 // pred_fallthru
          _
        // Predicated region
        $region89: #{multimodal_emotic_forward.1} parent=59 // pred_check
          %p501 = pneg %p240
        $region90: #{multimodal_emotic_forward.1} parent=59 // pred_check_branch
          %503 = sbr.rel (%p501) target = $region92
        $region91: #{multimodal_emotic_forward.1} parent=59 // pred_region
          %504 = dma.done [#allocation7], 4096
        $region92: #{multimodal_emotic_forward.1} parent=59 // pred_fallthru
          _
        // Predicated region
        $region93: #{multimodal_emotic_forward.1} parent=59 // pred_check
          %p505 = pneg %p261
        $region94: #{multimodal_emotic_forward.1} parent=59 // pred_check_branch
          %507 = sbr.rel (%p505) target = $region96
        $region95: #{multimodal_emotic_forward.1} parent=59 // pred_region
          %508 = dma.done [#allocation10], 80
        $region96: #{multimodal_emotic_forward.1} parent=59 // pred_fallthru
          _
        %s509 = smul.u32 64, %s28
        %p510 = scmp.lt.s32.totalorder %s509, 63
        %s511 = scalar_select %p510, %s509, 63
        %s512 = smul.addr %s511, 4
        %s513 = scalar_lea.vmem %s0, %s512
        %p514 = pneg %p57
        %p515 = pneg %p54
        %p516 = pneg %p78
        %p517 = pneg %p75
        %p518 = pneg %p99
        %p519 = pneg %p96
        %p520 = pneg %p120
        %p521 = pneg %p117
        %p522 = pneg %p141
        %p523 = pneg %p138
        %s524 = sand.u32 %s24, 1
        %s525 = scalar_lea.sflag [#allocation5], %s524
        %s526 = sand.u32 %s154, 1
        %s527 = smul.addr %s526, 2560
        %s528 = scalar_lea.vmem [#allocation11], %s527
        %p529 = pneg %p167
        %p530 = pneg %p164
        %s531 = sand.u32 %s24, 1
        %s532 = scalar_lea.sflag [#allocation5], %s531
        %s533 = sand.u32 %s180, 1
        %s534 = smul.addr %s533, 2
        %s535 = scalar_lea.vmem [#allocation12], %s534
        %p536 = pneg %p193
        %p537 = pneg %p190
        %s538 = sand.u32 %s24, 1
        %s539 = scalar_lea.sflag [#allocation5], %s538
        %s540 = sand.u32 %s206, 1
        %s541 = smul.addr %s540, 512
        %s542 = scalar_lea.vmem [#allocation13], %s541
        %p543 = pneg %p219
        %p544 = pneg %p216
        %p545 = pneg %p240
        %p546 = pneg %p237
        %p547 = pneg %p261
        %p548 = pneg %p258
        %p549 = pneg %p287
        %p550 = pneg %p284
        %p551 = scmp.lt.s32.totalorder %s28, 0
        %s552 = scalar_select %p551, %s28, 0
        %s553 = smul.addr %s552, 2
        %s554 = scalar_lea.vmem %s10, %s553
        %s555 = smul.u32 64, %s28
        %p556 = scmp.lt.s32.totalorder %s555, 63
        %s557 = scalar_select %p556, %s555, 63
        %s558 = smul.addr %s557, 4
        %s559 = scalar_lea.vmem %s0, %s558
        %s560 = smul.u32 64, %s28
        %s561 = smul.u32 2, %s29
        %s562 = smul.u32 2, %s29
        %s563 = smul.u32 32, %s29
        %p564 = scmp.lt.s32.totalorder %s28, 0
        %s565 = scalar_select %p564, %s28, 0
        %s566 = smul.addr %s565, 2
        %s567 = scalar_lea.vmem %s10, %s566
        %p569 = scmp.eq.s32.totalorder %s29, 0
        // Predicated region
        $region97: #{multimodal_emotic_forward.1} parent=59 // pred_check
          %p570 = pneg %p569
        $region98: #{multimodal_emotic_forward.1} parent=59 // pred_check_branch
          %572 = sbr.rel (%p570) target = $region100
        $region99: #{multimodal_emotic_forward.1} parent=59 // pred_region
          %v573 = vld [vmem:[%s559] sm:$0xf]
          %v574 = vld [vmem:[%s559 + $0x4] sm:$0xf]
          %v575 = vld [vmem:[%s559 + $0x8] sm:$0xf]
          %v576 = vld [vmem:[%s559 + $0xc] sm:$0xf]
          %v577 = vld [vmem:[%s559 + $0x10] sm:$0xf]
          %v578 = vld [vmem:[%s559 + $0x14] sm:$0xf]
          %v579 = vld [vmem:[%s559 + $0x18] sm:$0xf]
          %v580 = vld [vmem:[%s559 + $0x1c] sm:$0xf]
          %v581 = vld [vmem:[%s559 + $0x20] sm:$0xf]
          %v582 = vld [vmem:[%s559 + $0x24] sm:$0xf]
          %v583 = vld [vmem:[%s559 + $0x28] sm:$0xf]
          %v584 = vld [vmem:[%s559 + $0x2c] sm:$0xf]
          %v585 = vld [vmem:[%s559 + $0x30] sm:$0xf]
          %v586 = vld [vmem:[%s559 + $0x34] sm:$0xf]
          %v587 = vld [vmem:[%s559 + $0x38] sm:$0xf]
          %v588 = vld [vmem:[%s559 + $0x3c] sm:$0xf]
          %v589 = vld [vmem:[%s559 + $0x40] sm:$0xf]
          %v590 = vld [vmem:[%s559 + $0x44] sm:$0xf]
          %v591 = vld [vmem:[%s559 + $0x48] sm:$0xf]
          %v592 = vld [vmem:[%s559 + $0x4c] sm:$0xf]
          %v593 = vld [vmem:[%s559 + $0x50] sm:$0xf]
          %v594 = vld [vmem:[%s559 + $0x54] sm:$0xf]
          %v595 = vld [vmem:[%s559 + $0x58] sm:$0xf]
          %v596 = vld [vmem:[%s559 + $0x5c] sm:$0xf]
          %v597 = vld [vmem:[%s559 + $0x60] sm:$0xf]
          %v598 = vld [vmem:[%s559 + $0x64] sm:$0xf]
          %v599 = vld [vmem:[%s559 + $0x68] sm:$0xf]
          %v600 = vld [vmem:[%s559 + $0x6c] sm:$0xf]
          %v601 = vld [vmem:[%s559 + $0x70] sm:$0xf]
          %v602 = vld [vmem:[%s559 + $0x74] sm:$0xf]
          %v603 = vld [vmem:[%s559 + $0x78] sm:$0xf]
          %v604 = vld [vmem:[%s559 + $0x7c] sm:$0xf]
          %v605 = vld [vmem:[%s559 + $0x80] sm:$0xf]
          %v606 = vld [vmem:[%s559 + $0x84] sm:$0xf]
          %v607 = vld [vmem:[%s559 + $0x88] sm:$0xf]
          %v608 = vld [vmem:[%s559 + $0x8c] sm:$0xf]
          %v609 = vld [vmem:[%s559 + $0x90] sm:$0xf]
          %v610 = vld [vmem:[%s559 + $0x94] sm:$0xf]
          %v611 = vld [vmem:[%s559 + $0x98] sm:$0xf]
          %v612 = vld [vmem:[%s559 + $0x9c] sm:$0xf]
          %v613 = vld [vmem:[%s559 + $0xa0] sm:$0xf]
          %v614 = vld [vmem:[%s559 + $0xa4] sm:$0xf]
          %v615 = vld [vmem:[%s559 + $0xa8] sm:$0xf]
          %v616 = vld [vmem:[%s559 + $0xac] sm:$0xf]
          %v617 = vld [vmem:[%s559 + $0xb0] sm:$0xf]
          %v618 = vld [vmem:[%s559 + $0xb4] sm:$0xf]
          %v619 = vld [vmem:[%s559 + $0xb8] sm:$0xf]
          %v620 = vld [vmem:[%s559 + $0xbc] sm:$0xf]
          %v621 = vld [vmem:[%s559 + $0xc0] sm:$0xf]
          %v622 = vld [vmem:[%s559 + $0xc4] sm:$0xf]
          %v623 = vld [vmem:[%s559 + $0xc8] sm:$0xf]
          %v624 = vld [vmem:[%s559 + $0xcc] sm:$0xf]
          %v625 = vld [vmem:[%s559 + $0xd0] sm:$0xf]
          %v626 = vld [vmem:[%s559 + $0xd4] sm:$0xf]
          %v627 = vld [vmem:[%s559 + $0xd8] sm:$0xf]
          %v628 = vld [vmem:[%s559 + $0xdc] sm:$0xf]
          %v629 = vld [vmem:[%s559 + $0xe0] sm:$0xf]
          %v630 = vld [vmem:[%s559 + $0xe4] sm:$0xf]
          %v631 = vld [vmem:[%s559 + $0xe8] sm:$0xf]
          %v632 = vld [vmem:[%s559 + $0xec] sm:$0xf]
          %v633 = vld [vmem:[%s559 + $0xf0] sm:$0xf]
          %v634 = vld [vmem:[%s559 + $0xf4] sm:$0xf]
          %v635 = vld [vmem:[%s559 + $0xf8] sm:$0xf]
          %v636 = vld [vmem:[%s559 + $0xfc] sm:$0xf]
          %v637 = vld [vmem:[#allocation4] sm:$0xff]
          %v638 = vld [vmem:[#allocation4 + $0x8] sm:$0xff]
          %v639 = vld [vmem:[#allocation4 + $0x10] sm:$0xff]
          %v640 = vld [vmem:[#allocation4 + $0x18] sm:$0xff]
          %v641 = vld [vmem:[#allocation4 + $0x20] sm:$0xff]
          %v642 = vld [vmem:[#allocation4 + $0x28] sm:$0xff]
          %v643 = vld [vmem:[#allocation4 + $0x30] sm:$0xff]
          %v644 = vld [vmem:[#allocation4 + $0x38] sm:$0xff]
          %v645 = vld [vmem:[#allocation6] sm:$0x3]
          %v647 = vlaneseq
          %v648 = vshrl.u32 %v647, 7
          %v649 = vsub.s32 0, %v648
          %v650 = vrot.slane %v645, %v649
          %v651 = vlaneseq
          %v652 = vshrl.u32 %v651, 7
          %v653 = vsub.s32 1, %v652
          %v654 = vrot.slane %v645, %v653
          %v721 = vunpack.c.l.b16 %v573
          %v722 = vunpack.c.l.b16 %v574
          %v723 = vunpack.c.l.b16 %v575
          %v724 = vunpack.c.l.b16 %v576
          %v725 = vunpack.c.l.b16 %v577
          %v726 = vunpack.c.l.b16 %v578
          %v727 = vunpack.c.l.b16 %v579
          %v728 = vunpack.c.l.b16 %v580
          %v729 = vunpack.c.l.b16 %v581
          %v730 = vunpack.c.l.b16 %v582
          %v731 = vunpack.c.l.b16 %v583
          %v732 = vunpack.c.l.b16 %v584
          %v733 = vunpack.c.l.b16 %v585
          %v734 = vunpack.c.l.b16 %v586
          %v735 = vunpack.c.l.b16 %v587
          %v736 = vunpack.c.l.b16 %v588
          %v737 = vunpack.c.l.b16 %v589
          %v738 = vunpack.c.l.b16 %v590
          %v739 = vunpack.c.l.b16 %v591
          %v740 = vunpack.c.l.b16 %v592
          %v741 = vunpack.c.l.b16 %v593
          %v742 = vunpack.c.l.b16 %v594
          %v743 = vunpack.c.l.b16 %v595
          %v744 = vunpack.c.l.b16 %v596
          %v745 = vunpack.c.l.b16 %v597
          %v746 = vunpack.c.l.b16 %v598
          %v747 = vunpack.c.l.b16 %v599
          %v748 = vunpack.c.l.b16 %v600
          %v749 = vunpack.c.l.b16 %v601
          %v750 = vunpack.c.l.b16 %v602
          %v751 = vunpack.c.l.b16 %v603
          %v752 = vunpack.c.l.b16 %v604
          %v753 = vunpack.c.l.b16 %v605
          %v754 = vunpack.c.l.b16 %v606
          %v755 = vunpack.c.l.b16 %v607
          %v756 = vunpack.c.l.b16 %v608
          %v757 = vunpack.c.l.b16 %v609
          %v758 = vunpack.c.l.b16 %v610
          %v759 = vunpack.c.l.b16 %v611
          %v760 = vunpack.c.l.b16 %v612
          %v761 = vunpack.c.l.b16 %v613
          %v762 = vunpack.c.l.b16 %v614
          %v763 = vunpack.c.l.b16 %v615
          %v764 = vunpack.c.l.b16 %v616
          %v765 = vunpack.c.l.b16 %v617
          %v766 = vunpack.c.l.b16 %v618
          %v767 = vunpack.c.l.b16 %v619
          %v768 = vunpack.c.l.b16 %v620
          %v769 = vunpack.c.l.b16 %v621
          %v770 = vunpack.c.l.b16 %v622
          %v771 = vunpack.c.l.b16 %v623
          %v772 = vunpack.c.l.b16 %v624
          %v773 = vunpack.c.l.b16 %v625
          %v774 = vunpack.c.l.b16 %v626
          %v775 = vunpack.c.l.b16 %v627
          %v776 = vunpack.c.l.b16 %v628
          %v777 = vunpack.c.l.b16 %v629
          %v778 = vunpack.c.l.b16 %v630
          %v779 = vunpack.c.l.b16 %v631
          %v780 = vunpack.c.l.b16 %v632
          %v781 = vunpack.c.l.b16 %v633
          %v782 = vunpack.c.l.b16 %v634
          %v783 = vunpack.c.l.b16 %v635
          %v784 = vunpack.c.l.b16 %v636
          %v785 = vpack.c.b16 %v722, %v721
          %v786 = vpack.c.b16 %v724, %v723
          %v787 = vpack.c.b16 %v726, %v725
          %v788 = vpack.c.b16 %v728, %v727
          %v789 = vpack.c.b16 %v730, %v729
          %v790 = vpack.c.b16 %v732, %v731
          %v791 = vpack.c.b16 %v734, %v733
          %v792 = vpack.c.b16 %v736, %v735
          %v793 = vpack.c.b16 %v738, %v737
          %v794 = vpack.c.b16 %v740, %v739
          %v795 = vpack.c.b16 %v742, %v741
          %v796 = vpack.c.b16 %v744, %v743
          %v797 = vpack.c.b16 %v746, %v745
          %v798 = vpack.c.b16 %v748, %v747
          %v799 = vpack.c.b16 %v750, %v749
          %v800 = vpack.c.b16 %v752, %v751
          %v801 = vpack.c.b16 %v754, %v753
          %v802 = vpack.c.b16 %v756, %v755
          %v803 = vpack.c.b16 %v758, %v757
          %v804 = vpack.c.b16 %v760, %v759
          %v805 = vpack.c.b16 %v762, %v761
          %v806 = vpack.c.b16 %v764, %v763
          %v807 = vpack.c.b16 %v766, %v765
          %v808 = vpack.c.b16 %v768, %v767
          %v809 = vpack.c.b16 %v770, %v769
          %v810 = vpack.c.b16 %v772, %v771
          %v811 = vpack.c.b16 %v774, %v773
          %v812 = vpack.c.b16 %v776, %v775
          %v813 = vpack.c.b16 %v778, %v777
          %v814 = vpack.c.b16 %v780, %v779
          %v815 = vpack.c.b16 %v782, %v781
          %v816 = vpack.c.b16 %v784, %v783
          %v825 = vunpack.c.l.b16 %v637
          %v826 = vunpack.c.h.b16 %v637
          %v827 = vunpack.c.l.b16 %v638
          %v828 = vunpack.c.h.b16 %v638
          %v829 = vunpack.c.l.b16 %v639
          %v830 = vunpack.c.h.b16 %v639
          %v831 = vunpack.c.l.b16 %v640
          %v832 = vunpack.c.h.b16 %v640
          %v833 = vunpack.c.l.b16 %v641
          %v834 = vunpack.c.h.b16 %v641
          %v835 = vunpack.c.l.b16 %v642
          %v836 = vunpack.c.h.b16 %v642
          %v837 = vunpack.c.l.b16 %v643
          %v838 = vunpack.c.h.b16 %v643
          %v839 = vunpack.c.l.b16 %v644
          %v840 = vunpack.c.h.b16 %v644
          %v841 = vpack.c.b16 %v827, %v825
          %v842 = vpack.c.b16 %v828, %v826
          %v843 = vpack.c.b16 %v831, %v829
          %v844 = vpack.c.b16 %v832, %v830
          %v845 = vpack.c.b16 %v835, %v833
          %v846 = vpack.c.b16 %v836, %v834
          %v847 = vpack.c.b16 %v839, %v837
          %v848 = vpack.c.b16 %v840, %v838
          %vm857 = vcmask 523264
          %v859 = vsel %vm857, %v785, 0
          %v862 = vsel %vm857, %v786, 0
          %v865 = vsel %vm857, %v787, 0
          %v868 = vsel %vm857, %v788, 0
          %v871 = vsel %vm857, %v789, 0
          %v874 = vsel %vm857, %v790, 0
          %v877 = vsel %vm857, %v791, 0
          %v880 = vsel %vm857, %v792, 0
          %v883 = vsel %vm857, %v793, 0
          %v886 = vsel %vm857, %v794, 0
          %v889 = vsel %vm857, %v795, 0
          %v892 = vsel %vm857, %v796, 0
          %v895 = vsel %vm857, %v797, 0
          %v898 = vsel %vm857, %v798, 0
          %v901 = vsel %vm857, %v799, 0
          %v904 = vsel %vm857, %v800, 0
          %v907 = vsel %vm857, %v801, 0
          %v910 = vsel %vm857, %v802, 0
          %v913 = vsel %vm857, %v803, 0
          %v916 = vsel %vm857, %v804, 0
          %v919 = vsel %vm857, %v805, 0
          %v922 = vsel %vm857, %v806, 0
          %v925 = vsel %vm857, %v807, 0
          %v928 = vsel %vm857, %v808, 0
          %v931 = vsel %vm857, %v809, 0
          %v934 = vsel %vm857, %v810, 0
          %v937 = vsel %vm857, %v811, 0
          %v940 = vsel %vm857, %v812, 0
          %v943 = vsel %vm857, %v813, 0
          %v946 = vsel %vm857, %v814, 0
          %v949 = vsel %vm857, %v815, 0
          %v952 = vsel %vm857, %v816, 0
          %954 = vmatprep.subr.bf16.mxu0 %v842
          %955 = vmatpush1.bf16.msra.mxu0 %v841
          %956 = vmatprep.subr.bf16.mxu0 %v844
          %957 = vmatpush1.bf16.msra.mxu0 %v843
          %958 = vmatprep.subr.bf16.mxu0 %v846
          %959 = vmatpush1.bf16.msra.mxu0 %v845
          %960 = vmatprep.subr.bf16.mxu0 %v848
          %961 = vmatpush1.bf16.msra.mxu0 %v847
          %962 = vmatprep.subr.bf16.mxu0 0
          %963 = vmatpush1.bf16.msra.mxu0 0
          %964 = vmatprep.subr.bf16.mxu0 0
          %965 = vmatpush1.bf16.msra.mxu0 0
          %966 = vmatprep.subr.bf16.mxu0 0
          %967 = vmatpush1.bf16.msra.mxu0 0
          %968 = vmatprep.subr.bf16.mxu0 0
          %969 = vmatpush1.bf16.msra.mxu0 0
          %970 = vmatprep.subr.bf16.mxu0 0
          %971 = vmatpush1.bf16.msra.mxu0 0
          %972 = vmatprep.subr.bf16.mxu0 0
          %973 = vmatpush1.bf16.msra.mxu0 0
          %974 = vmatprep.subr.bf16.mxu0 0
          %975 = vmatpush1.bf16.msra.mxu0 0
          %976 = vmatprep.subr.bf16.mxu0 0
          %977 = vmatpush1.bf16.msra.mxu0 0
          %978 = vmatprep.subr.bf16.mxu0 0
          %979 = vmatpush1.bf16.msra.mxu0 0
          %980 = vmatprep.subr.bf16.mxu0 0
          %981 = vmatpush1.bf16.msra.mxu0 0
          %982 = vmatprep.subr.bf16.mxu0 0
          %983 = vmatpush1.bf16.msra.mxu0 0
          %984 = vmatprep.subr.bf16.mxu0 0
          %985 = vmatpush1.bf16.msra.mxu0 0
          %986 = vmatprep.mubr.bf16.mxu0 0
          %987 = vmatmul.mubr.bf16.gmra.mrb[0].mxu0 %v859
          %v988 = vpop.f32.mrb[0].mxu0
          %v989 = vadd.f32 %v650, %v988
          %v990 = vpop.f32.mrb[0].mxu0
          %v991 = vadd.f32 %v654, %v990
          %v992 = vpop.f32.mrb[0].mxu0
          %v993 = vadd.f32 %v650, %v992
          %v994 = vpop.f32.mrb[0].mxu0
          %v995 = vadd.f32 %v654, %v994
          %996 = vmatprep.mubr.bf16.mxu0 0
          %997 = vmatmul.mubr.bf16.gmra.mrb[0].mxu0 %v862
          %v998 = vpop.f32.mrb[0].mxu0
          %v999 = vadd.f32 %v650, %v998
          %v1000 = vpop.f32.mrb[0].mxu0
          %v1001 = vadd.f32 %v654, %v1000
          %v1002 = vpop.f32.mrb[0].mxu0
          %v1003 = vadd.f32 %v650, %v1002
          %v1004 = vpop.f32.mrb[0].mxu0
          %v1005 = vadd.f32 %v654, %v1004
          %1006 = vmatprep.mubr.bf16.mxu0 0
          %1007 = vmatmul.mubr.bf16.gmra.mrb[0].mxu0 %v865
          %v1008 = vpop.f32.mrb[0].mxu0
          %v1009 = vadd.f32 %v650, %v1008
          %v1010 = vpop.f32.mrb[0].mxu0
          %v1011 = vadd.f32 %v654, %v1010
          %v1012 = vpop.f32.mrb[0].mxu0
          %v1013 = vadd.f32 %v650, %v1012
          %v1014 = vpop.f32.mrb[0].mxu0
          %v1015 = vadd.f32 %v654, %v1014
          %1016 = vmatprep.mubr.bf16.mxu0 0
          %1017 = vmatmul.mubr.bf16.gmra.mrb[0].mxu0 %v868
          %v1018 = vpop.f32.mrb[0].mxu0
          %v1019 = vadd.f32 %v650, %v1018
          %v1020 = vpop.f32.mrb[0].mxu0
          %v1021 = vadd.f32 %v654, %v1020
          %v1022 = vpop.f32.mrb[0].mxu0
          %v1023 = vadd.f32 %v650, %v1022
          %v1024 = vpop.f32.mrb[0].mxu0
          %v1025 = vadd.f32 %v654, %v1024
          %1026 = vmatprep.mubr.bf16.mxu0 0
          %1027 = vmatmul.mubr.bf16.gmra.mrb[0].mxu0 %v871
          %v1028 = vpop.f32.mrb[0].mxu0
          %v1029 = vadd.f32 %v650, %v1028
          %v1030 = vpop.f32.mrb[0].mxu0
          %v1031 = vadd.f32 %v654, %v1030
          %v1032 = vpop.f32.mrb[0].mxu0
          %v1033 = vadd.f32 %v650, %v1032
          %v1034 = vpop.f32.mrb[0].mxu0
          %v1035 = vadd.f32 %v654, %v1034
          %1036 = vmatprep.mubr.bf16.mxu0 0
          %1037 = vmatmul.mubr.bf16.gmra.mrb[0].mxu0 %v874
          %v1038 = vpop.f32.mrb[0].mxu0
          %v1039 = vadd.f32 %v650, %v1038
          %v1040 = vpop.f32.mrb[0].mxu0
          %v1041 = vadd.f32 %v654, %v1040
          %v1042 = vpop.f32.mrb[0].mxu0
          %v1043 = vadd.f32 %v650, %v1042
          %v1044 = vpop.f32.mrb[0].mxu0
          %v1045 = vadd.f32 %v654, %v1044
          %1046 = vmatprep.mubr.bf16.mxu0 0
          %1047 = vmatmul.mubr.bf16.gmra.mrb[0].mxu0 %v877
          %v1048 = vpop.f32.mrb[0].mxu0
          %v1049 = vadd.f32 %v650, %v1048
          %v1050 = vpop.f32.mrb[0].mxu0
          %v1051 = vadd.f32 %v654, %v1050
          %v1052 = vpop.f32.mrb[0].mxu0
          %v1053 = vadd.f32 %v650, %v1052
          %v1054 = vpop.f32.mrb[0].mxu0
          %v1055 = vadd.f32 %v654, %v1054
          %1056 = vmatprep.mubr.bf16.mxu0 0
          %1057 = vmatmul.mubr.bf16.gmra.mrb[0].mxu0 %v880
          %v1058 = vpop.f32.mrb[0].mxu0
          %v1059 = vadd.f32 %v650, %v1058
          %v1060 = vpop.f32.mrb[0].mxu0
          %v1061 = vadd.f32 %v654, %v1060
          %v1062 = vpop.f32.mrb[0].mxu0
          %v1063 = vadd.f32 %v650, %v1062
          %v1064 = vpop.f32.mrb[0].mxu0
          %v1065 = vadd.f32 %v654, %v1064
          %1066 = vmatprep.mubr.bf16.mxu0 0
          %1067 = vmatmul.mubr.bf16.gmra.mrb[0].mxu0 %v883
          %v1068 = vpop.f32.mrb[0].mxu0
          %v1069 = vadd.f32 %v650, %v1068
          %v1070 = vpop.f32.mrb[0].mxu0
          %v1071 = vadd.f32 %v654, %v1070
          %v1072 = vpop.f32.mrb[0].mxu0
          %v1073 = vadd.f32 %v650, %v1072
          %v1074 = vpop.f32.mrb[0].mxu0
          %v1075 = vadd.f32 %v654, %v1074
          %1076 = vmatprep.mubr.bf16.mxu0 0
          %1077 = vmatmul.mubr.bf16.gmra.mrb[0].mxu0 %v886
          %v1078 = vpop.f32.mrb[0].mxu0
          %v1079 = vadd.f32 %v650, %v1078
          %v1080 = vpop.f32.mrb[0].mxu0
          %v1081 = vadd.f32 %v654, %v1080
          %v1082 = vpop.f32.mrb[0].mxu0
          %v1083 = vadd.f32 %v650, %v1082
          %v1084 = vpop.f32.mrb[0].mxu0
          %v1085 = vadd.f32 %v654, %v1084
          %1086 = vmatprep.mubr.bf16.mxu0 0
          %1087 = vmatmul.mubr.bf16.gmra.mrb[0].mxu0 %v889
          %v1088 = vpop.f32.mrb[0].mxu0
          %v1089 = vadd.f32 %v650, %v1088
          %v1090 = vpop.f32.mrb[0].mxu0
          %v1091 = vadd.f32 %v654, %v1090
          %v1092 = vpop.f32.mrb[0].mxu0
          %v1093 = vadd.f32 %v650, %v1092
          %v1094 = vpop.f32.mrb[0].mxu0
          %v1095 = vadd.f32 %v654, %v1094
          %1096 = vmatprep.mubr.bf16.mxu0 0
          %1097 = vmatmul.mubr.bf16.gmra.mrb[0].mxu0 %v892
          %v1098 = vpop.f32.mrb[0].mxu0
          %v1099 = vadd.f32 %v650, %v1098
          %v1100 = vpop.f32.mrb[0].mxu0
          %v1101 = vadd.f32 %v654, %v1100
          %v1102 = vpop.f32.mrb[0].mxu0
          %v1103 = vadd.f32 %v650, %v1102
          %v1104 = vpop.f32.mrb[0].mxu0
          %v1105 = vadd.f32 %v654, %v1104
          %1106 = vmatprep.mubr.bf16.mxu0 0
          %1107 = vmatmul.mubr.bf16.gmra.mrb[0].mxu0 %v895
          %v1108 = vpop.f32.mrb[0].mxu0
          %v1109 = vadd.f32 %v650, %v1108
          %v1110 = vpop.f32.mrb[0].mxu0
          %v1111 = vadd.f32 %v654, %v1110
          %v1112 = vpop.f32.mrb[0].mxu0
          %v1113 = vadd.f32 %v650, %v1112
          %v1114 = vpop.f32.mrb[0].mxu0
          %v1115 = vadd.f32 %v654, %v1114
          %1116 = vmatprep.mubr.bf16.mxu0 0
          %1117 = vmatmul.mubr.bf16.gmra.mrb[0].mxu0 %v898
          %v1118 = vpop.f32.mrb[0].mxu0
          %v1119 = vadd.f32 %v650, %v1118
          %v1120 = vpop.f32.mrb[0].mxu0
          %v1121 = vadd.f32 %v654, %v1120
          %v1122 = vpop.f32.mrb[0].mxu0
          %v1123 = vadd.f32 %v650, %v1122
          %v1124 = vpop.f32.mrb[0].mxu0
          %v1125 = vadd.f32 %v654, %v1124
          %1126 = vmatprep.mubr.bf16.mxu0 0
          %1127 = vmatmul.mubr.bf16.gmra.mrb[0].mxu0 %v901
          %v1128 = vpop.f32.mrb[0].mxu0
          %v1129 = vadd.f32 %v650, %v1128
          %v1130 = vpop.f32.mrb[0].mxu0
          %v1131 = vadd.f32 %v654, %v1130
          %v1132 = vpop.f32.mrb[0].mxu0
          %v1133 = vadd.f32 %v650, %v1132
          %v1134 = vpop.f32.mrb[0].mxu0
          %v1135 = vadd.f32 %v654, %v1134
          %1136 = vmatprep.mubr.bf16.mxu0 0
          %1137 = vmatmul.mubr.bf16.gmra.mrb[0].mxu0 %v904
          %v1138 = vpop.f32.mrb[0].mxu0
          %v1139 = vadd.f32 %v650, %v1138
          %v1140 = vpop.f32.mrb[0].mxu0
          %v1141 = vadd.f32 %v654, %v1140
          %v1142 = vpop.f32.mrb[0].mxu0
          %v1143 = vadd.f32 %v650, %v1142
          %v1144 = vpop.f32.mrb[0].mxu0
          %v1145 = vadd.f32 %v654, %v1144
          %1146 = vmatprep.mubr.bf16.mxu0 0
          %1147 = vmatmul.mubr.bf16.gmra.mrb[0].mxu0 %v907
          %v1148 = vpop.f32.mrb[0].mxu0
          %v1149 = vadd.f32 %v650, %v1148
          %v1150 = vpop.f32.mrb[0].mxu0
          %v1151 = vadd.f32 %v654, %v1150
          %v1152 = vpop.f32.mrb[0].mxu0
          %v1153 = vadd.f32 %v650, %v1152
          %v1154 = vpop.f32.mrb[0].mxu0
          %v1155 = vadd.f32 %v654, %v1154
          %1156 = vmatprep.mubr.bf16.mxu0 0
          %1157 = vmatmul.mubr.bf16.gmra.mrb[0].mxu0 %v910
          %v1158 = vpop.f32.mrb[0].mxu0
          %v1159 = vadd.f32 %v650, %v1158
          %v1160 = vpop.f32.mrb[0].mxu0
          %v1161 = vadd.f32 %v654, %v1160
          %v1162 = vpop.f32.mrb[0].mxu0
          %v1163 = vadd.f32 %v650, %v1162
          %v1164 = vpop.f32.mrb[0].mxu0
          %v1165 = vadd.f32 %v654, %v1164
          %1166 = vmatprep.mubr.bf16.mxu0 0
          %1167 = vmatmul.mubr.bf16.gmra.mrb[0].mxu0 %v913
          %v1168 = vpop.f32.mrb[0].mxu0
          %v1169 = vadd.f32 %v650, %v1168
          %v1170 = vpop.f32.mrb[0].mxu0
          %v1171 = vadd.f32 %v654, %v1170
          %v1172 = vpop.f32.mrb[0].mxu0
          %v1173 = vadd.f32 %v650, %v1172
          %v1174 = vpop.f32.mrb[0].mxu0
          %v1175 = vadd.f32 %v654, %v1174
          %1176 = vmatprep.mubr.bf16.mxu0 0
          %1177 = vmatmul.mubr.bf16.gmra.mrb[0].mxu0 %v916
          %v1178 = vpop.f32.mrb[0].mxu0
          %v1179 = vadd.f32 %v650, %v1178
          %v1180 = vpop.f32.mrb[0].mxu0
          %v1181 = vadd.f32 %v654, %v1180
          %v1182 = vpop.f32.mrb[0].mxu0
          %v1183 = vadd.f32 %v650, %v1182
          %v1184 = vpop.f32.mrb[0].mxu0
          %v1185 = vadd.f32 %v654, %v1184
          %1186 = vmatprep.mubr.bf16.mxu0 0
          %1187 = vmatmul.mubr.bf16.gmra.mrb[0].mxu0 %v919
          %v1188 = vpop.f32.mrb[0].mxu0
          %v1189 = vadd.f32 %v650, %v1188
          %v1190 = vpop.f32.mrb[0].mxu0
          %v1191 = vadd.f32 %v654, %v1190
          %v1192 = vpop.f32.mrb[0].mxu0
          %v1193 = vadd.f32 %v650, %v1192
          %v1194 = vpop.f32.mrb[0].mxu0
          %v1195 = vadd.f32 %v654, %v1194
          %1196 = vmatprep.mubr.bf16.mxu0 0
          %1197 = vmatmul.mubr.bf16.gmra.mrb[0].mxu0 %v922
          %v1198 = vpop.f32.mrb[0].mxu0
          %v1199 = vadd.f32 %v650, %v1198
          %v1200 = vpop.f32.mrb[0].mxu0
          %v1201 = vadd.f32 %v654, %v1200
          %v1202 = vpop.f32.mrb[0].mxu0
          %v1203 = vadd.f32 %v650, %v1202
          %v1204 = vpop.f32.mrb[0].mxu0
          %v1205 = vadd.f32 %v654, %v1204
          %1206 = vmatprep.mubr.bf16.mxu0 0
          %1207 = vmatmul.mubr.bf16.gmra.mrb[0].mxu0 %v925
          %v1208 = vpop.f32.mrb[0].mxu0
          %v1209 = vadd.f32 %v650, %v1208
          %v1210 = vpop.f32.mrb[0].mxu0
          %v1211 = vadd.f32 %v654, %v1210
          %v1212 = vpop.f32.mrb[0].mxu0
          %v1213 = vadd.f32 %v650, %v1212
          %v1214 = vpop.f32.mrb[0].mxu0
          %v1215 = vadd.f32 %v654, %v1214
          %1216 = vmatprep.mubr.bf16.mxu0 0
          %1217 = vmatmul.mubr.bf16.gmra.mrb[0].mxu0 %v928
          %v1218 = vpop.f32.mrb[0].mxu0
          %v1219 = vadd.f32 %v650, %v1218
          %v1220 = vpop.f32.mrb[0].mxu0
          %v1221 = vadd.f32 %v654, %v1220
          %v1222 = vpop.f32.mrb[0].mxu0
          %v1223 = vadd.f32 %v650, %v1222
          %v1224 = vpop.f32.mrb[0].mxu0
          %v1225 = vadd.f32 %v654, %v1224
          %1226 = vmatprep.mubr.bf16.mxu0 0
          %1227 = vmatmul.mubr.bf16.gmra.mrb[0].mxu0 %v931
          %v1228 = vpop.f32.mrb[0].mxu0
          %v1229 = vadd.f32 %v650, %v1228
          %v1230 = vpop.f32.mrb[0].mxu0
          %v1231 = vadd.f32 %v654, %v1230
          %v1232 = vpop.f32.mrb[0].mxu0
          %v1233 = vadd.f32 %v650, %v1232
          %v1234 = vpop.f32.mrb[0].mxu0
          %v1235 = vadd.f32 %v654, %v1234
          %1236 = vmatprep.mubr.bf16.mxu0 0
          %1237 = vmatmul.mubr.bf16.gmra.mrb[0].mxu0 %v934
          %v1238 = vpop.f32.mrb[0].mxu0
          %v1239 = vadd.f32 %v650, %v1238
          %v1240 = vpop.f32.mrb[0].mxu0
          %v1241 = vadd.f32 %v654, %v1240
          %v1242 = vpop.f32.mrb[0].mxu0
          %v1243 = vadd.f32 %v650, %v1242
          %v1244 = vpop.f32.mrb[0].mxu0
          %v1245 = vadd.f32 %v654, %v1244
          %1246 = vmatprep.mubr.bf16.mxu0 0
          %1247 = vmatmul.mubr.bf16.gmra.mrb[0].mxu0 %v937
          %v1248 = vpop.f32.mrb[0].mxu0
          %v1249 = vadd.f32 %v650, %v1248
          %v1250 = vpop.f32.mrb[0].mxu0
          %v1251 = vadd.f32 %v654, %v1250
          %v1252 = vpop.f32.mrb[0].mxu0
          %v1253 = vadd.f32 %v650, %v1252
          %v1254 = vpop.f32.mrb[0].mxu0
          %v1255 = vadd.f32 %v654, %v1254
          %1256 = vmatprep.mubr.bf16.mxu0 0
          %1257 = vmatmul.mubr.bf16.gmra.mrb[0].mxu0 %v940
          %v1258 = vpop.f32.mrb[0].mxu0
          %v1259 = vadd.f32 %v650, %v1258
          %v1260 = vpop.f32.mrb[0].mxu0
          %v1261 = vadd.f32 %v654, %v1260
          %v1262 = vpop.f32.mrb[0].mxu0
          %v1263 = vadd.f32 %v650, %v1262
          %v1264 = vpop.f32.mrb[0].mxu0
          %v1265 = vadd.f32 %v654, %v1264
          %1266 = vmatprep.mubr.bf16.mxu0 0
          %1267 = vmatmul.mubr.bf16.gmra.mrb[0].mxu0 %v943
          %v1268 = vpop.f32.mrb[0].mxu0
          %v1269 = vadd.f32 %v650, %v1268
          %v1270 = vpop.f32.mrb[0].mxu0
          %v1271 = vadd.f32 %v654, %v1270
          %v1272 = vpop.f32.mrb[0].mxu0
          %v1273 = vadd.f32 %v650, %v1272
          %v1274 = vpop.f32.mrb[0].mxu0
          %v1275 = vadd.f32 %v654, %v1274
          %1276 = vmatprep.mubr.bf16.mxu0 0
          %1277 = vmatmul.mubr.bf16.gmra.mrb[0].mxu0 %v946
          %v1278 = vpop.f32.mrb[0].mxu0
          %v1279 = vadd.f32 %v650, %v1278
          %v1280 = vpop.f32.mrb[0].mxu0
          %v1281 = vadd.f32 %v654, %v1280
          %v1282 = vpop.f32.mrb[0].mxu0
          %v1283 = vadd.f32 %v650, %v1282
          %v1284 = vpop.f32.mrb[0].mxu0
          %v1285 = vadd.f32 %v654, %v1284
          %1286 = vmatprep.mubr.bf16.mxu0 0
          %1287 = vmatmul.mubr.bf16.gmra.mrb[0].mxu0 %v949
          %v1288 = vpop.f32.mrb[0].mxu0
          %v1289 = vadd.f32 %v650, %v1288
          %v1290 = vpop.f32.mrb[0].mxu0
          %v1291 = vadd.f32 %v654, %v1290
          %v1292 = vpop.f32.mrb[0].mxu0
          %v1293 = vadd.f32 %v650, %v1292
          %v1294 = vpop.f32.mrb[0].mxu0
          %v1295 = vadd.f32 %v654, %v1294
          %1296 = vmatprep.mubr.bf16.mxu0 0
          %1297 = vmatmul.mubr.bf16.gmra.mrb[0].mxu0 %v952
          %v1298 = vpop.f32.mrb[0].mxu0
          %v1299 = vadd.f32 %v650, %v1298
          %v1300 = vpop.f32.mrb[0].mxu0
          %v1301 = vadd.f32 %v654, %v1300
          %v1302 = vpop.f32.mrb[0].mxu0
          %v1303 = vadd.f32 %v650, %v1302
          %v1304 = vpop.f32.mrb[0].mxu0
          %v1305 = vadd.f32 %v654, %v1304
          %1306 = vdwg.mxu0
          %v1307 = vmax.f32 %v989, 0.0
          %v1308 = vmax.f32 %v991, 0.0
          %v1309 = vmax.f32 %v993, 0.0
          %v1310 = vmax.f32 %v995, 0.0
          %v1311 = vmax.f32 %v999, 0.0
          %v1312 = vmax.f32 %v1001, 0.0
          %v1313 = vmax.f32 %v1003, 0.0
          %v1314 = vmax.f32 %v1005, 0.0
          %v1315 = vmax.f32 %v1009, 0.0
          %v1316 = vmax.f32 %v1011, 0.0
          %v1317 = vmax.f32 %v1013, 0.0
          %v1318 = vmax.f32 %v1015, 0.0
          %v1319 = vmax.f32 %v1019, 0.0
          %v1320 = vmax.f32 %v1021, 0.0
          %v1321 = vmax.f32 %v1023, 0.0
          %v1322 = vmax.f32 %v1025, 0.0
          %v1323 = vmax.f32 %v1029, 0.0
          %v1324 = vmax.f32 %v1031, 0.0
          %v1325 = vmax.f32 %v1033, 0.0
          %v1326 = vmax.f32 %v1035, 0.0
          %v1327 = vmax.f32 %v1039, 0.0
          %v1328 = vmax.f32 %v1041, 0.0
          %v1329 = vmax.f32 %v1043, 0.0
          %v1330 = vmax.f32 %v1045, 0.0
          %v1331 = vmax.f32 %v1049, 0.0
          %v1332 = vmax.f32 %v1051, 0.0
          %v1333 = vmax.f32 %v1053, 0.0
          %v1334 = vmax.f32 %v1055, 0.0
          %v1335 = vmax.f32 %v1059, 0.0
          %v1336 = vmax.f32 %v1061, 0.0
          %v1337 = vmax.f32 %v1063, 0.0
          %v1338 = vmax.f32 %v1065, 0.0
          %v1339 = vmax.f32 %v1069, 0.0
          %v1340 = vmax.f32 %v1071, 0.0
          %v1341 = vmax.f32 %v1073, 0.0
          %v1342 = vmax.f32 %v1075, 0.0
          %v1343 = vmax.f32 %v1079, 0.0
          %v1344 = vmax.f32 %v1081, 0.0
          %v1345 = vmax.f32 %v1083, 0.0
          %v1346 = vmax.f32 %v1085, 0.0
          %v1347 = vmax.f32 %v1089, 0.0
          %v1348 = vmax.f32 %v1091, 0.0
          %v1349 = vmax.f32 %v1093, 0.0
          %v1350 = vmax.f32 %v1095, 0.0
          %v1351 = vmax.f32 %v1099, 0.0
          %v1352 = vmax.f32 %v1101, 0.0
          %v1353 = vmax.f32 %v1103, 0.0
          %v1354 = vmax.f32 %v1105, 0.0
          %v1355 = vmax.f32 %v1109, 0.0
          %v1356 = vmax.f32 %v1111, 0.0
          %v1357 = vmax.f32 %v1113, 0.0
          %v1358 = vmax.f32 %v1115, 0.0
          %v1359 = vmax.f32 %v1119, 0.0
          %v1360 = vmax.f32 %v1121, 0.0
          %v1361 = vmax.f32 %v1123, 0.0
          %v1362 = vmax.f32 %v1125, 0.0
          %v1363 = vmax.f32 %v1129, 0.0
          %v1364 = vmax.f32 %v1131, 0.0
          %v1365 = vmax.f32 %v1133, 0.0
          %v1366 = vmax.f32 %v1135, 0.0
          %v1367 = vmax.f32 %v1139, 0.0
          %v1368 = vmax.f32 %v1141, 0.0
          %v1369 = vmax.f32 %v1143, 0.0
          %v1370 = vmax.f32 %v1145, 0.0
          %v1371 = vmax.f32 %v1149, 0.0
          %v1372 = vmax.f32 %v1151, 0.0
          %v1373 = vmax.f32 %v1153, 0.0
          %v1374 = vmax.f32 %v1155, 0.0
          %v1375 = vmax.f32 %v1159, 0.0
          %v1376 = vmax.f32 %v1161, 0.0
          %v1377 = vmax.f32 %v1163, 0.0
          %v1378 = vmax.f32 %v1165, 0.0
          %v1379 = vmax.f32 %v1169, 0.0
          %v1380 = vmax.f32 %v1171, 0.0
          %v1381 = vmax.f32 %v1173, 0.0
          %v1382 = vmax.f32 %v1175, 0.0
          %v1383 = vmax.f32 %v1179, 0.0
          %v1384 = vmax.f32 %v1181, 0.0
          %v1385 = vmax.f32 %v1183, 0.0
          %v1386 = vmax.f32 %v1185, 0.0
          %v1387 = vmax.f32 %v1189, 0.0
          %v1388 = vmax.f32 %v1191, 0.0
          %v1389 = vmax.f32 %v1193, 0.0
          %v1390 = vmax.f32 %v1195, 0.0
          %v1391 = vmax.f32 %v1199, 0.0
          %v1392 = vmax.f32 %v1201, 0.0
          %v1393 = vmax.f32 %v1203, 0.0
          %v1394 = vmax.f32 %v1205, 0.0
          %v1395 = vmax.f32 %v1209, 0.0
          %v1396 = vmax.f32 %v1211, 0.0
          %v1397 = vmax.f32 %v1213, 0.0
          %v1398 = vmax.f32 %v1215, 0.0
          %v1399 = vmax.f32 %v1219, 0.0
          %v1400 = vmax.f32 %v1221, 0.0
          %v1401 = vmax.f32 %v1223, 0.0
          %v1402 = vmax.f32 %v1225, 0.0
          %v1403 = vmax.f32 %v1229, 0.0
          %v1404 = vmax.f32 %v1231, 0.0
          %v1405 = vmax.f32 %v1233, 0.0
          %v1406 = vmax.f32 %v1235, 0.0
          %v1407 = vmax.f32 %v1239, 0.0
          %v1408 = vmax.f32 %v1241, 0.0
          %v1409 = vmax.f32 %v1243, 0.0
          %v1410 = vmax.f32 %v1245, 0.0
          %v1411 = vmax.f32 %v1249, 0.0
          %v1412 = vmax.f32 %v1251, 0.0
          %v1413 = vmax.f32 %v1253, 0.0
          %v1414 = vmax.f32 %v1255, 0.0
          %v1415 = vmax.f32 %v1259, 0.0
          %v1416 = vmax.f32 %v1261, 0.0
          %v1417 = vmax.f32 %v1263, 0.0
          %v1418 = vmax.f32 %v1265, 0.0
          %v1419 = vmax.f32 %v1269, 0.0
          %v1420 = vmax.f32 %v1271, 0.0
          %v1421 = vmax.f32 %v1273, 0.0
          %v1422 = vmax.f32 %v1275, 0.0
          %v1423 = vmax.f32 %v1279, 0.0
          %v1424 = vmax.f32 %v1281, 0.0
          %v1425 = vmax.f32 %v1283, 0.0
          %v1426 = vmax.f32 %v1285, 0.0
          %v1427 = vmax.f32 %v1289, 0.0
          %v1428 = vmax.f32 %v1291, 0.0
          %v1429 = vmax.f32 %v1293, 0.0
          %v1430 = vmax.f32 %v1295, 0.0
          %v1431 = vmax.f32 %v1299, 0.0
          %v1432 = vmax.f32 %v1301, 0.0
          %v1433 = vmax.f32 %v1303, 0.0
          %v1434 = vmax.f32 %v1305, 0.0
          %v1435 = vadd.f32 %v1307, %v1309
          %v1436 = vadd.f32 %v1435, %v1311
          %v1437 = vadd.f32 %v1436, %v1313
          %v1438 = vadd.f32 %v1437, %v1315
          %v1439 = vadd.f32 %v1438, %v1317
          %v1440 = vadd.f32 %v1439, %v1319
          %v1441 = vadd.f32 %v1440, %v1321
          %v1442 = vadd.f32 %v1441, %v1323
          %v1443 = vadd.f32 %v1442, %v1325
          %v1444 = vadd.f32 %v1443, %v1327
          %v1445 = vadd.f32 %v1444, %v1329
          %v1446 = vadd.f32 %v1445, %v1331
          %v1447 = vadd.f32 %v1446, %v1333
          %v1448 = vadd.f32 %v1447, %v1335
          %v1449 = vadd.f32 %v1448, %v1337
          %v1450 = vadd.f32 %v1449, %v1339
          %v1451 = vadd.f32 %v1450, %v1341
          %v1452 = vadd.f32 %v1451, %v1343
          %v1453 = vadd.f32 %v1452, %v1345
          %v1454 = vadd.f32 %v1453, %v1347
          %v1455 = vadd.f32 %v1454, %v1349
          %v1456 = vadd.f32 %v1455, %v1351
          %v1457 = vadd.f32 %v1456, %v1353
          %v1458 = vadd.f32 %v1457, %v1355
          %v1459 = vadd.f32 %v1458, %v1357
          %v1460 = vadd.f32 %v1459, %v1359
          %v1461 = vadd.f32 %v1460, %v1361
          %v1462 = vadd.f32 %v1461, %v1363
          %v1463 = vadd.f32 %v1462, %v1365
          %v1464 = vadd.f32 %v1463, %v1367
          %v1465 = vadd.f32 %v1464, %v1369
          %v1466 = vrot.slane %v1465, 4
          %v1467 = vadd.f32 %v1465, %v1466
          %v1468 = vrot.slane %v1467, 2
          %v1469 = vadd.f32 %v1467, %v1468
          %v1470 = vrot.slane %v1469, 1
          %v1471 = vadd.f32 %v1469, %v1470
          %v1472 = vadd.f32 %v1308, %v1310
          %v1473 = vadd.f32 %v1472, %v1312
          %v1474 = vadd.f32 %v1473, %v1314
          %v1475 = vadd.f32 %v1474, %v1316
          %v1476 = vadd.f32 %v1475, %v1318
          %v1477 = vadd.f32 %v1476, %v1320
          %v1478 = vadd.f32 %v1477, %v1322
          %v1479 = vadd.f32 %v1478, %v1324
          %v1480 = vadd.f32 %v1479, %v1326
          %v1481 = vadd.f32 %v1480, %v1328
          %v1482 = vadd.f32 %v1481, %v1330
          %v1483 = vadd.f32 %v1482, %v1332
          %v1484 = vadd.f32 %v1483, %v1334
          %v1485 = vadd.f32 %v1484, %v1336
          %v1486 = vadd.f32 %v1485, %v1338
          %v1487 = vadd.f32 %v1486, %v1340
          %v1488 = vadd.f32 %v1487, %v1342
          %v1489 = vadd.f32 %v1488, %v1344
          %v1490 = vadd.f32 %v1489, %v1346
          %v1491 = vadd.f32 %v1490, %v1348
          %v1492 = vadd.f32 %v1491, %v1350
          %v1493 = vadd.f32 %v1492, %v1352
          %v1494 = vadd.f32 %v1493, %v1354
          %v1495 = vadd.f32 %v1494, %v1356
          %v1496 = vadd.f32 %v1495, %v1358
          %v1497 = vadd.f32 %v1496, %v1360
          %v1498 = vadd.f32 %v1497, %v1362
          %v1499 = vadd.f32 %v1498, %v1364
          %v1500 = vadd.f32 %v1499, %v1366
          %v1501 = vadd.f32 %v1500, %v1368
          %v1502 = vadd.f32 %v1501, %v1370
          %v1503 = vrot.slane %v1502, 4
          %v1504 = vadd.f32 %v1502, %v1503
          %v1505 = vrot.slane %v1504, 2
          %v1506 = vadd.f32 %v1504, %v1505
          %v1507 = vrot.slane %v1506, 1
          %v1508 = vadd.f32 %v1506, %v1507
          %v1509 = vadd.f32 %v1371, %v1373
          %v1510 = vadd.f32 %v1509, %v1375
          %v1511 = vadd.f32 %v1510, %v1377
          %v1512 = vadd.f32 %v1511, %v1379
          %v1513 = vadd.f32 %v1512, %v1381
          %v1514 = vadd.f32 %v1513, %v1383
          %v1515 = vadd.f32 %v1514, %v1385
          %v1516 = vadd.f32 %v1515, %v1387
          %v1517 = vadd.f32 %v1516, %v1389
          %v1518 = vadd.f32 %v1517, %v1391
          %v1519 = vadd.f32 %v1518, %v1393
          %v1520 = vadd.f32 %v1519, %v1395
          %v1521 = vadd.f32 %v1520, %v1397
          %v1522 = vadd.f32 %v1521, %v1399
          %v1523 = vadd.f32 %v1522, %v1401
          %v1524 = vadd.f32 %v1523, %v1403
          %v1525 = vadd.f32 %v1524, %v1405
          %v1526 = vadd.f32 %v1525, %v1407
          %v1527 = vadd.f32 %v1526, %v1409
          %v1528 = vadd.f32 %v1527, %v1411
          %v1529 = vadd.f32 %v1528, %v1413
          %v1530 = vadd.f32 %v1529, %v1415
          %v1531 = vadd.f32 %v1530, %v1417
          %v1532 = vadd.f32 %v1531, %v1419
          %v1533 = vadd.f32 %v1532, %v1421
          %v1534 = vadd.f32 %v1533, %v1423
          %v1535 = vadd.f32 %v1534, %v1425
          %v1536 = vadd.f32 %v1535, %v1427
          %v1537 = vadd.f32 %v1536, %v1429
          %v1538 = vadd.f32 %v1537, %v1431
          %v1539 = vadd.f32 %v1538, %v1433
          %v1540 = vrot.slane %v1539, 4
          %v1541 = vadd.f32 %v1539, %v1540
          %v1542 = vrot.slane %v1541, 2
          %v1543 = vadd.f32 %v1541, %v1542
          %v1544 = vrot.slane %v1543, 1
          %v1545 = vadd.f32 %v1543, %v1544
          %v1546 = vadd.f32 %v1372, %v1374
          %v1547 = vadd.f32 %v1546, %v1376
          %v1548 = vadd.f32 %v1547, %v1378
          %v1549 = vadd.f32 %v1548, %v1380
          %v1550 = vadd.f32 %v1549, %v1382
          %v1551 = vadd.f32 %v1550, %v1384
          %v1552 = vadd.f32 %v1551, %v1386
          %v1553 = vadd.f32 %v1552, %v1388
          %v1554 = vadd.f32 %v1553, %v1390
          %v1555 = vadd.f32 %v1554, %v1392
          %v1556 = vadd.f32 %v1555, %v1394
          %v1557 = vadd.f32 %v1556, %v1396
          %v1558 = vadd.f32 %v1557, %v1398
          %v1559 = vadd.f32 %v1558, %v1400
          %v1560 = vadd.f32 %v1559, %v1402
          %v1561 = vadd.f32 %v1560, %v1404
          %v1562 = vadd.f32 %v1561, %v1406
          %v1563 = vadd.f32 %v1562, %v1408
          %v1564 = vadd.f32 %v1563, %v1410
          %v1565 = vadd.f32 %v1564, %v1412
          %v1566 = vadd.f32 %v1565, %v1414
          %v1567 = vadd.f32 %v1566, %v1416
          %v1568 = vadd.f32 %v1567, %v1418
          %v1569 = vadd.f32 %v1568, %v1420
          %v1570 = vadd.f32 %v1569, %v1422
          %v1571 = vadd.f32 %v1570, %v1424
          %v1572 = vadd.f32 %v1571, %v1426
          %v1573 = vadd.f32 %v1572, %v1428
          %v1574 = vadd.f32 %v1573, %v1430
          %v1575 = vadd.f32 %v1574, %v1432
          %v1576 = vadd.f32 %v1575, %v1434
          %v1577 = vrot.slane %v1576, 4
          %v1578 = vadd.f32 %v1576, %v1577
          %v1579 = vrot.slane %v1578, 2
          %v1580 = vadd.f32 %v1578, %v1579
          %v1581 = vrot.slane %v1580, 1
          %v1582 = vadd.f32 %v1580, %v1581
          %v1583 = vrcp.pop 256.0
          %v1584 = vmul.f32 %v1471, %v1583
          %v1585 = vmul.f32 %v1508, %v1583
          %v1586 = vmul.f32 %v1545, %v1583
          %v1587 = vmul.f32 %v1582, %v1583
          %v1588 = vpack.c.bf16 %v1584, %v1584
          %v1589 = vpack.c.bf16 %v1585, %v1585
          %v1590 = vpack.c.bf16 %v1586, %v1586
          %v1591 = vpack.c.bf16 %v1587, %v1587
          %v1592 = vld [vmem:[#allocation8] sm:$0xff]
          %v1593 = vld [vmem:[#allocation8 + $0x8] sm:$0xff]
          %v1594 = vld [vmem:[#allocation8 + $0x10] sm:$0xff]
          %v1595 = vld [vmem:[#allocation8 + $0x18] sm:$0xff]
          %v1596 = vld [vmem:[#allocation8 + $0x20] sm:$0xff]
          %v1597 = vld [vmem:[#allocation8 + $0x28] sm:$0xff]
          %v1598 = vld [vmem:[#allocation8 + $0x30] sm:$0xff]
          %v1599 = vld [vmem:[#allocation8 + $0x38] sm:$0xff]
          %v1600 = vld [vmem:[#allocation8 + $0x40] sm:$0xff]
          %v1601 = vld [vmem:[#allocation8 + $0x48] sm:$0xff]
          %v1602 = vld [vmem:[#allocation8 + $0x50] sm:$0xff]
          %v1603 = vld [vmem:[#allocation8 + $0x58] sm:$0xff]
          %v1604 = vld [vmem:[#allocation8 + $0x60] sm:$0xff]
          %v1605 = vld [vmem:[#allocation8 + $0x68] sm:$0xff]
          %v1606 = vld [vmem:[#allocation8 + $0x70] sm:$0xff]
          %v1607 = vld [vmem:[#allocation8 + $0x78] sm:$0xff]
          %v1608 = vld [vmem:[#allocation8 + $0x80] sm:$0xff]
          %v1609 = vld [vmem:[#allocation8 + $0x88] sm:$0xff]
          %v1610 = vld [vmem:[#allocation8 + $0x90] sm:$0xff]
          %v1611 = vld [vmem:[#allocation8 + $0x98] sm:$0xff]
          %v1612 = vld [vmem:[#allocation8 + $0xa0] sm:$0xff]
          %v1613 = vld [vmem:[#allocation8 + $0xa8] sm:$0xff]
          %v1614 = vld [vmem:[#allocation8 + $0xb0] sm:$0xff]
          %v1615 = vld [vmem:[#allocation8 + $0xb8] sm:$0xff]
          %v1616 = vld [vmem:[#allocation8 + $0xc0] sm:$0xff]
          %v1617 = vld [vmem:[#allocation8 + $0xc8] sm:$0xff]
          %v1618 = vld [vmem:[#allocation8 + $0xd0] sm:$0xff]
          %v1619 = vld [vmem:[#allocation8 + $0xd8] sm:$0xff]
          %v1620 = vld [vmem:[#allocation8 + $0xe0] sm:$0xff]
          %v1621 = vld [vmem:[#allocation8 + $0xe8] sm:$0xff]
          %v1622 = vld [vmem:[#allocation8 + $0xf0] sm:$0xff]
          %v1623 = vld [vmem:[#allocation8 + $0xf8] sm:$0xff]
          %v1624 = vld [vmem:[#allocation8 + $0x100] sm:$0xff]
          %v1625 = vld [vmem:[#allocation8 + $0x108] sm:$0xff]
          %v1626 = vld [vmem:[#allocation8 + $0x110] sm:$0xff]
          %v1627 = vld [vmem:[#allocation8 + $0x118] sm:$0xff]
          %v1628 = vld [vmem:[#allocation8 + $0x120] sm:$0xff]
          %v1629 = vld [vmem:[#allocation8 + $0x128] sm:$0xff]
          %v1630 = vld [vmem:[#allocation8 + $0x130] sm:$0xff]
          %v1631 = vld [vmem:[#allocation8 + $0x138] sm:$0xff]
          %v1632 = vld [vmem:[#allocation8 + $0x140] sm:$0xff]
          %v1633 = vld [vmem:[#allocation8 + $0x148] sm:$0xff]
          %v1634 = vld [vmem:[#allocation8 + $0x150] sm:$0xff]
          %v1635 = vld [vmem:[#allocation8 + $0x158] sm:$0xff]
          %v1636 = vld [vmem:[#allocation8 + $0x160] sm:$0xff]
          %v1637 = vld [vmem:[#allocation8 + $0x168] sm:$0xff]
          %v1638 = vld [vmem:[#allocation8 + $0x170] sm:$0xff]
          %v1639 = vld [vmem:[#allocation8 + $0x178] sm:$0xff]
          %v1640 = vld [vmem:[#allocation8 + $0x180] sm:$0xff]
          %v1641 = vld [vmem:[#allocation8 + $0x188] sm:$0xff]
          %v1642 = vld [vmem:[#allocation8 + $0x190] sm:$0xff]
          %v1643 = vld [vmem:[#allocation8 + $0x198] sm:$0xff]
          %v1644 = vld [vmem:[#allocation8 + $0x1a0] sm:$0xff]
          %v1645 = vld [vmem:[#allocation8 + $0x1a8] sm:$0xff]
          %v1646 = vld [vmem:[#allocation8 + $0x1b0] sm:$0xff]
          %v1647 = vld [vmem:[#allocation8 + $0x1b8] sm:$0xff]
          %v1648 = vld [vmem:[#allocation8 + $0x1c0] sm:$0xff]
          %v1649 = vld [vmem:[#allocation8 + $0x1c8] sm:$0xff]
          %v1650 = vld [vmem:[#allocation8 + $0x1d0] sm:$0xff]
          %v1651 = vld [vmem:[#allocation8 + $0x1d8] sm:$0xff]
          %v1652 = vld [vmem:[#allocation8 + $0x1e0] sm:$0xff]
          %v1653 = vld [vmem:[#allocation8 + $0x1e8] sm:$0xff]
          %v1654 = vld [vmem:[#allocation8 + $0x1f0] sm:$0xff]
          %v1655 = vld [vmem:[#allocation8 + $0x1f8] sm:$0xff]
          %v1656 = vld [vmem:[#allocation8 + $0x200] sm:$0xff]
          %v1657 = vld [vmem:[#allocation8 + $0x208] sm:$0xff]
          %v1658 = vld [vmem:[#allocation8 + $0x210] sm:$0xff]
          %v1659 = vld [vmem:[#allocation8 + $0x218] sm:$0xff]
          %v1660 = vld [vmem:[#allocation8 + $0x220] sm:$0xff]
          %v1661 = vld [vmem:[#allocation8 + $0x228] sm:$0xff]
          %v1662 = vld [vmem:[#allocation8 + $0x230] sm:$0xff]
          %v1663 = vld [vmem:[#allocation8 + $0x238] sm:$0xff]
          %v1664 = vld [vmem:[#allocation8 + $0x240] sm:$0xff]
          %v1665 = vld [vmem:[#allocation8 + $0x248] sm:$0xff]
          %v1666 = vld [vmem:[#allocation8 + $0x250] sm:$0xff]
          %v1667 = vld [vmem:[#allocation8 + $0x258] sm:$0xff]
          %v1668 = vld [vmem:[#allocation8 + $0x260] sm:$0xff]
          %v1669 = vld [vmem:[#allocation8 + $0x268] sm:$0xff]
          %v1670 = vld [vmem:[#allocation8 + $0x270] sm:$0xff]
          %v1671 = vld [vmem:[#allocation8 + $0x278] sm:$0xff]
          %v1672 = vld [vmem:[#allocation8 + $0x280] sm:$0xff]
          %v1673 = vld [vmem:[#allocation8 + $0x288] sm:$0xff]
          %v1674 = vld [vmem:[#allocation8 + $0x290] sm:$0xff]
          %v1675 = vld [vmem:[#allocation8 + $0x298] sm:$0xff]
          %v1676 = vld [vmem:[#allocation8 + $0x2a0] sm:$0xff]
          %v1677 = vld [vmem:[#allocation8 + $0x2a8] sm:$0xff]
          %v1678 = vld [vmem:[#allocation8 + $0x2b0] sm:$0xff]
          %v1679 = vld [vmem:[#allocation8 + $0x2b8] sm:$0xff]
          %v1680 = vld [vmem:[#allocation8 + $0x2c0] sm:$0xff]
          %v1681 = vld [vmem:[#allocation8 + $0x2c8] sm:$0xff]
          %v1682 = vld [vmem:[#allocation8 + $0x2d0] sm:$0xff]
          %v1683 = vld [vmem:[#allocation8 + $0x2d8] sm:$0xff]
          %v1684 = vld [vmem:[#allocation8 + $0x2e0] sm:$0xff]
          %v1685 = vld [vmem:[#allocation8 + $0x2e8] sm:$0xff]
          %v1686 = vld [vmem:[#allocation8 + $0x2f0] sm:$0xff]
          %v1687 = vld [vmem:[#allocation8 + $0x2f8] sm:$0xff]
          %v1688 = vld [vmem:[#allocation8 + $0x300] sm:$0xff]
          %v1689 = vld [vmem:[#allocation8 + $0x308] sm:$0xff]
          %v1690 = vld [vmem:[#allocation8 + $0x310] sm:$0xff]
          %v1691 = vld [vmem:[#allocation8 + $0x318] sm:$0xff]
          %v1692 = vld [vmem:[#allocation8 + $0x320] sm:$0xff]
          %v1693 = vld [vmem:[#allocation8 + $0x328] sm:$0xff]
          %v1694 = vld [vmem:[#allocation8 + $0x330] sm:$0xff]
          %v1695 = vld [vmem:[#allocation8 + $0x338] sm:$0xff]
          %v1696 = vld [vmem:[#allocation8 + $0x340] sm:$0xff]
          %v1697 = vld [vmem:[#allocation8 + $0x348] sm:$0xff]
          %v1698 = vld [vmem:[#allocation8 + $0x350] sm:$0xff]
          %v1699 = vld [vmem:[#allocation8 + $0x358] sm:$0xff]
          %v1700 = vld [vmem:[#allocation8 + $0x360] sm:$0xff]
          %v1701 = vld [vmem:[#allocation8 + $0x368] sm:$0xff]
          %v1702 = vld [vmem:[#allocation8 + $0x370] sm:$0xff]
          %v1703 = vld [vmem:[#allocation8 + $0x378] sm:$0xff]
          %v1704 = vld [vmem:[#allocation8 + $0x380] sm:$0xff]
          %v1705 = vld [vmem:[#allocation8 + $0x388] sm:$0xff]
          %v1706 = vld [vmem:[#allocation8 + $0x390] sm:$0xff]
          %v1707 = vld [vmem:[#allocation8 + $0x398] sm:$0xff]
          %v1708 = vld [vmem:[#allocation8 + $0x3a0] sm:$0xff]
          %v1709 = vld [vmem:[#allocation8 + $0x3a8] sm:$0xff]
          %v1710 = vld [vmem:[#allocation8 + $0x3b0] sm:$0xff]
          %v1711 = vld [vmem:[#allocation8 + $0x3b8] sm:$0xff]
          %v1712 = vld [vmem:[#allocation8 + $0x3c0] sm:$0xff]
          %v1713 = vld [vmem:[#allocation8 + $0x3c8] sm:$0xff]
          %v1714 = vld [vmem:[#allocation8 + $0x3d0] sm:$0xff]
          %v1715 = vld [vmem:[#allocation8 + $0x3d8] sm:$0xff]
          %v1716 = vld [vmem:[#allocation8 + $0x3e0] sm:$0xff]
          %v1717 = vld [vmem:[#allocation8 + $0x3e8] sm:$0xff]
          %v1718 = vld [vmem:[#allocation8 + $0x3f0] sm:$0xff]
          %v1719 = vld [vmem:[#allocation8 + $0x3f8] sm:$0xff]
          %v1722 = vunpack.c.l.b16 %v1588
          %v1723 = vunpack.c.l.b16 %v1590
          %vm1724 = vcmask 1041409
          %v1725 = vsel %vm1724, %v1723, %v1722
          %v1726 = vpack.c.b16 %v1725, %v1725
          %v1856 = vunpack.c.l.b16 %v1592
          %v1857 = vunpack.c.h.b16 %v1592
          %v1858 = vunpack.c.l.b16 %v1593
          %v1859 = vunpack.c.h.b16 %v1593
          %v1860 = vunpack.c.l.b16 %v1594
          %v1861 = vunpack.c.h.b16 %v1594
          %v1862 = vunpack.c.l.b16 %v1595
          %v1863 = vunpack.c.h.b16 %v1595
          %v1864 = vunpack.c.l.b16 %v1596
          %v1865 = vunpack.c.h.b16 %v1596
          %v1866 = vunpack.c.l.b16 %v1597
          %v1867 = vunpack.c.h.b16 %v1597
          %v1868 = vunpack.c.l.b16 %v1598
          %v1869 = vunpack.c.h.b16 %v1598
          %v1870 = vunpack.c.l.b16 %v1599
          %v1871 = vunpack.c.h.b16 %v1599
          %v1872 = vunpack.c.l.b16 %v1600
          %v1873 = vunpack.c.h.b16 %v1600
          %v1874 = vunpack.c.l.b16 %v1601
          %v1875 = vunpack.c.h.b16 %v1601
          %v1876 = vunpack.c.l.b16 %v1602
          %v1877 = vunpack.c.h.b16 %v1602
          %v1878 = vunpack.c.l.b16 %v1603
          %v1879 = vunpack.c.h.b16 %v1603
          %v1880 = vunpack.c.l.b16 %v1604
          %v1881 = vunpack.c.h.b16 %v1604
          %v1882 = vunpack.c.l.b16 %v1605
          %v1883 = vunpack.c.h.b16 %v1605
          %v1884 = vunpack.c.l.b16 %v1606
          %v1885 = vunpack.c.h.b16 %v1606
          %v1886 = vunpack.c.l.b16 %v1607
          %v1887 = vunpack.c.h.b16 %v1607
          %v1888 = vunpack.c.l.b16 %v1608
          %v1889 = vunpack.c.h.b16 %v1608
          %v1890 = vunpack.c.l.b16 %v1609
          %v1891 = vunpack.c.h.b16 %v1609
          %v1892 = vunpack.c.l.b16 %v1610
          %v1893 = vunpack.c.h.b16 %v1610
          %v1894 = vunpack.c.l.b16 %v1611
          %v1895 = vunpack.c.h.b16 %v1611
          %v1896 = vunpack.c.l.b16 %v1612
          %v1897 = vunpack.c.h.b16 %v1612
          %v1898 = vunpack.c.l.b16 %v1613
          %v1899 = vunpack.c.h.b16 %v1613
          %v1900 = vunpack.c.l.b16 %v1614
          %v1901 = vunpack.c.h.b16 %v1614
          %v1902 = vunpack.c.l.b16 %v1615
          %v1903 = vunpack.c.h.b16 %v1615
          %v1904 = vunpack.c.l.b16 %v1616
          %v1905 = vunpack.c.h.b16 %v1616
          %v1906 = vunpack.c.l.b16 %v1617
          %v1907 = vunpack.c.h.b16 %v1617
          %v1908 = vunpack.c.l.b16 %v1618
          %v1909 = vunpack.c.h.b16 %v1618
          %v1910 = vunpack.c.l.b16 %v1619
          %v1911 = vunpack.c.h.b16 %v1619
          %v1912 = vunpack.c.l.b16 %v1620
          %v1913 = vunpack.c.h.b16 %v1620
          %v1914 = vunpack.c.l.b16 %v1621
          %v1915 = vunpack.c.h.b16 %v1621
          %v1916 = vunpack.c.l.b16 %v1622
          %v1917 = vunpack.c.h.b16 %v1622
          %v1918 = vunpack.c.l.b16 %v1623
          %v1919 = vunpack.c.h.b16 %v1623
          %v1920 = vunpack.c.l.b16 %v1624
          %v1921 = vunpack.c.h.b16 %v1624
          %v1922 = vunpack.c.l.b16 %v1625
          %v1923 = vunpack.c.h.b16 %v1625
          %v1924 = vunpack.c.l.b16 %v1626
          %v1925 = vunpack.c.h.b16 %v1626
          %v1926 = vunpack.c.l.b16 %v1627
          %v1927 = vunpack.c.h.b16 %v1627
          %v1928 = vunpack.c.l.b16 %v1628
          %v1929 = vunpack.c.h.b16 %v1628
          %v1930 = vunpack.c.l.b16 %v1629
          %v1931 = vunpack.c.h.b16 %v1629
          %v1932 = vunpack.c.l.b16 %v1630
          %v1933 = vunpack.c.h.b16 %v1630
          %v1934 = vunpack.c.l.b16 %v1631
          %v1935 = vunpack.c.h.b16 %v1631
          %v1936 = vunpack.c.l.b16 %v1632
          %v1937 = vunpack.c.h.b16 %v1632
          %v1938 = vunpack.c.l.b16 %v1633
          %v1939 = vunpack.c.h.b16 %v1633
          %v1940 = vunpack.c.l.b16 %v1634
          %v1941 = vunpack.c.h.b16 %v1634
          %v1942 = vunpack.c.l.b16 %v1635
          %v1943 = vunpack.c.h.b16 %v1635
          %v1944 = vunpack.c.l.b16 %v1636
          %v1945 = vunpack.c.h.b16 %v1636
          %v1946 = vunpack.c.l.b16 %v1637
          %v1947 = vunpack.c.h.b16 %v1637
          %v1948 = vunpack.c.l.b16 %v1638
          %v1949 = vunpack.c.h.b16 %v1638
          %v1950 = vunpack.c.l.b16 %v1639
          %v1951 = vunpack.c.h.b16 %v1639
          %v1952 = vunpack.c.l.b16 %v1640
          %v1953 = vunpack.c.h.b16 %v1640
          %v1954 = vunpack.c.l.b16 %v1641
          %v1955 = vunpack.c.h.b16 %v1641
          %v1956 = vunpack.c.l.b16 %v1642
          %v1957 = vunpack.c.h.b16 %v1642
          %v1958 = vunpack.c.l.b16 %v1643
          %v1959 = vunpack.c.h.b16 %v1643
          %v1960 = vunpack.c.l.b16 %v1644
          %v1961 = vunpack.c.h.b16 %v1644
          %v1962 = vunpack.c.l.b16 %v1645
          %v1963 = vunpack.c.h.b16 %v1645
          %v1964 = vunpack.c.l.b16 %v1646
          %v1965 = vunpack.c.h.b16 %v1646
          %v1966 = vunpack.c.l.b16 %v1647
          %v1967 = vunpack.c.h.b16 %v1647
          %v1968 = vunpack.c.l.b16 %v1648
          %v1969 = vunpack.c.h.b16 %v1648
          %v1970 = vunpack.c.l.b16 %v1649
          %v1971 = vunpack.c.h.b16 %v1649
          %v1972 = vunpack.c.l.b16 %v1650
          %v1973 = vunpack.c.h.b16 %v1650
          %v1974 = vunpack.c.l.b16 %v1651
          %v1975 = vunpack.c.h.b16 %v1651
          %v1976 = vunpack.c.l.b16 %v1652
          %v1977 = vunpack.c.h.b16 %v1652
          %v1978 = vunpack.c.l.b16 %v1653
          %v1979 = vunpack.c.h.b16 %v1653
          %v1980 = vunpack.c.l.b16 %v1654
          %v1981 = vunpack.c.h.b16 %v1654
          %v1982 = vunpack.c.l.b16 %v1655
          %v1983 = vunpack.c.h.b16 %v1655
          %v1984 = vunpack.c.l.b16 %v1656
          %v1985 = vunpack.c.h.b16 %v1656
          %v1986 = vunpack.c.l.b16 %v1657
          %v1987 = vunpack.c.h.b16 %v1657
          %v1988 = vunpack.c.l.b16 %v1658
          %v1989 = vunpack.c.h.b16 %v1658
          %v1990 = vunpack.c.l.b16 %v1659
          %v1991 = vunpack.c.h.b16 %v1659
          %v1992 = vunpack.c.l.b16 %v1660
          %v1993 = vunpack.c.h.b16 %v1660
          %v1994 = vunpack.c.l.b16 %v1661
          %v1995 = vunpack.c.h.b16 %v1661
          %v1996 = vunpack.c.l.b16 %v1662
          %v1997 = vunpack.c.h.b16 %v1662
          %v1998 = vunpack.c.l.b16 %v1663
          %v1999 = vunpack.c.h.b16 %v1663
          %v2000 = vunpack.c.l.b16 %v1664
          %v2001 = vunpack.c.h.b16 %v1664
          %v2002 = vunpack.c.l.b16 %v1665
          %v2003 = vunpack.c.h.b16 %v1665
          %v2004 = vunpack.c.l.b16 %v1666
          %v2005 = vunpack.c.h.b16 %v1666
          %v2006 = vunpack.c.l.b16 %v1667
          %v2007 = vunpack.c.h.b16 %v1667
          %v2008 = vunpack.c.l.b16 %v1668
          %v2009 = vunpack.c.h.b16 %v1668
          %v2010 = vunpack.c.l.b16 %v1669
          %v2011 = vunpack.c.h.b16 %v1669
          %v2012 = vunpack.c.l.b16 %v1670
          %v2013 = vunpack.c.h.b16 %v1670
          %v2014 = vunpack.c.l.b16 %v1671
          %v2015 = vunpack.c.h.b16 %v1671
          %v2016 = vunpack.c.l.b16 %v1672
          %v2017 = vunpack.c.h.b16 %v1672
          %v2018 = vunpack.c.l.b16 %v1673
          %v2019 = vunpack.c.h.b16 %v1673
          %v2020 = vunpack.c.l.b16 %v1674
          %v2021 = vunpack.c.h.b16 %v1674
          %v2022 = vunpack.c.l.b16 %v1675
          %v2023 = vunpack.c.h.b16 %v1675
          %v2024 = vunpack.c.l.b16 %v1676
          %v2025 = vunpack.c.h.b16 %v1676
          %v2026 = vunpack.c.l.b16 %v1677
          %v2027 = vunpack.c.h.b16 %v1677
          %v2028 = vunpack.c.l.b16 %v1678
          %v2029 = vunpack.c.h.b16 %v1678
          %v2030 = vunpack.c.l.b16 %v1679
          %v2031 = vunpack.c.h.b16 %v1679
          %v2032 = vunpack.c.l.b16 %v1680
          %v2033 = vunpack.c.h.b16 %v1680
          %v2034 = vunpack.c.l.b16 %v1681
          %v2035 = vunpack.c.h.b16 %v1681
          %v2036 = vunpack.c.l.b16 %v1682
          %v2037 = vunpack.c.h.b16 %v1682
          %v2038 = vunpack.c.l.b16 %v1683
          %v2039 = vunpack.c.h.b16 %v1683
          %v2040 = vunpack.c.l.b16 %v1684
          %v2041 = vunpack.c.h.b16 %v1684
          %v2042 = vunpack.c.l.b16 %v1685
          %v2043 = vunpack.c.h.b16 %v1685
          %v2044 = vunpack.c.l.b16 %v1686
          %v2045 = vunpack.c.h.b16 %v1686
          %v2046 = vunpack.c.l.b16 %v1687
          %v2047 = vunpack.c.h.b16 %v1687
          %v2048 = vunpack.c.l.b16 %v1688
          %v2049 = vunpack.c.h.b16 %v1688
          %v2050 = vunpack.c.l.b16 %v1689
          %v2051 = vunpack.c.h.b16 %v1689
          %v2052 = vunpack.c.l.b16 %v1690
          %v2053 = vunpack.c.h.b16 %v1690
          %v2054 = vunpack.c.l.b16 %v1691
          %v2055 = vunpack.c.h.b16 %v1691
          %v2056 = vunpack.c.l.b16 %v1692
          %v2057 = vunpack.c.h.b16 %v1692
          %v2058 = vunpack.c.l.b16 %v1693
          %v2059 = vunpack.c.h.b16 %v1693
          %v2060 = vunpack.c.l.b16 %v1694
          %v2061 = vunpack.c.h.b16 %v1694
          %v2062 = vunpack.c.l.b16 %v1695
          %v2063 = vunpack.c.h.b16 %v1695
          %v2064 = vunpack.c.l.b16 %v1696
          %v2065 = vunpack.c.h.b16 %v1696
          %v2066 = vunpack.c.l.b16 %v1697
          %v2067 = vunpack.c.h.b16 %v1697
          %v2068 = vunpack.c.l.b16 %v1698
          %v2069 = vunpack.c.h.b16 %v1698
          %v2070 = vunpack.c.l.b16 %v1699
          %v2071 = vunpack.c.h.b16 %v1699
          %v2072 = vunpack.c.l.b16 %v1700
          %v2073 = vunpack.c.h.b16 %v1700
          %v2074 = vunpack.c.l.b16 %v1701
          %v2075 = vunpack.c.h.b16 %v1701
          %v2076 = vunpack.c.l.b16 %v1702
          %v2077 = vunpack.c.h.b16 %v1702
          %v2078 = vunpack.c.l.b16 %v1703
          %v2079 = vunpack.c.h.b16 %v1703
          %v2080 = vunpack.c.l.b16 %v1704
          %v2081 = vunpack.c.h.b16 %v1704
          %v2082 = vunpack.c.l.b16 %v1705
          %v2083 = vunpack.c.h.b16 %v1705
          %v2084 = vunpack.c.l.b16 %v1706
          %v2085 = vunpack.c.h.b16 %v1706
          %v2086 = vunpack.c.l.b16 %v1707
          %v2087 = vunpack.c.h.b16 %v1707
          %v2088 = vunpack.c.l.b16 %v1708
          %v2089 = vunpack.c.h.b16 %v1708
          %v2090 = vunpack.c.l.b16 %v1709
          %v2091 = vunpack.c.h.b16 %v1709
          %v2092 = vunpack.c.l.b16 %v1710
          %v2093 = vunpack.c.h.b16 %v1710
          %v2094 = vunpack.c.l.b16 %v1711
          %v2095 = vunpack.c.h.b16 %v1711
          %v2096 = vunpack.c.l.b16 %v1712
          %v2097 = vunpack.c.h.b16 %v1712
          %v2098 = vunpack.c.l.b16 %v1713
          %v2099 = vunpack.c.h.b16 %v1713
          %v2100 = vunpack.c.l.b16 %v1714
          %v2101 = vunpack.c.h.b16 %v1714
          %v2102 = vunpack.c.l.b16 %v1715
          %v2103 = vunpack.c.h.b16 %v1715
          %v2104 = vunpack.c.l.b16 %v1716
          %v2105 = vunpack.c.h.b16 %v1716
          %v2106 = vunpack.c.l.b16 %v1717
          %v2107 = vunpack.c.h.b16 %v1717
          %v2108 = vunpack.c.l.b16 %v1718
          %v2109 = vunpack.c.h.b16 %v1718
          %v2110 = vunpack.c.l.b16 %v1719
          %v2111 = vunpack.c.h.b16 %v1719
          %v2112 = vpack.c.b16 %v1872, %v1856
          %v2113 = vpack.c.b16 %v1873, %v1857
          %v2114 = vpack.c.b16 %v1874, %v1858
          %v2115 = vpack.c.b16 %v1875, %v1859
          %v2116 = vpack.c.b16 %v1876, %v1860
          %v2117 = vpack.c.b16 %v1877, %v1861
          %v2118 = vpack.c.b16 %v1878, %v1862
          %v2119 = vpack.c.b16 %v1879, %v1863
          %v2120 = vpack.c.b16 %v1880, %v1864
          %v2121 = vpack.c.b16 %v1881, %v1865
          %v2122 = vpack.c.b16 %v1882, %v1866
          %v2123 = vpack.c.b16 %v1883, %v1867
          %v2124 = vpack.c.b16 %v1884, %v1868
          %v2125 = vpack.c.b16 %v1885, %v1869
          %v2126 = vpack.c.b16 %v1886, %v1870
          %v2127 = vpack.c.b16 %v1887, %v1871
          %v2128 = vpack.c.b16 %v1904, %v1888
          %v2129 = vpack.c.b16 %v1905, %v1889
          %v2130 = vpack.c.b16 %v1906, %v1890
          %v2131 = vpack.c.b16 %v1907, %v1891
          %v2132 = vpack.c.b16 %v1908, %v1892
          %v2133 = vpack.c.b16 %v1909, %v1893
          %v2134 = vpack.c.b16 %v1910, %v1894
          %v2135 = vpack.c.b16 %v1911, %v1895
          %v2136 = vpack.c.b16 %v1912, %v1896
          %v2137 = vpack.c.b16 %v1913, %v1897
          %v2138 = vpack.c.b16 %v1914, %v1898
          %v2139 = vpack.c.b16 %v1915, %v1899
          %v2140 = vpack.c.b16 %v1916, %v1900
          %v2141 = vpack.c.b16 %v1917, %v1901
          %v2142 = vpack.c.b16 %v1918, %v1902
          %v2143 = vpack.c.b16 %v1919, %v1903
          %v2144 = vpack.c.b16 %v1936, %v1920
          %v2145 = vpack.c.b16 %v1937, %v1921
          %v2146 = vpack.c.b16 %v1938, %v1922
          %v2147 = vpack.c.b16 %v1939, %v1923
          %v2148 = vpack.c.b16 %v1940, %v1924
          %v2149 = vpack.c.b16 %v1941, %v1925
          %v2150 = vpack.c.b16 %v1942, %v1926
          %v2151 = vpack.c.b16 %v1943, %v1927
          %v2152 = vpack.c.b16 %v1944, %v1928
          %v2153 = vpack.c.b16 %v1945, %v1929
          %v2154 = vpack.c.b16 %v1946, %v1930
          %v2155 = vpack.c.b16 %v1947, %v1931
          %v2156 = vpack.c.b16 %v1948, %v1932
          %v2157 = vpack.c.b16 %v1949, %v1933
          %v2158 = vpack.c.b16 %v1950, %v1934
          %v2159 = vpack.c.b16 %v1951, %v1935
          %v2160 = vpack.c.b16 %v1968, %v1952
          %v2161 = vpack.c.b16 %v1969, %v1953
          %v2162 = vpack.c.b16 %v1970, %v1954
          %v2163 = vpack.c.b16 %v1971, %v1955
          %v2164 = vpack.c.b16 %v1972, %v1956
          %v2165 = vpack.c.b16 %v1973, %v1957
          %v2166 = vpack.c.b16 %v1974, %v1958
          %v2167 = vpack.c.b16 %v1975, %v1959
          %v2168 = vpack.c.b16 %v1976, %v1960
          %v2169 = vpack.c.b16 %v1977, %v1961
          %v2170 = vpack.c.b16 %v1978, %v1962
          %v2171 = vpack.c.b16 %v1979, %v1963
          %v2172 = vpack.c.b16 %v1980, %v1964
          %v2173 = vpack.c.b16 %v1981, %v1965
          %v2174 = vpack.c.b16 %v1982, %v1966
          %v2175 = vpack.c.b16 %v1983, %v1967
          %v2176 = vpack.c.b16 %v2000, %v1984
          %v2177 = vpack.c.b16 %v2001, %v1985
          %v2178 = vpack.c.b16 %v2002, %v1986
          %v2179 = vpack.c.b16 %v2003, %v1987
          %v2180 = vpack.c.b16 %v2004, %v1988
          %v2181 = vpack.c.b16 %v2005, %v1989
          %v2182 = vpack.c.b16 %v2006, %v1990
          %v2183 = vpack.c.b16 %v2007, %v1991
          %v2184 = vpack.c.b16 %v2008, %v1992
          %v2185 = vpack.c.b16 %v2009, %v1993
          %v2186 = vpack.c.b16 %v2010, %v1994
          %v2187 = vpack.c.b16 %v2011, %v1995
          %v2188 = vpack.c.b16 %v2012, %v1996
          %v2189 = vpack.c.b16 %v2013, %v1997
          %v2190 = vpack.c.b16 %v2014, %v1998
          %v2191 = vpack.c.b16 %v2015, %v1999
          %v2192 = vpack.c.b16 %v2032, %v2016
          %v2193 = vpack.c.b16 %v2033, %v2017
          %v2194 = vpack.c.b16 %v2034, %v2018
          %v2195 = vpack.c.b16 %v2035, %v2019
          %v2196 = vpack.c.b16 %v2036, %v2020
          %v2197 = vpack.c.b16 %v2037, %v2021
          %v2198 = vpack.c.b16 %v2038, %v2022
          %v2199 = vpack.c.b16 %v2039, %v2023
          %v2200 = vpack.c.b16 %v2040, %v2024
          %v2201 = vpack.c.b16 %v2041, %v2025
          %v2202 = vpack.c.b16 %v2042, %v2026
          %v2203 = vpack.c.b16 %v2043, %v2027
          %v2204 = vpack.c.b16 %v2044, %v2028
          %v2205 = vpack.c.b16 %v2045, %v2029
          %v2206 = vpack.c.b16 %v2046, %v2030
          %v2207 = vpack.c.b16 %v2047, %v2031
          %v2208 = vpack.c.b16 %v2064, %v2048
          %v2209 = vpack.c.b16 %v2065, %v2049
          %v2210 = vpack.c.b16 %v2066, %v2050
          %v2211 = vpack.c.b16 %v2067, %v2051
          %v2212 = vpack.c.b16 %v2068, %v2052
          %v2213 = vpack.c.b16 %v2069, %v2053
          %v2214 = vpack.c.b16 %v2070, %v2054
          %v2215 = vpack.c.b16 %v2071, %v2055
          %v2216 = vpack.c.b16 %v2072, %v2056
          %v2217 = vpack.c.b16 %v2073, %v2057
          %v2218 = vpack.c.b16 %v2074, %v2058
          %v2219 = vpack.c.b16 %v2075, %v2059
          %v2220 = vpack.c.b16 %v2076, %v2060
          %v2221 = vpack.c.b16 %v2077, %v2061
          %v2222 = vpack.c.b16 %v2078, %v2062
          %v2223 = vpack.c.b16 %v2079, %v2063
          %v2224 = vpack.c.b16 %v2096, %v2080
          %v2225 = vpack.c.b16 %v2097, %v2081
          %v2226 = vpack.c.b16 %v2098, %v2082
          %v2227 = vpack.c.b16 %v2099, %v2083
          %v2228 = vpack.c.b16 %v2100, %v2084
          %v2229 = vpack.c.b16 %v2101, %v2085
          %v2230 = vpack.c.b16 %v2102, %v2086
          %v2231 = vpack.c.b16 %v2103, %v2087
          %v2232 = vpack.c.b16 %v2104, %v2088
          %v2233 = vpack.c.b16 %v2105, %v2089
          %v2234 = vpack.c.b16 %v2106, %v2090
          %v2235 = vpack.c.b16 %v2107, %v2091
          %v2236 = vpack.c.b16 %v2108, %v2092
          %v2237 = vpack.c.b16 %v2109, %v2093
          %v2238 = vpack.c.b16 %v2110, %v2094
          %v2239 = vpack.c.b16 %v2111, %v2095
          %2368 = vmatprep.subr.bf16.mxu0 %v2113
          %2369 = vmatpush1.bf16.msra.mxu0 %v2112
          %2370 = vmatprep.subr.bf16.mxu0 %v2129
          %2371 = vmatpush1.bf16.msra.mxu0 %v2128
          %2372 = vmatprep.subr.bf16.mxu0 %v2145
          %2373 = vmatpush1.bf16.msra.mxu0 %v2144
          %2374 = vmatprep.subr.bf16.mxu0 %v2161
          %2375 = vmatpush1.bf16.msra.mxu0 %v2160
          %2376 = vmatprep.subr.bf16.mxu0 %v2177
          %2377 = vmatpush1.bf16.msra.mxu0 %v2176
          %2378 = vmatprep.subr.bf16.mxu0 %v2193
          %2379 = vmatpush1.bf16.msra.mxu0 %v2192
          %2380 = vmatprep.subr.bf16.mxu0 %v2209
          %2381 = vmatpush1.bf16.msra.mxu0 %v2208
          %2382 = vmatprep.subr.bf16.mxu0 %v2225
          %2383 = vmatpush1.bf16.msra.mxu0 %v2224
          %2384 = vmatprep.subr.bf16.mxu0 0
          %2385 = vmatpush1.bf16.msra.mxu0 0
          %2386 = vmatprep.subr.bf16.mxu0 0
          %2387 = vmatpush1.bf16.msra.mxu0 0
          %2388 = vmatprep.subr.bf16.mxu0 0
          %2389 = vmatpush1.bf16.msra.mxu0 0
          %2390 = vmatprep.subr.bf16.mxu0 0
          %2391 = vmatpush1.bf16.msra.mxu0 0
          %2392 = vmatprep.subr.bf16.mxu0 0
          %2393 = vmatpush1.bf16.msra.mxu0 0
          %2394 = vmatprep.subr.bf16.mxu0 0
          %2395 = vmatpush1.bf16.msra.mxu0 0
          %2396 = vmatprep.subr.bf16.mxu0 0
          %2397 = vmatpush1.bf16.msra.mxu0 0
          %2398 = vmatprep.subr.bf16.mxu0 0
          %2399 = vmatpush1.bf16.msra.mxu0 0
          %2400 = vmatprep.mubr.bf16.mxu0 0
          %2401 = vmatmul.mubr.bf16.gmra.mrb[0].mxu0 %v1726
          %v2402 = vpop.f32.mrb[0].mxu0
          %v2403 = vadd.f32 0.0, %v2402
          %v2404 = vpop.f32.mrb[0].mxu0
          %v2405 = vadd.f32 0.0, %v2404
          %v2406 = vpop.f32.mrb[0].mxu0
          %v2407 = vpop.f32.mrb[0].mxu0
          %2408 = vdwg.mxu0
          %2409 = vmatprep.subr.bf16.mxu0 %v2115
          %2410 = vmatpush1.bf16.msra.mxu0 %v2114
          %2411 = vmatprep.subr.bf16.mxu0 %v2131
          %2412 = vmatpush1.bf16.msra.mxu0 %v2130
          %2413 = vmatprep.subr.bf16.mxu0 %v2147
          %2414 = vmatpush1.bf16.msra.mxu0 %v2146
          %2415 = vmatprep.subr.bf16.mxu0 %v2163
          %2416 = vmatpush1.bf16.msra.mxu0 %v2162
          %2417 = vmatprep.subr.bf16.mxu0 %v2179
          %2418 = vmatpush1.bf16.msra.mxu0 %v2178
          %2419 = vmatprep.subr.bf16.mxu0 %v2195
          %2420 = vmatpush1.bf16.msra.mxu0 %v2194
          %2421 = vmatprep.subr.bf16.mxu0 %v2211
          %2422 = vmatpush1.bf16.msra.mxu0 %v2210
          %2423 = vmatprep.subr.bf16.mxu0 %v2227
          %2424 = vmatpush1.bf16.msra.mxu0 %v2226
          %2425 = vmatprep.subr.bf16.mxu0 0
          %2426 = vmatpush1.bf16.msra.mxu0 0
          %2427 = vmatprep.subr.bf16.mxu0 0
          %2428 = vmatpush1.bf16.msra.mxu0 0
          %2429 = vmatprep.subr.bf16.mxu0 0
          %2430 = vmatpush1.bf16.msra.mxu0 0
          %2431 = vmatprep.subr.bf16.mxu0 0
          %2432 = vmatpush1.bf16.msra.mxu0 0
          %2433 = vmatprep.subr.bf16.mxu0 0
          %2434 = vmatpush1.bf16.msra.mxu0 0
          %2435 = vmatprep.subr.bf16.mxu0 0
          %2436 = vmatpush1.bf16.msra.mxu0 0
          %2437 = vmatprep.subr.bf16.mxu0 0
          %2438 = vmatpush1.bf16.msra.mxu0 0
          %2439 = vmatprep.subr.bf16.mxu0 0
          %2440 = vmatpush1.bf16.msra.mxu0 0
          %2441 = vmatprep.mubr.bf16.mxu0 0
          %2442 = vmatmul.mubr.bf16.gmra.mrb[0].mxu0 %v1726
          %v2443 = vpop.f32.mrb[0].mxu0
          %v2444 = vadd.f32 0.0, %v2443
          %v2445 = vpop.f32.mrb[0].mxu0
          %v2446 = vadd.f32 0.0, %v2445
          %v2447 = vpop.f32.mrb[0].mxu0
          %v2448 = vpop.f32.mrb[0].mxu0
          %2449 = vdwg.mxu0
          %2450 = vmatprep.subr.bf16.mxu0 %v2117
          %2451 = vmatpush1.bf16.msra.mxu0 %v2116
          %2452 = vmatprep.subr.bf16.mxu0 %v2133
          %2453 = vmatpush1.bf16.msra.mxu0 %v2132
          %2454 = vmatprep.subr.bf16.mxu0 %v2149
          %2455 = vmatpush1.bf16.msra.mxu0 %v2148
          %2456 = vmatprep.subr.bf16.mxu0 %v2165
          %2457 = vmatpush1.bf16.msra.mxu0 %v2164
          %2458 = vmatprep.subr.bf16.mxu0 %v2181
          %2459 = vmatpush1.bf16.msra.mxu0 %v2180
          %2460 = vmatprep.subr.bf16.mxu0 %v2197
          %2461 = vmatpush1.bf16.msra.mxu0 %v2196
          %2462 = vmatprep.subr.bf16.mxu0 %v2213
          %2463 = vmatpush1.bf16.msra.mxu0 %v2212
          %2464 = vmatprep.subr.bf16.mxu0 %v2229
          %2465 = vmatpush1.bf16.msra.mxu0 %v2228
          %2466 = vmatprep.subr.bf16.mxu0 0
          %2467 = vmatpush1.bf16.msra.mxu0 0
          %2468 = vmatprep.subr.bf16.mxu0 0
          %2469 = vmatpush1.bf16.msra.mxu0 0
          %2470 = vmatprep.subr.bf16.mxu0 0
          %2471 = vmatpush1.bf16.msra.mxu0 0
          %2472 = vmatprep.subr.bf16.mxu0 0
          %2473 = vmatpush1.bf16.msra.mxu0 0
          %2474 = vmatprep.subr.bf16.mxu0 0
          %2475 = vmatpush1.bf16.msra.mxu0 0
          %2476 = vmatprep.subr.bf16.mxu0 0
          %2477 = vmatpush1.bf16.msra.mxu0 0
          %2478 = vmatprep.subr.bf16.mxu0 0
          %2479 = vmatpush1.bf16.msra.mxu0 0
          %2480 = vmatprep.subr.bf16.mxu0 0
          %2481 = vmatpush1.bf16.msra.mxu0 0
          %2482 = vmatprep.mubr.bf16.mxu0 0
          %2483 = vmatmul.mubr.bf16.gmra.mrb[0].mxu0 %v1726
          %v2484 = vpop.f32.mrb[0].mxu0
          %v2485 = vadd.f32 0.0, %v2484
          %v2486 = vpop.f32.mrb[0].mxu0
          %v2487 = vadd.f32 0.0, %v2486
          %v2488 = vpop.f32.mrb[0].mxu0
          %v2489 = vpop.f32.mrb[0].mxu0
          %2490 = vdwg.mxu0
          %2491 = vmatprep.subr.bf16.mxu0 %v2119
          %2492 = vmatpush1.bf16.msra.mxu0 %v2118
          %2493 = vmatprep.subr.bf16.mxu0 %v2135
          %2494 = vmatpush1.bf16.msra.mxu0 %v2134
          %2495 = vmatprep.subr.bf16.mxu0 %v2151
          %2496 = vmatpush1.bf16.msra.mxu0 %v2150
          %2497 = vmatprep.subr.bf16.mxu0 %v2167
          %2498 = vmatpush1.bf16.msra.mxu0 %v2166
          %2499 = vmatprep.subr.bf16.mxu0 %v2183
          %2500 = vmatpush1.bf16.msra.mxu0 %v2182
          %2501 = vmatprep.subr.bf16.mxu0 %v2199
          %2502 = vmatpush1.bf16.msra.mxu0 %v2198
          %2503 = vmatprep.subr.bf16.mxu0 %v2215
          %2504 = vmatpush1.bf16.msra.mxu0 %v2214
          %2505 = vmatprep.subr.bf16.mxu0 %v2231
          %2506 = vmatpush1.bf16.msra.mxu0 %v2230
          %2507 = vmatprep.subr.bf16.mxu0 0
          %2508 = vmatpush1.bf16.msra.mxu0 0
          %2509 = vmatprep.subr.bf16.mxu0 0
          %2510 = vmatpush1.bf16.msra.mxu0 0
          %2511 = vmatprep.subr.bf16.mxu0 0
          %2512 = vmatpush1.bf16.msra.mxu0 0
          %2513 = vmatprep.subr.bf16.mxu0 0
          %2514 = vmatpush1.bf16.msra.mxu0 0
          %2515 = vmatprep.subr.bf16.mxu0 0
          %2516 = vmatpush1.bf16.msra.mxu0 0
          %2517 = vmatprep.subr.bf16.mxu0 0
          %2518 = vmatpush1.bf16.msra.mxu0 0
          %2519 = vmatprep.subr.bf16.mxu0 0
          %2520 = vmatpush1.bf16.msra.mxu0 0
          %2521 = vmatprep.subr.bf16.mxu0 0
          %2522 = vmatpush1.bf16.msra.mxu0 0
          %2523 = vmatprep.mubr.bf16.mxu0 0
          %2524 = vmatmul.mubr.bf16.gmra.mrb[0].mxu0 %v1726
          %v2525 = vpop.f32.mrb[0].mxu0
          %v2526 = vadd.f32 0.0, %v2525
          %v2527 = vpop.f32.mrb[0].mxu0
          %v2528 = vadd.f32 0.0, %v2527
          %v2529 = vpop.f32.mrb[0].mxu0
          %v2530 = vpop.f32.mrb[0].mxu0
          %2531 = vdwg.mxu0
          %2532 = vmatprep.subr.bf16.mxu0 %v2121
          %2533 = vmatpush1.bf16.msra.mxu0 %v2120
          %2534 = vmatprep.subr.bf16.mxu0 %v2137
          %2535 = vmatpush1.bf16.msra.mxu0 %v2136
          %2536 = vmatprep.subr.bf16.mxu0 %v2153
          %2537 = vmatpush1.bf16.msra.mxu0 %v2152
          %2538 = vmatprep.subr.bf16.mxu0 %v2169
          %2539 = vmatpush1.bf16.msra.mxu0 %v2168
          %2540 = vmatprep.subr.bf16.mxu0 %v2185
          %2541 = vmatpush1.bf16.msra.mxu0 %v2184
          %2542 = vmatprep.subr.bf16.mxu0 %v2201
          %2543 = vmatpush1.bf16.msra.mxu0 %v2200
          %2544 = vmatprep.subr.bf16.mxu0 %v2217
          %2545 = vmatpush1.bf16.msra.mxu0 %v2216
          %2546 = vmatprep.subr.bf16.mxu0 %v2233
          %2547 = vmatpush1.bf16.msra.mxu0 %v2232
          %2548 = vmatprep.subr.bf16.mxu0 0
          %2549 = vmatpush1.bf16.msra.mxu0 0
          %2550 = vmatprep.subr.bf16.mxu0 0
          %2551 = vmatpush1.bf16.msra.mxu0 0
          %2552 = vmatprep.subr.bf16.mxu0 0
          %2553 = vmatpush1.bf16.msra.mxu0 0
          %2554 = vmatprep.subr.bf16.mxu0 0
          %2555 = vmatpush1.bf16.msra.mxu0 0
          %2556 = vmatprep.subr.bf16.mxu0 0
          %2557 = vmatpush1.bf16.msra.mxu0 0
          %2558 = vmatprep.subr.bf16.mxu0 0
          %2559 = vmatpush1.bf16.msra.mxu0 0
          %2560 = vmatprep.subr.bf16.mxu0 0
          %2561 = vmatpush1.bf16.msra.mxu0 0
          %2562 = vmatprep.subr.bf16.mxu0 0
          %2563 = vmatpush1.bf16.msra.mxu0 0
          %2564 = vmatprep.mubr.bf16.mxu0 0
          %2565 = vmatmul.mubr.bf16.gmra.mrb[0].mxu0 %v1726
          %v2566 = vpop.f32.mrb[0].mxu0
          %v2567 = vadd.f32 0.0, %v2566
          %v2568 = vpop.f32.mrb[0].mxu0
          %v2569 = vadd.f32 0.0, %v2568
          %v2570 = vpop.f32.mrb[0].mxu0
          %v2571 = vpop.f32.mrb[0].mxu0
          %2572 = vdwg.mxu0
          %2573 = vmatprep.subr.bf16.mxu0 %v2123
          %2574 = vmatpush1.bf16.msra.mxu0 %v2122
          %2575 = vmatprep.subr.bf16.mxu0 %v2139
          %2576 = vmatpush1.bf16.msra.mxu0 %v2138
          %2577 = vmatprep.subr.bf16.mxu0 %v2155
          %2578 = vmatpush1.bf16.msra.mxu0 %v2154
          %2579 = vmatprep.subr.bf16.mxu0 %v2171
          %2580 = vmatpush1.bf16.msra.mxu0 %v2170
          %2581 = vmatprep.subr.bf16.mxu0 %v2187
          %2582 = vmatpush1.bf16.msra.mxu0 %v2186
          %2583 = vmatprep.subr.bf16.mxu0 %v2203
          %2584 = vmatpush1.bf16.msra.mxu0 %v2202
          %2585 = vmatprep.subr.bf16.mxu0 %v2219
          %2586 = vmatpush1.bf16.msra.mxu0 %v2218
          %2587 = vmatprep.subr.bf16.mxu0 %v2235
          %2588 = vmatpush1.bf16.msra.mxu0 %v2234
          %2589 = vmatprep.subr.bf16.mxu0 0
          %2590 = vmatpush1.bf16.msra.mxu0 0
          %2591 = vmatprep.subr.bf16.mxu0 0
          %2592 = vmatpush1.bf16.msra.mxu0 0
          %2593 = vmatprep.subr.bf16.mxu0 0
          %2594 = vmatpush1.bf16.msra.mxu0 0
          %2595 = vmatprep.subr.bf16.mxu0 0
          %2596 = vmatpush1.bf16.msra.mxu0 0
          %2597 = vmatprep.subr.bf16.mxu0 0
          %2598 = vmatpush1.bf16.msra.mxu0 0
          %2599 = vmatprep.subr.bf16.mxu0 0
          %2600 = vmatpush1.bf16.msra.mxu0 0
          %2601 = vmatprep.subr.bf16.mxu0 0
          %2602 = vmatpush1.bf16.msra.mxu0 0
          %2603 = vmatprep.subr.bf16.mxu0 0
          %2604 = vmatpush1.bf16.msra.mxu0 0
          %2605 = vmatprep.mubr.bf16.mxu0 0
          %2606 = vmatmul.mubr.bf16.gmra.mrb[0].mxu0 %v1726
          %v2607 = vpop.f32.mrb[0].mxu0
          %v2608 = vadd.f32 0.0, %v2607
          %v2609 = vpop.f32.mrb[0].mxu0
          %v2610 = vadd.f32 0.0, %v2609
          %v2611 = vpop.f32.mrb[0].mxu0
          %v2612 = vpop.f32.mrb[0].mxu0
          %2613 = vdwg.mxu0
          %2614 = vmatprep.subr.bf16.mxu0 %v2125
          %2615 = vmatpush1.bf16.msra.mxu0 %v2124
          %2616 = vmatprep.subr.bf16.mxu0 %v2141
          %2617 = vmatpush1.bf16.msra.mxu0 %v2140
          %2618 = vmatprep.subr.bf16.mxu0 %v2157
          %2619 = vmatpush1.bf16.msra.mxu0 %v2156
          %2620 = vmatprep.subr.bf16.mxu0 %v2173
          %2621 = vmatpush1.bf16.msra.mxu0 %v2172
          %2622 = vmatprep.subr.bf16.mxu0 %v2189
          %2623 = vmatpush1.bf16.msra.mxu0 %v2188
          %2624 = vmatprep.subr.bf16.mxu0 %v2205
          %2625 = vmatpush1.bf16.msra.mxu0 %v2204
          %2626 = vmatprep.subr.bf16.mxu0 %v2221
          %2627 = vmatpush1.bf16.msra.mxu0 %v2220
          %2628 = vmatprep.subr.bf16.mxu0 %v2237
          %2629 = vmatpush1.bf16.msra.mxu0 %v2236
          %2630 = vmatprep.subr.bf16.mxu0 0
          %2631 = vmatpush1.bf16.msra.mxu0 0
          %2632 = vmatprep.subr.bf16.mxu0 0
          %2633 = vmatpush1.bf16.msra.mxu0 0
          %2634 = vmatprep.subr.bf16.mxu0 0
          %2635 = vmatpush1.bf16.msra.mxu0 0
          %2636 = vmatprep.subr.bf16.mxu0 0
          %2637 = vmatpush1.bf16.msra.mxu0 0
          %2638 = vmatprep.subr.bf16.mxu0 0
          %2639 = vmatpush1.bf16.msra.mxu0 0
          %2640 = vmatprep.subr.bf16.mxu0 0
          %2641 = vmatpush1.bf16.msra.mxu0 0
          %2642 = vmatprep.subr.bf16.mxu0 0
          %2643 = vmatpush1.bf16.msra.mxu0 0
          %2644 = vmatprep.subr.bf16.mxu0 0
          %2645 = vmatpush1.bf16.msra.mxu0 0
          %2646 = vmatprep.mubr.bf16.mxu0 0
          %2647 = vmatmul.mubr.bf16.gmra.mrb[0].mxu0 %v1726
          %v2648 = vpop.f32.mrb[0].mxu0
          %v2649 = vadd.f32 0.0, %v2648
          %v2650 = vpop.f32.mrb[0].mxu0
          %v2651 = vadd.f32 0.0, %v2650
          %v2652 = vpop.f32.mrb[0].mxu0
          %v2653 = vpop.f32.mrb[0].mxu0
          %2654 = vdwg.mxu0
          %2655 = vmatprep.subr.bf16.mxu0 %v2127
          %2656 = vmatpush1.bf16.msra.mxu0 %v2126
          %2657 = vmatprep.subr.bf16.mxu0 %v2143
          %2658 = vmatpush1.bf16.msra.mxu0 %v2142
          %2659 = vmatprep.subr.bf16.mxu0 %v2159
          %2660 = vmatpush1.bf16.msra.mxu0 %v2158
          %2661 = vmatprep.subr.bf16.mxu0 %v2175
          %2662 = vmatpush1.bf16.msra.mxu0 %v2174
          %2663 = vmatprep.subr.bf16.mxu0 %v2191
          %2664 = vmatpush1.bf16.msra.mxu0 %v2190
          %2665 = vmatprep.subr.bf16.mxu0 %v2207
          %2666 = vmatpush1.bf16.msra.mxu0 %v2206
          %2667 = vmatprep.subr.bf16.mxu0 %v2223
          %2668 = vmatpush1.bf16.msra.mxu0 %v2222
          %2669 = vmatprep.subr.bf16.mxu0 %v2239
          %2670 = vmatpush1.bf16.msra.mxu0 %v2238
          %2671 = vmatprep.subr.bf16.mxu0 0
          %2672 = vmatpush1.bf16.msra.mxu0 0
          %2673 = vmatprep.subr.bf16.mxu0 0
          %2674 = vmatpush1.bf16.msra.mxu0 0
          %2675 = vmatprep.subr.bf16.mxu0 0
          %2676 = vmatpush1.bf16.msra.mxu0 0
          %2677 = vmatprep.subr.bf16.mxu0 0
          %2678 = vmatpush1.bf16.msra.mxu0 0
          %2679 = vmatprep.subr.bf16.mxu0 0
          %2680 = vmatpush1.bf16.msra.mxu0 0
          %2681 = vmatprep.subr.bf16.mxu0 0
          %2682 = vmatpush1.bf16.msra.mxu0 0
          %2683 = vmatprep.subr.bf16.mxu0 0
          %2684 = vmatpush1.bf16.msra.mxu0 0
          %2685 = vmatprep.subr.bf16.mxu0 0
          %2686 = vmatpush1.bf16.msra.mxu0 0
          %2687 = vmatprep.mubr.bf16.mxu0 0
          %2688 = vmatmul.mubr.bf16.gmra.mrb[0].mxu0 %v1726
          %v2689 = vpop.f32.mrb[0].mxu0
          %v2690 = vadd.f32 0.0, %v2689
          %v2691 = vpop.f32.mrb[0].mxu0
          %v2692 = vadd.f32 0.0, %v2691
          %v2693 = vpop.f32.mrb[0].mxu0
          %v2694 = vpop.f32.mrb[0].mxu0
          %2695 = vdwg.mxu0
          %v2696 = vld [vmem:[#allocation9] sm:$0xff]
          %v2697 = vld [vmem:[#allocation9 + $0x8] sm:$0xff]
          %v2698 = vld [vmem:[#allocation9 + $0x10] sm:$0xff]
          %v2699 = vld [vmem:[#allocation9 + $0x18] sm:$0xff]
          %v2700 = vld [vmem:[#allocation9 + $0x20] sm:$0xff]
          %v2701 = vld [vmem:[#allocation9 + $0x28] sm:$0xff]
          %v2702 = vld [vmem:[#allocation9 + $0x30] sm:$0xff]
          %v2703 = vld [vmem:[#allocation9 + $0x38] sm:$0xff]
          %v2704 = vld [vmem:[#allocation9 + $0x40] sm:$0xff]
          %v2705 = vld [vmem:[#allocation9 + $0x48] sm:$0xff]
          %v2706 = vld [vmem:[#allocation9 + $0x50] sm:$0xff]
          %v2707 = vld [vmem:[#allocation9 + $0x58] sm:$0xff]
          %v2708 = vld [vmem:[#allocation9 + $0x60] sm:$0xff]
          %v2709 = vld [vmem:[#allocation9 + $0x68] sm:$0xff]
          %v2710 = vld [vmem:[#allocation9 + $0x70] sm:$0xff]
          %v2711 = vld [vmem:[#allocation9 + $0x78] sm:$0xff]
          %v2712 = vld [vmem:[#allocation9 + $0x80] sm:$0xff]
          %v2713 = vld [vmem:[#allocation9 + $0x88] sm:$0xff]
          %v2714 = vld [vmem:[#allocation9 + $0x90] sm:$0xff]
          %v2715 = vld [vmem:[#allocation9 + $0x98] sm:$0xff]
          %v2716 = vld [vmem:[#allocation9 + $0xa0] sm:$0xff]
          %v2717 = vld [vmem:[#allocation9 + $0xa8] sm:$0xff]
          %v2718 = vld [vmem:[#allocation9 + $0xb0] sm:$0xff]
          %v2719 = vld [vmem:[#allocation9 + $0xb8] sm:$0xff]
          %v2720 = vld [vmem:[#allocation9 + $0xc0] sm:$0xff]
          %v2721 = vld [vmem:[#allocation9 + $0xc8] sm:$0xff]
          %v2722 = vld [vmem:[#allocation9 + $0xd0] sm:$0xff]
          %v2723 = vld [vmem:[#allocation9 + $0xd8] sm:$0xff]
          %v2724 = vld [vmem:[#allocation9 + $0xe0] sm:$0xff]
          %v2725 = vld [vmem:[#allocation9 + $0xe8] sm:$0xff]
          %v2726 = vld [vmem:[#allocation9 + $0xf0] sm:$0xff]
          %v2727 = vld [vmem:[#allocation9 + $0xf8] sm:$0xff]
          %v2730 = vunpack.c.l.b16 %v1589
          %v2731 = vunpack.c.l.b16 %v1591
          %v2732 = vsel %vm1724, %v2731, %v2730
          %v2733 = vpack.c.b16 %v2732, %v2732
          %v2767 = vunpack.c.l.b16 %v2696
          %v2768 = vunpack.c.h.b16 %v2696
          %v2769 = vunpack.c.l.b16 %v2697
          %v2770 = vunpack.c.h.b16 %v2697
          %v2771 = vunpack.c.l.b16 %v2698
          %v2772 = vunpack.c.h.b16 %v2698
          %v2773 = vunpack.c.l.b16 %v2699
          %v2774 = vunpack.c.h.b16 %v2699
          %v2775 = vunpack.c.l.b16 %v2700
          %v2776 = vunpack.c.h.b16 %v2700
          %v2777 = vunpack.c.l.b16 %v2701
          %v2778 = vunpack.c.h.b16 %v2701
          %v2779 = vunpack.c.l.b16 %v2702
          %v2780 = vunpack.c.h.b16 %v2702
          %v2781 = vunpack.c.l.b16 %v2703
          %v2782 = vunpack.c.h.b16 %v2703
          %v2783 = vunpack.c.l.b16 %v2704
          %v2784 = vunpack.c.h.b16 %v2704
          %v2785 = vunpack.c.l.b16 %v2705
          %v2786 = vunpack.c.h.b16 %v2705
          %v2787 = vunpack.c.l.b16 %v2706
          %v2788 = vunpack.c.h.b16 %v2706
          %v2789 = vunpack.c.l.b16 %v2707
          %v2790 = vunpack.c.h.b16 %v2707
          %v2791 = vunpack.c.l.b16 %v2708
          %v2792 = vunpack.c.h.b16 %v2708
          %v2793 = vunpack.c.l.b16 %v2709
          %v2794 = vunpack.c.h.b16 %v2709
          %v2795 = vunpack.c.l.b16 %v2710
          %v2796 = vunpack.c.h.b16 %v2710
          %v2797 = vunpack.c.l.b16 %v2711
          %v2798 = vunpack.c.h.b16 %v2711
          %v2799 = vunpack.c.l.b16 %v2712
          %v2800 = vunpack.c.h.b16 %v2712
          %v2801 = vunpack.c.l.b16 %v2713
          %v2802 = vunpack.c.h.b16 %v2713
          %v2803 = vunpack.c.l.b16 %v2714
          %v2804 = vunpack.c.h.b16 %v2714
          %v2805 = vunpack.c.l.b16 %v2715
          %v2806 = vunpack.c.h.b16 %v2715
          %v2807 = vunpack.c.l.b16 %v2716
          %v2808 = vunpack.c.h.b16 %v2716
          %v2809 = vunpack.c.l.b16 %v2717
          %v2810 = vunpack.c.h.b16 %v2717
          %v2811 = vunpack.c.l.b16 %v2718
          %v2812 = vunpack.c.h.b16 %v2718
          %v2813 = vunpack.c.l.b16 %v2719
          %v2814 = vunpack.c.h.b16 %v2719
          %v2815 = vunpack.c.l.b16 %v2720
          %v2816 = vunpack.c.h.b16 %v2720
          %v2817 = vunpack.c.l.b16 %v2721
          %v2818 = vunpack.c.h.b16 %v2721
          %v2819 = vunpack.c.l.b16 %v2722
          %v2820 = vunpack.c.h.b16 %v2722
          %v2821 = vunpack.c.l.b16 %v2723
          %v2822 = vunpack.c.h.b16 %v2723
          %v2823 = vunpack.c.l.b16 %v2724
          %v2824 = vunpack.c.h.b16 %v2724
          %v2825 = vunpack.c.l.b16 %v2725
          %v2826 = vunpack.c.h.b16 %v2725
          %v2827 = vunpack.c.l.b16 %v2726
          %v2828 = vunpack.c.h.b16 %v2726
          %v2829 = vunpack.c.l.b16 %v2727
          %v2830 = vunpack.c.h.b16 %v2727
          %v2831 = vpack.c.b16 %v2771, %v2767
          %v2832 = vpack.c.b16 %v2772, %v2768
          %v2833 = vpack.c.b16 %v2773, %v2769
          %v2834 = vpack.c.b16 %v2774, %v2770
          %v2835 = vpack.c.b16 %v2779, %v2775
          %v2836 = vpack.c.b16 %v2780, %v2776
          %v2837 = vpack.c.b16 %v2781, %v2777
          %v2838 = vpack.c.b16 %v2782, %v2778
          %v2839 = vpack.c.b16 %v2787, %v2783
          %v2840 = vpack.c.b16 %v2788, %v2784
          %v2841 = vpack.c.b16 %v2789, %v2785
          %v2842 = vpack.c.b16 %v2790, %v2786
          %v2843 = vpack.c.b16 %v2795, %v2791
          %v2844 = vpack.c.b16 %v2796, %v2792
          %v2845 = vpack.c.b16 %v2797, %v2793
          %v2846 = vpack.c.b16 %v2798, %v2794
          %v2847 = vpack.c.b16 %v2803, %v2799
          %v2848 = vpack.c.b16 %v2804, %v2800
          %v2849 = vpack.c.b16 %v2805, %v2801
          %v2850 = vpack.c.b16 %v2806, %v2802
          %v2851 = vpack.c.b16 %v2811, %v2807
          %v2852 = vpack.c.b16 %v2812, %v2808
          %v2853 = vpack.c.b16 %v2813, %v2809
          %v2854 = vpack.c.b16 %v2814, %v2810
          %v2855 = vpack.c.b16 %v2819, %v2815
          %v2856 = vpack.c.b16 %v2820, %v2816
          %v2857 = vpack.c.b16 %v2821, %v2817
          %v2858 = vpack.c.b16 %v2822, %v2818
          %v2859 = vpack.c.b16 %v2827, %v2823
          %v2860 = vpack.c.b16 %v2828, %v2824
          %v2861 = vpack.c.b16 %v2829, %v2825
          %v2862 = vpack.c.b16 %v2830, %v2826
          %2895 = vmatprep.subr.bf16.mxu0 %v2832
          %2896 = vmatpush1.bf16.msra.mxu0 %v2831
          %2897 = vmatprep.subr.bf16.mxu0 %v2836
          %2898 = vmatpush1.bf16.msra.mxu0 %v2835
          %2899 = vmatprep.subr.bf16.mxu0 %v2840
          %2900 = vmatpush1.bf16.msra.mxu0 %v2839
          %2901 = vmatprep.subr.bf16.mxu0 %v2844
          %2902 = vmatpush1.bf16.msra.mxu0 %v2843
          %2903 = vmatprep.subr.bf16.mxu0 %v2848
          %2904 = vmatpush1.bf16.msra.mxu0 %v2847
          %2905 = vmatprep.subr.bf16.mxu0 %v2852
          %2906 = vmatpush1.bf16.msra.mxu0 %v2851
          %2907 = vmatprep.subr.bf16.mxu0 %v2856
          %2908 = vmatpush1.bf16.msra.mxu0 %v2855
          %2909 = vmatprep.subr.bf16.mxu0 %v2860
          %2910 = vmatpush1.bf16.msra.mxu0 %v2859
          %2911 = vmatprep.subr.bf16.mxu0 0
          %2912 = vmatpush1.bf16.msra.mxu0 0
          %2913 = vmatprep.subr.bf16.mxu0 0
          %2914 = vmatpush1.bf16.msra.mxu0 0
          %2915 = vmatprep.subr.bf16.mxu0 0
          %2916 = vmatpush1.bf16.msra.mxu0 0
          %2917 = vmatprep.subr.bf16.mxu0 0
          %2918 = vmatpush1.bf16.msra.mxu0 0
          %2919 = vmatprep.subr.bf16.mxu0 0
          %2920 = vmatpush1.bf16.msra.mxu0 0
          %2921 = vmatprep.subr.bf16.mxu0 0
          %2922 = vmatpush1.bf16.msra.mxu0 0
          %2923 = vmatprep.subr.bf16.mxu0 0
          %2924 = vmatpush1.bf16.msra.mxu0 0
          %2925 = vmatprep.subr.bf16.mxu0 0
          %2926 = vmatpush1.bf16.msra.mxu0 0
          %2927 = vmatprep.mubr.bf16.mxu0 0
          %2928 = vmatmul.mubr.bf16.gmra.mrb[0].mxu0 %v2733
          %v2929 = vpop.f32.mrb[0].mxu0
          %v2930 = vadd.f32 0.0, %v2929
          %v2931 = vpop.f32.mrb[0].mxu0
          %v2932 = vadd.f32 0.0, %v2931
          %v2933 = vpop.f32.mrb[0].mxu0
          %v2934 = vpop.f32.mrb[0].mxu0
          %2935 = vdwg.mxu0
          %2936 = vmatprep.subr.bf16.mxu0 %v2834
          %2937 = vmatpush1.bf16.msra.mxu0 %v2833
          %2938 = vmatprep.subr.bf16.mxu0 %v2838
          %2939 = vmatpush1.bf16.msra.mxu0 %v2837
          %2940 = vmatprep.subr.bf16.mxu0 %v2842
          %2941 = vmatpush1.bf16.msra.mxu0 %v2841
          %2942 = vmatprep.subr.bf16.mxu0 %v2846
          %2943 = vmatpush1.bf16.msra.mxu0 %v2845
          %2944 = vmatprep.subr.bf16.mxu0 %v2850
          %2945 = vmatpush1.bf16.msra.mxu0 %v2849
          %2946 = vmatprep.subr.bf16.mxu0 %v2854
          %2947 = vmatpush1.bf16.msra.mxu0 %v2853
          %2948 = vmatprep.subr.bf16.mxu0 %v2858
          %2949 = vmatpush1.bf16.msra.mxu0 %v2857
          %2950 = vmatprep.subr.bf16.mxu0 %v2862
          %2951 = vmatpush1.bf16.msra.mxu0 %v2861
          %2952 = vmatprep.subr.bf16.mxu0 0
          %2953 = vmatpush1.bf16.msra.mxu0 0
          %2954 = vmatprep.subr.bf16.mxu0 0
          %2955 = vmatpush1.bf16.msra.mxu0 0
          %2956 = vmatprep.subr.bf16.mxu0 0
          %2957 = vmatpush1.bf16.msra.mxu0 0
          %2958 = vmatprep.subr.bf16.mxu0 0
          %2959 = vmatpush1.bf16.msra.mxu0 0
          %2960 = vmatprep.subr.bf16.mxu0 0
          %2961 = vmatpush1.bf16.msra.mxu0 0
          %2962 = vmatprep.subr.bf16.mxu0 0
          %2963 = vmatpush1.bf16.msra.mxu0 0
          %2964 = vmatprep.subr.bf16.mxu0 0
          %2965 = vmatpush1.bf16.msra.mxu0 0
          %2966 = vmatprep.subr.bf16.mxu0 0
          %2967 = vmatpush1.bf16.msra.mxu0 0
          %2968 = vmatprep.mubr.bf16.mxu0 0
          %2969 = vmatmul.mubr.bf16.gmra.mrb[0].mxu0 %v2733
          %v2970 = vpop.f32.mrb[0].mxu0
          %v2971 = vadd.f32 0.0, %v2970
          %v2972 = vpop.f32.mrb[0].mxu0
          %v2973 = vadd.f32 0.0, %v2972
          %v2974 = vpop.f32.mrb[0].mxu0
          %v2975 = vpop.f32.mrb[0].mxu0
          %2976 = vdwg.mxu0
          %v2977 = vpack.c.bf16 %v2403, %v2403
          %v2978 = vpack.c.bf16 %v2405, %v2405
          %v2979 = vpack.c.bf16 %v2444, %v2444
          %v2980 = vpack.c.bf16 %v2446, %v2446
          %v2981 = vpack.c.bf16 %v2485, %v2485
          %v2982 = vpack.c.bf16 %v2487, %v2487
          %v2983 = vpack.c.bf16 %v2526, %v2526
          %v2984 = vpack.c.bf16 %v2528, %v2528
          %v2985 = vpack.c.bf16 %v2567, %v2567
          %v2986 = vpack.c.bf16 %v2569, %v2569
          %v2987 = vpack.c.bf16 %v2608, %v2608
          %v2988 = vpack.c.bf16 %v2610, %v2610
          %v2989 = vpack.c.bf16 %v2649, %v2649
          %v2990 = vpack.c.bf16 %v2651, %v2651
          %v2991 = vpack.c.bf16 %v2690, %v2690
          %v2992 = vpack.c.bf16 %v2692, %v2692
          %v3009 = vcombine.low %v2977, %v2978
          %v3010 = vcombine.low %v2979, %v2980
          %v3011 = vcombine.low %v2981, %v2982
          %v3012 = vcombine.low %v2983, %v2984
          %v3014 = vunpack.c.l.s4 1966171168
          %v3015 = vunpack.c.0.s8 %v3014
          %v3016 = vlaneseq
          %v3017 = vshrl.u32 %v3016, 7
          %v3018 = vsub.s32 %v3015, %v3017
          %v3019 = vrot.slane %v3009, %v3018
          %v3021 = vunpack.c.l.s4 1966171168
          %v3022 = vunpack.c.0.s8 %v3021
          %v3023 = vlaneseq
          %v3024 = vshrl.u32 %v3023, 7
          %v3025 = vsub.s32 %v3022, %v3024
          %v3026 = vrot.slane %v3010, %v3025
          %v3028 = vunpack.c.l.s4 1966171168
          %v3029 = vunpack.c.0.s8 %v3028
          %v3030 = vlaneseq
          %v3031 = vshrl.u32 %v3030, 7
          %v3032 = vsub.s32 %v3029, %v3031
          %v3033 = vrot.slane %v3011, %v3032
          %v3035 = vunpack.c.l.s4 1966171168
          %v3036 = vunpack.c.0.s8 %v3035
          %v3037 = vlaneseq
          %v3038 = vshrl.u32 %v3037, 7
          %v3039 = vsub.s32 %v3036, %v3038
          %v3040 = vrot.slane %v3012, %v3039
          %v3041 = vcombine.low %v3019, %v3026
          %v3042 = vcombine.low %v3033, %v3040
          %v3044 = vunpack.c.l.s4 1966171168
          %v3045 = vunpack.c.0.s8 %v3044
          %v3046 = vlaneseq
          %v3047 = vshrl.u32 %v3046, 7
          %v3048 = vsub.s32 %v3045, %v3047
          %v3049 = vrot.slane %v3041, %v3048
          %v3051 = vunpack.c.l.s4 1966171168
          %v3052 = vunpack.c.0.s8 %v3051
          %v3053 = vlaneseq
          %v3054 = vshrl.u32 %v3053, 7
          %v3055 = vsub.s32 %v3052, %v3054
          %v3056 = vrot.slane %v3042, %v3055
          %v3057 = vcombine.low %v3049, %v3056
          %v3058 = vcombine.low %v2985, %v2986
          %v3059 = vcombine.low %v2987, %v2988
          %v3060 = vcombine.low %v2989, %v2990
          %v3061 = vcombine.low %v2991, %v2992
          %v3063 = vunpack.c.l.s4 1966171168
          %v3064 = vunpack.c.0.s8 %v3063
          %v3065 = vlaneseq
          %v3066 = vshrl.u32 %v3065, 7
          %v3067 = vsub.s32 %v3064, %v3066
          %v3068 = vrot.slane %v3058, %v3067
          %v3070 = vunpack.c.l.s4 1966171168
          %v3071 = vunpack.c.0.s8 %v3070
          %v3072 = vlaneseq
          %v3073 = vshrl.u32 %v3072, 7
          %v3074 = vsub.s32 %v3071, %v3073
          %v3075 = vrot.slane %v3059, %v3074
          %v3077 = vunpack.c.l.s4 1966171168
          %v3078 = vunpack.c.0.s8 %v3077
          %v3079 = vlaneseq
          %v3080 = vshrl.u32 %v3079, 7
          %v3081 = vsub.s32 %v3078, %v3080
          %v3082 = vrot.slane %v3060, %v3081
          %v3084 = vunpack.c.l.s4 1966171168
          %v3085 = vunpack.c.0.s8 %v3084
          %v3086 = vlaneseq
          %v3087 = vshrl.u32 %v3086, 7
          %v3088 = vsub.s32 %v3085, %v3087
          %v3089 = vrot.slane %v3061, %v3088
          %v3090 = vcombine.low %v3068, %v3075
          %v3091 = vcombine.low %v3082, %v3089
          %v3093 = vunpack.c.l.s4 1966171168
          %v3094 = vunpack.c.0.s8 %v3093
          %v3095 = vlaneseq
          %v3096 = vshrl.u32 %v3095, 7
          %v3097 = vsub.s32 %v3094, %v3096
          %v3098 = vrot.slane %v3090, %v3097
          %v3100 = vunpack.c.l.s4 1966171168
          %v3101 = vunpack.c.0.s8 %v3100
          %v3102 = vlaneseq
          %v3103 = vshrl.u32 %v3102, 7
          %v3104 = vsub.s32 %v3101, %v3103
          %v3105 = vrot.slane %v3091, %v3104
          %v3106 = vcombine.low %v3098, %v3105
          %3109 = vst [vmem:[#allocation2] sm:$0xff] %v3057
          %3110 = vst [vmem:[#allocation2 + $0x8] sm:$0xff] %v3106
          %v3111 = vpack.c.bf16 %v2930, %v2930
          %v3112 = vpack.c.bf16 %v2932, %v2932
          %v3113 = vpack.c.bf16 %v2971, %v2971
          %v3114 = vpack.c.bf16 %v2973, %v2973
          %v3119 = vcombine.low %v3111, %v3112
          %v3120 = vcombine.low %v3113, %v3114
          %v3122 = vunpack.c.l.s4 1966171168
          %v3123 = vunpack.c.0.s8 %v3122
          %v3124 = vlaneseq
          %v3125 = vshrl.u32 %v3124, 7
          %v3126 = vsub.s32 %v3123, %v3125
          %v3127 = vrot.slane %v3119, %v3126
          %v3129 = vunpack.c.l.s4 1966171168
          %v3130 = vunpack.c.0.s8 %v3129
          %v3131 = vlaneseq
          %v3132 = vshrl.u32 %v3131, 7
          %v3133 = vsub.s32 %v3130, %v3132
          %v3134 = vrot.slane %v3120, %v3133
          %v3135 = vcombine.low %v3127, %v3134
          %v3137 = vunpack.c.l.s4 1966171168
          %v3138 = vunpack.c.0.s8 %v3137
          %v3139 = vlaneseq
          %v3140 = vshrl.u32 %v3139, 7
          %v3141 = vsub.s32 %v3138, %v3140
          %v3142 = vrot.slane %v3135, %v3141
          %3144 = vst [vmem:[#allocation2 + $0x10] sm:$0xf] %v3142
          %3145 = vst [vmem:[#allocation3] sm:$0xff] 0.0
        $region100: #{multimodal_emotic_forward.1} parent=59 // pred_fallthru
          _
        %v3146 = vld [vmem:[#allocation2] sm:$0xff]
        %v3147 = vld [vmem:[#allocation2 + $0x8] sm:$0xff]
        %v3148 = vld [vmem:[#allocation2 + $0x10] sm:$0xf]
        %v3149 = vld [vmem:[%s478] sm:$0xff]
        %v3150 = vld [vmem:[%s478 + $0x8] sm:$0xff]
        %v3151 = vld [vmem:[%s478 + $0x10] sm:$0xff]
        %v3152 = vld [vmem:[%s478 + $0x18] sm:$0xff]
        %v3153 = vld [vmem:[%s478 + $0x20] sm:$0xff]
        %v3154 = vld [vmem:[%s478 + $0x28] sm:$0xff]
        %v3155 = vld [vmem:[%s478 + $0x30] sm:$0xff]
        %v3156 = vld [vmem:[%s478 + $0x38] sm:$0xff]
        %v3157 = vld [vmem:[%s478 + $0x40] sm:$0xff]
        %v3158 = vld [vmem:[%s478 + $0x48] sm:$0xff]
        %v3159 = vld [vmem:[%s478 + $0x50] sm:$0xff]
        %v3160 = vld [vmem:[%s478 + $0x58] sm:$0xff]
        %v3161 = vld [vmem:[%s478 + $0x60] sm:$0xff]
        %v3162 = vld [vmem:[%s478 + $0x68] sm:$0xff]
        %v3163 = vld [vmem:[%s478 + $0x70] sm:$0xff]
        %v3164 = vld [vmem:[%s478 + $0x78] sm:$0xff]
        %v3165 = vld [vmem:[%s478 + $0x80] sm:$0xff]
        %v3166 = vld [vmem:[%s478 + $0x88] sm:$0xff]
        %v3167 = vld [vmem:[%s478 + $0x90] sm:$0xff]
        %v3168 = vld [vmem:[%s478 + $0x98] sm:$0xff]
        %v3169 = vld [vmem:[%s478 + $0xa0] sm:$0xff]
        %v3170 = vld [vmem:[%s478 + $0xa8] sm:$0xff]
        %v3171 = vld [vmem:[%s478 + $0xb0] sm:$0xff]
        %v3172 = vld [vmem:[%s478 + $0xb8] sm:$0xff]
        %v3173 = vld [vmem:[%s478 + $0xc0] sm:$0xff]
        %v3174 = vld [vmem:[%s478 + $0xc8] sm:$0xff]
        %v3175 = vld [vmem:[%s478 + $0xd0] sm:$0xff]
        %v3176 = vld [vmem:[%s478 + $0xd8] sm:$0xff]
        %v3177 = vld [vmem:[%s478 + $0xe0] sm:$0xff]
        %v3178 = vld [vmem:[%s478 + $0xe8] sm:$0xff]
        %v3179 = vld [vmem:[%s478 + $0xf0] sm:$0xff]
        %v3180 = vld [vmem:[%s478 + $0xf8] sm:$0xff]
        %v3181 = vld [vmem:[%s478 + $0x100] sm:$0xff]
        %v3182 = vld [vmem:[%s478 + $0x108] sm:$0xff]
        %v3183 = vld [vmem:[%s478 + $0x110] sm:$0xff]
        %v3184 = vld [vmem:[%s478 + $0x118] sm:$0xff]
        %v3185 = vld [vmem:[%s478 + $0x120] sm:$0xff]
        %v3186 = vld [vmem:[%s478 + $0x128] sm:$0xff]
        %v3187 = vld [vmem:[%s478 + $0x130] sm:$0xff]
        %v3188 = vld [vmem:[%s478 + $0x138] sm:$0xff]
        %v3189 = vld [vmem:[%s478 + $0x140] sm:$0xff]
        %v3190 = vld [vmem:[%s478 + $0x148] sm:$0xff]
        %v3191 = vld [vmem:[%s478 + $0x150] sm:$0xff]
        %v3192 = vld [vmem:[%s478 + $0x158] sm:$0xff]
        %v3193 = vld [vmem:[%s478 + $0x160] sm:$0xff]
        %v3194 = vld [vmem:[%s478 + $0x168] sm:$0xff]
        %v3195 = vld [vmem:[%s478 + $0x170] sm:$0xff]
        %v3196 = vld [vmem:[%s478 + $0x178] sm:$0xff]
        %v3197 = vld [vmem:[%s478 + $0x180] sm:$0xff]
        %v3198 = vld [vmem:[%s478 + $0x188] sm:$0xff]
        %v3199 = vld [vmem:[%s478 + $0x190] sm:$0xff]
        %v3200 = vld [vmem:[%s478 + $0x198] sm:$0xff]
        %v3201 = vld [vmem:[%s478 + $0x1a0] sm:$0xff]
        %v3202 = vld [vmem:[%s478 + $0x1a8] sm:$0xff]
        %v3203 = vld [vmem:[%s478 + $0x1b0] sm:$0xff]
        %v3204 = vld [vmem:[%s478 + $0x1b8] sm:$0xff]
        %v3205 = vld [vmem:[%s478 + $0x1c0] sm:$0xff]
        %v3206 = vld [vmem:[%s478 + $0x1c8] sm:$0xff]
        %v3207 = vld [vmem:[%s478 + $0x1d0] sm:$0xff]
        %v3208 = vld [vmem:[%s478 + $0x1d8] sm:$0xff]
        %v3209 = vld [vmem:[%s478 + $0x1e0] sm:$0xff]
        %v3210 = vld [vmem:[%s478 + $0x1e8] sm:$0xff]
        %v3211 = vld [vmem:[%s478 + $0x1f0] sm:$0xff]
        %v3212 = vld [vmem:[%s478 + $0x1f8] sm:$0xff]
        %v3213 = vld [vmem:[%s478 + $0x200] sm:$0xff]
        %v3214 = vld [vmem:[%s478 + $0x208] sm:$0xff]
        %v3215 = vld [vmem:[%s478 + $0x210] sm:$0xff]
        %v3216 = vld [vmem:[%s478 + $0x218] sm:$0xff]
        %v3217 = vld [vmem:[%s478 + $0x220] sm:$0xff]
        %v3218 = vld [vmem:[%s478 + $0x228] sm:$0xff]
        %v3219 = vld [vmem:[%s478 + $0x230] sm:$0xff]
        %v3220 = vld [vmem:[%s478 + $0x238] sm:$0xff]
        %v3221 = vld [vmem:[%s478 + $0x240] sm:$0xff]
        %v3222 = vld [vmem:[%s478 + $0x248] sm:$0xff]
        %v3223 = vld [vmem:[%s478 + $0x250] sm:$0xff]
        %v3224 = vld [vmem:[%s478 + $0x258] sm:$0xff]
        %v3225 = vld [vmem:[%s478 + $0x260] sm:$0xff]
        %v3226 = vld [vmem:[%s478 + $0x268] sm:$0xff]
        %v3227 = vld [vmem:[%s478 + $0x270] sm:$0xff]
        %v3228 = vld [vmem:[%s478 + $0x278] sm:$0xff]
        %v3229 = vld [vmem:[%s478 + $0x280] sm:$0xff]
        %v3230 = vld [vmem:[%s478 + $0x288] sm:$0xff]
        %v3231 = vld [vmem:[%s478 + $0x290] sm:$0xff]
        %v3232 = vld [vmem:[%s478 + $0x298] sm:$0xff]
        %v3233 = vld [vmem:[%s478 + $0x2a0] sm:$0xff]
        %v3234 = vld [vmem:[%s478 + $0x2a8] sm:$0xff]
        %v3235 = vld [vmem:[%s478 + $0x2b0] sm:$0xff]
        %v3236 = vld [vmem:[%s478 + $0x2b8] sm:$0xff]
        %v3237 = vld [vmem:[%s478 + $0x2c0] sm:$0xff]
        %v3238 = vld [vmem:[%s478 + $0x2c8] sm:$0xff]
        %v3239 = vld [vmem:[%s478 + $0x2d0] sm:$0xff]
        %v3240 = vld [vmem:[%s478 + $0x2d8] sm:$0xff]
        %v3241 = vld [vmem:[%s478 + $0x2e0] sm:$0xff]
        %v3242 = vld [vmem:[%s478 + $0x2e8] sm:$0xff]
        %v3243 = vld [vmem:[%s478 + $0x2f0] sm:$0xff]
        %v3244 = vld [vmem:[%s478 + $0x2f8] sm:$0xff]
        %v3245 = vld [vmem:[%s478 + $0x300] sm:$0xff]
        %v3246 = vld [vmem:[%s478 + $0x308] sm:$0xff]
        %v3247 = vld [vmem:[%s478 + $0x310] sm:$0xff]
        %v3248 = vld [vmem:[%s478 + $0x318] sm:$0xff]
        %v3249 = vld [vmem:[%s478 + $0x320] sm:$0xff]
        %v3250 = vld [vmem:[%s478 + $0x328] sm:$0xff]
        %v3251 = vld [vmem:[%s478 + $0x330] sm:$0xff]
        %v3252 = vld [vmem:[%s478 + $0x338] sm:$0xff]
        %v3253 = vld [vmem:[%s478 + $0x340] sm:$0xff]
        %v3254 = vld [vmem:[%s478 + $0x348] sm:$0xff]
        %v3255 = vld [vmem:[%s478 + $0x350] sm:$0xff]
        %v3256 = vld [vmem:[%s478 + $0x358] sm:$0xff]
        %v3257 = vld [vmem:[%s478 + $0x360] sm:$0xff]
        %v3258 = vld [vmem:[%s478 + $0x368] sm:$0xff]
        %v3259 = vld [vmem:[%s478 + $0x370] sm:$0xff]
        %v3260 = vld [vmem:[%s478 + $0x378] sm:$0xff]
        %v3261 = vld [vmem:[%s478 + $0x380] sm:$0xff]
        %v3262 = vld [vmem:[%s478 + $0x388] sm:$0xff]
        %v3263 = vld [vmem:[%s478 + $0x390] sm:$0xff]
        %v3264 = vld [vmem:[%s478 + $0x398] sm:$0xff]
        %v3265 = vld [vmem:[%s478 + $0x3a0] sm:$0xff]
        %v3266 = vld [vmem:[%s478 + $0x3a8] sm:$0xff]
        %v3267 = vld [vmem:[%s478 + $0x3b0] sm:$0xff]
        %v3268 = vld [vmem:[%s478 + $0x3b8] sm:$0xff]
        %v3269 = vld [vmem:[%s478 + $0x3c0] sm:$0xff]
        %v3270 = vld [vmem:[%s478 + $0x3c8] sm:$0xff]
        %v3271 = vld [vmem:[%s478 + $0x3d0] sm:$0xff]
        %v3272 = vld [vmem:[%s478 + $0x3d8] sm:$0xff]
        %v3273 = vld [vmem:[%s478 + $0x3e0] sm:$0xff]
        %v3274 = vld [vmem:[%s478 + $0x3e8] sm:$0xff]
        %v3275 = vld [vmem:[%s478 + $0x3f0] sm:$0xff]
        %v3276 = vld [vmem:[%s478 + $0x3f8] sm:$0xff]
        %v3277 = vld [vmem:[%s478 + $0x400] sm:$0xff]
        %v3278 = vld [vmem:[%s478 + $0x408] sm:$0xff]
        %v3279 = vld [vmem:[%s478 + $0x410] sm:$0xff]
        %v3280 = vld [vmem:[%s478 + $0x418] sm:$0xff]
        %v3281 = vld [vmem:[%s478 + $0x420] sm:$0xff]
        %v3282 = vld [vmem:[%s478 + $0x428] sm:$0xff]
        %v3283 = vld [vmem:[%s478 + $0x430] sm:$0xff]
        %v3284 = vld [vmem:[%s478 + $0x438] sm:$0xff]
        %v3285 = vld [vmem:[%s478 + $0x440] sm:$0xff]
        %v3286 = vld [vmem:[%s478 + $0x448] sm:$0xff]
        %v3287 = vld [vmem:[%s478 + $0x450] sm:$0xff]
        %v3288 = vld [vmem:[%s478 + $0x458] sm:$0xff]
        %v3289 = vld [vmem:[%s478 + $0x460] sm:$0xff]
        %v3290 = vld [vmem:[%s478 + $0x468] sm:$0xff]
        %v3291 = vld [vmem:[%s478 + $0x470] sm:$0xff]
        %v3292 = vld [vmem:[%s478 + $0x478] sm:$0xff]
        %v3293 = vld [vmem:[%s478 + $0x480] sm:$0xff]
        %v3294 = vld [vmem:[%s478 + $0x488] sm:$0xff]
        %v3295 = vld [vmem:[%s478 + $0x490] sm:$0xff]
        %v3296 = vld [vmem:[%s478 + $0x498] sm:$0xff]
        %v3297 = vld [vmem:[%s478 + $0x4a0] sm:$0xff]
        %v3298 = vld [vmem:[%s478 + $0x4a8] sm:$0xff]
        %v3299 = vld [vmem:[%s478 + $0x4b0] sm:$0xff]
        %v3300 = vld [vmem:[%s478 + $0x4b8] sm:$0xff]
        %v3301 = vld [vmem:[%s478 + $0x4c0] sm:$0xff]
        %v3302 = vld [vmem:[%s478 + $0x4c8] sm:$0xff]
        %v3303 = vld [vmem:[%s478 + $0x4d0] sm:$0xff]
        %v3304 = vld [vmem:[%s478 + $0x4d8] sm:$0xff]
        %v3305 = vld [vmem:[%s478 + $0x4e0] sm:$0xff]
        %v3306 = vld [vmem:[%s478 + $0x4e8] sm:$0xff]
        %v3307 = vld [vmem:[%s478 + $0x4f0] sm:$0xff]
        %v3308 = vld [vmem:[%s478 + $0x4f8] sm:$0xff]
        %v3309 = vld [vmem:[%s478 + $0x500] sm:$0xff]
        %v3310 = vld [vmem:[%s478 + $0x508] sm:$0xff]
        %v3311 = vld [vmem:[%s478 + $0x510] sm:$0xff]
        %v3312 = vld [vmem:[%s478 + $0x518] sm:$0xff]
        %v3313 = vld [vmem:[%s478 + $0x520] sm:$0xff]
        %v3314 = vld [vmem:[%s478 + $0x528] sm:$0xff]
        %v3315 = vld [vmem:[%s478 + $0x530] sm:$0xff]
        %v3316 = vld [vmem:[%s478 + $0x538] sm:$0xff]
        %v3317 = vld [vmem:[%s478 + $0x540] sm:$0xff]
        %v3318 = vld [vmem:[%s478 + $0x548] sm:$0xff]
        %v3319 = vld [vmem:[%s478 + $0x550] sm:$0xff]
        %v3320 = vld [vmem:[%s478 + $0x558] sm:$0xff]
        %v3321 = vld [vmem:[%s478 + $0x560] sm:$0xff]
        %v3322 = vld [vmem:[%s478 + $0x568] sm:$0xff]
        %v3323 = vld [vmem:[%s478 + $0x570] sm:$0xff]
        %v3324 = vld [vmem:[%s478 + $0x578] sm:$0xff]
        %v3325 = vld [vmem:[%s478 + $0x580] sm:$0xff]
        %v3326 = vld [vmem:[%s478 + $0x588] sm:$0xff]
        %v3327 = vld [vmem:[%s478 + $0x590] sm:$0xff]
        %v3328 = vld [vmem:[%s478 + $0x598] sm:$0xff]
        %v3329 = vld [vmem:[%s478 + $0x5a0] sm:$0xff]
        %v3330 = vld [vmem:[%s478 + $0x5a8] sm:$0xff]
        %v3331 = vld [vmem:[%s478 + $0x5b0] sm:$0xff]
        %v3332 = vld [vmem:[%s478 + $0x5b8] sm:$0xff]
        %v3333 = vld [vmem:[%s478 + $0x5c0] sm:$0xff]
        %v3334 = vld [vmem:[%s478 + $0x5c8] sm:$0xff]
        %v3335 = vld [vmem:[%s478 + $0x5d0] sm:$0xff]
        %v3336 = vld [vmem:[%s478 + $0x5d8] sm:$0xff]
        %v3337 = vld [vmem:[%s478 + $0x5e0] sm:$0xff]
        %v3338 = vld [vmem:[%s478 + $0x5e8] sm:$0xff]
        %v3339 = vld [vmem:[%s478 + $0x5f0] sm:$0xff]
        %v3340 = vld [vmem:[%s478 + $0x5f8] sm:$0xff]
        %v3341 = vld [vmem:[%s478 + $0x600] sm:$0xff]
        %v3342 = vld [vmem:[%s478 + $0x608] sm:$0xff]
        %v3343 = vld [vmem:[%s478 + $0x610] sm:$0xff]
        %v3344 = vld [vmem:[%s478 + $0x618] sm:$0xff]
        %v3345 = vld [vmem:[%s478 + $0x620] sm:$0xff]
        %v3346 = vld [vmem:[%s478 + $0x628] sm:$0xff]
        %v3347 = vld [vmem:[%s478 + $0x630] sm:$0xff]
        %v3348 = vld [vmem:[%s478 + $0x638] sm:$0xff]
        %v3349 = vld [vmem:[%s478 + $0x640] sm:$0xff]
        %v3350 = vld [vmem:[%s478 + $0x648] sm:$0xff]
        %v3351 = vld [vmem:[%s478 + $0x650] sm:$0xff]
        %v3352 = vld [vmem:[%s478 + $0x658] sm:$0xff]
        %v3353 = vld [vmem:[%s478 + $0x660] sm:$0xff]
        %v3354 = vld [vmem:[%s478 + $0x668] sm:$0xff]
        %v3355 = vld [vmem:[%s478 + $0x670] sm:$0xff]
        %v3356 = vld [vmem:[%s478 + $0x678] sm:$0xff]
        %v3357 = vld [vmem:[%s478 + $0x680] sm:$0xff]
        %v3358 = vld [vmem:[%s478 + $0x688] sm:$0xff]
        %v3359 = vld [vmem:[%s478 + $0x690] sm:$0xff]
        %v3360 = vld [vmem:[%s478 + $0x698] sm:$0xff]
        %v3361 = vld [vmem:[%s478 + $0x6a0] sm:$0xff]
        %v3362 = vld [vmem:[%s478 + $0x6a8] sm:$0xff]
        %v3363 = vld [vmem:[%s478 + $0x6b0] sm:$0xff]
        %v3364 = vld [vmem:[%s478 + $0x6b8] sm:$0xff]
        %v3365 = vld [vmem:[%s478 + $0x6c0] sm:$0xff]
        %v3366 = vld [vmem:[%s478 + $0x6c8] sm:$0xff]
        %v3367 = vld [vmem:[%s478 + $0x6d0] sm:$0xff]
        %v3368 = vld [vmem:[%s478 + $0x6d8] sm:$0xff]
        %v3369 = vld [vmem:[%s478 + $0x6e0] sm:$0xff]
        %v3370 = vld [vmem:[%s478 + $0x6e8] sm:$0xff]
        %v3371 = vld [vmem:[%s478 + $0x6f0] sm:$0xff]
        %v3372 = vld [vmem:[%s478 + $0x6f8] sm:$0xff]
        %v3373 = vld [vmem:[%s478 + $0x700] sm:$0xff]
        %v3374 = vld [vmem:[%s478 + $0x708] sm:$0xff]
        %v3375 = vld [vmem:[%s478 + $0x710] sm:$0xff]
        %v3376 = vld [vmem:[%s478 + $0x718] sm:$0xff]
        %v3377 = vld [vmem:[%s478 + $0x720] sm:$0xff]
        %v3378 = vld [vmem:[%s478 + $0x728] sm:$0xff]
        %v3379 = vld [vmem:[%s478 + $0x730] sm:$0xff]
        %v3380 = vld [vmem:[%s478 + $0x738] sm:$0xff]
        %v3381 = vld [vmem:[%s478 + $0x740] sm:$0xff]
        %v3382 = vld [vmem:[%s478 + $0x748] sm:$0xff]
        %v3383 = vld [vmem:[%s478 + $0x750] sm:$0xff]
        %v3384 = vld [vmem:[%s478 + $0x758] sm:$0xff]
        %v3385 = vld [vmem:[%s478 + $0x760] sm:$0xff]
        %v3386 = vld [vmem:[%s478 + $0x768] sm:$0xff]
        %v3387 = vld [vmem:[%s478 + $0x770] sm:$0xff]
        %v3388 = vld [vmem:[%s478 + $0x778] sm:$0xff]
        %v3389 = vld [vmem:[%s478 + $0x780] sm:$0xff]
        %v3390 = vld [vmem:[%s478 + $0x788] sm:$0xff]
        %v3391 = vld [vmem:[%s478 + $0x790] sm:$0xff]
        %v3392 = vld [vmem:[%s478 + $0x798] sm:$0xff]
        %v3393 = vld [vmem:[%s478 + $0x7a0] sm:$0xff]
        %v3394 = vld [vmem:[%s478 + $0x7a8] sm:$0xff]
        %v3395 = vld [vmem:[%s478 + $0x7b0] sm:$0xff]
        %v3396 = vld [vmem:[%s478 + $0x7b8] sm:$0xff]
        %v3397 = vld [vmem:[%s478 + $0x7c0] sm:$0xff]
        %v3398 = vld [vmem:[%s478 + $0x7c8] sm:$0xff]
        %v3399 = vld [vmem:[%s478 + $0x7d0] sm:$0xff]
        %v3400 = vld [vmem:[%s478 + $0x7d8] sm:$0xff]
        %v3401 = vld [vmem:[%s478 + $0x7e0] sm:$0xff]
        %v3402 = vld [vmem:[%s478 + $0x7e8] sm:$0xff]
        %v3403 = vld [vmem:[%s478 + $0x7f0] sm:$0xff]
        %v3404 = vld [vmem:[%s478 + $0x7f8] sm:$0xff]
        %v3405 = vld [vmem:[%s478 + $0x800] sm:$0xff]
        %v3406 = vld [vmem:[%s478 + $0x808] sm:$0xff]
        %v3407 = vld [vmem:[%s478 + $0x810] sm:$0xff]
        %v3408 = vld [vmem:[%s478 + $0x818] sm:$0xff]
        %v3409 = vld [vmem:[%s478 + $0x820] sm:$0xff]
        %v3410 = vld [vmem:[%s478 + $0x828] sm:$0xff]
        %v3411 = vld [vmem:[%s478 + $0x830] sm:$0xff]
        %v3412 = vld [vmem:[%s478 + $0x838] sm:$0xff]
        %v3413 = vld [vmem:[%s478 + $0x840] sm:$0xff]
        %v3414 = vld [vmem:[%s478 + $0x848] sm:$0xff]
        %v3415 = vld [vmem:[%s478 + $0x850] sm:$0xff]
        %v3416 = vld [vmem:[%s478 + $0x858] sm:$0xff]
        %v3417 = vld [vmem:[%s478 + $0x860] sm:$0xff]
        %v3418 = vld [vmem:[%s478 + $0x868] sm:$0xff]
        %v3419 = vld [vmem:[%s478 + $0x870] sm:$0xff]
        %v3420 = vld [vmem:[%s478 + $0x878] sm:$0xff]
        %v3421 = vld [vmem:[%s478 + $0x880] sm:$0xff]
        %v3422 = vld [vmem:[%s478 + $0x888] sm:$0xff]
        %v3423 = vld [vmem:[%s478 + $0x890] sm:$0xff]
        %v3424 = vld [vmem:[%s478 + $0x898] sm:$0xff]
        %v3425 = vld [vmem:[%s478 + $0x8a0] sm:$0xff]
        %v3426 = vld [vmem:[%s478 + $0x8a8] sm:$0xff]
        %v3427 = vld [vmem:[%s478 + $0x8b0] sm:$0xff]
        %v3428 = vld [vmem:[%s478 + $0x8b8] sm:$0xff]
        %v3429 = vld [vmem:[%s478 + $0x8c0] sm:$0xff]
        %v3430 = vld [vmem:[%s478 + $0x8c8] sm:$0xff]
        %v3431 = vld [vmem:[%s478 + $0x8d0] sm:$0xff]
        %v3432 = vld [vmem:[%s478 + $0x8d8] sm:$0xff]
        %v3433 = vld [vmem:[%s478 + $0x8e0] sm:$0xff]
        %v3434 = vld [vmem:[%s478 + $0x8e8] sm:$0xff]
        %v3435 = vld [vmem:[%s478 + $0x8f0] sm:$0xff]
        %v3436 = vld [vmem:[%s478 + $0x8f8] sm:$0xff]
        %v3437 = vld [vmem:[%s478 + $0x900] sm:$0xff]
        %v3438 = vld [vmem:[%s478 + $0x908] sm:$0xff]
        %v3439 = vld [vmem:[%s478 + $0x910] sm:$0xff]
        %v3440 = vld [vmem:[%s478 + $0x918] sm:$0xff]
        %v3441 = vld [vmem:[%s478 + $0x920] sm:$0xff]
        %v3442 = vld [vmem:[%s478 + $0x928] sm:$0xff]
        %v3443 = vld [vmem:[%s478 + $0x930] sm:$0xff]
        %v3444 = vld [vmem:[%s478 + $0x938] sm:$0xff]
        %v3445 = vld [vmem:[%s478 + $0x940] sm:$0xff]
        %v3446 = vld [vmem:[%s478 + $0x948] sm:$0xff]
        %v3447 = vld [vmem:[%s478 + $0x950] sm:$0xff]
        %v3448 = vld [vmem:[%s478 + $0x958] sm:$0xff]
        %v3449 = vld [vmem:[%s478 + $0x960] sm:$0xff]
        %v3450 = vld [vmem:[%s478 + $0x968] sm:$0xff]
        %v3451 = vld [vmem:[%s478 + $0x970] sm:$0xff]
        %v3452 = vld [vmem:[%s478 + $0x978] sm:$0xff]
        %v3453 = vld [vmem:[%s478 + $0x980] sm:$0xff]
        %v3454 = vld [vmem:[%s478 + $0x988] sm:$0xff]
        %v3455 = vld [vmem:[%s478 + $0x990] sm:$0xff]
        %v3456 = vld [vmem:[%s478 + $0x998] sm:$0xff]
        %v3457 = vld [vmem:[%s478 + $0x9a0] sm:$0xff]
        %v3458 = vld [vmem:[%s478 + $0x9a8] sm:$0xff]
        %v3459 = vld [vmem:[%s478 + $0x9b0] sm:$0xff]
        %v3460 = vld [vmem:[%s478 + $0x9b8] sm:$0xff]
        %v3461 = vld [vmem:[%s478 + $0x9c0] sm:$0xff]
        %v3462 = vld [vmem:[%s478 + $0x9c8] sm:$0xff]
        %v3463 = vld [vmem:[%s478 + $0x9d0] sm:$0xff]
        %v3464 = vld [vmem:[%s478 + $0x9d8] sm:$0xff]
        %v3465 = vld [vmem:[%s478 + $0x9e0] sm:$0xff]
        %v3466 = vld [vmem:[%s478 + $0x9e8] sm:$0xff]
        %v3467 = vld [vmem:[%s478 + $0x9f0] sm:$0xff]
        %v3468 = vld [vmem:[%s478 + $0x9f8] sm:$0xff]
        %v3469 = vld [vmem:[%s487] sm:$0x3]
        %v3471 = vlaneseq
        %v3472 = vshrl.u32 %v3471, 7
        %v3473 = vsub.s32 0, %v3472
        %v3474 = vrot.slane %v3469, %v3473
        %v3475 = vlaneseq
        %v3476 = vshrl.u32 %v3475, 7
        %v3477 = vsub.s32 1, %v3476
        %v3478 = vrot.slane %v3469, %v3477
        %v3484 = vcombine.high %v3146, %v3146
        %v3486 = vunpack.c.l.s4 1966171168
        %v3487 = vunpack.c.0.s8 %v3486
        %v3488 = vlaneseq
        %v3489 = vshrl.u32 %v3488, 7
        %v3490 = vsub.s32 %v3487, %v3489
        %v3491 = vrot.slane %v3146, %v3490
        %v3493 = vunpack.c.l.s4 1966171168
        %v3494 = vunpack.c.0.s8 %v3493
        %v3495 = vlaneseq
        %v3496 = vshrl.u32 %v3495, 7
        %v3497 = vsub.s32 %v3494, %v3496
        %v3498 = vrot.slane %v3484, %v3497
        %v3499 = vcombine.high %v3491, %v3491
        %v3500 = vcombine.high %v3498, %v3498
        %v3502 = vunpack.c.l.s4 1966171168
        %v3503 = vunpack.c.0.s8 %v3502
        %v3504 = vlaneseq
        %v3505 = vshrl.u32 %v3504, 7
        %v3506 = vsub.s32 %v3503, %v3505
        %v3507 = vrot.slane %v3491, %v3506
        %v3509 = vunpack.c.l.s4 1966171168
        %v3510 = vunpack.c.0.s8 %v3509
        %v3511 = vlaneseq
        %v3512 = vshrl.u32 %v3511, 7
        %v3513 = vsub.s32 %v3510, %v3512
        %v3514 = vrot.slane %v3498, %v3513
        %v3516 = vunpack.c.l.s4 1966171168
        %v3517 = vunpack.c.0.s8 %v3516
        %v3518 = vlaneseq
        %v3519 = vshrl.u32 %v3518, 7
        %v3520 = vsub.s32 %v3517, %v3519
        %v3521 = vrot.slane %v3499, %v3520
        %v3523 = vunpack.c.l.s4 1966171168
        %v3524 = vunpack.c.0.s8 %v3523
        %v3525 = vlaneseq
        %v3526 = vshrl.u32 %v3525, 7
        %v3527 = vsub.s32 %v3524, %v3526
        %v3528 = vrot.slane %v3500, %v3527
        %v3529 = vcombine.high %v3507, %v3507
        %v3530 = vcombine.high %v3514, %v3514
        %v3531 = vcombine.high %v3521, %v3521
        %v3532 = vcombine.high %v3528, %v3528
        %v3533 = vcombine.high %v3147, %v3147
        %v3535 = vunpack.c.l.s4 1966171168
        %v3536 = vunpack.c.0.s8 %v3535
        %v3537 = vlaneseq
        %v3538 = vshrl.u32 %v3537, 7
        %v3539 = vsub.s32 %v3536, %v3538
        %v3540 = vrot.slane %v3147, %v3539
        %v3542 = vunpack.c.l.s4 1966171168
        %v3543 = vunpack.c.0.s8 %v3542
        %v3544 = vlaneseq
        %v3545 = vshrl.u32 %v3544, 7
        %v3546 = vsub.s32 %v3543, %v3545
        %v3547 = vrot.slane %v3533, %v3546
        %v3548 = vcombine.high %v3540, %v3540
        %v3549 = vcombine.high %v3547, %v3547
        %v3551 = vunpack.c.l.s4 1966171168
        %v3552 = vunpack.c.0.s8 %v3551
        %v3553 = vlaneseq
        %v3554 = vshrl.u32 %v3553, 7
        %v3555 = vsub.s32 %v3552, %v3554
        %v3556 = vrot.slane %v3540, %v3555
        %v3558 = vunpack.c.l.s4 1966171168
        %v3559 = vunpack.c.0.s8 %v3558
        %v3560 = vlaneseq
        %v3561 = vshrl.u32 %v3560, 7
        %v3562 = vsub.s32 %v3559, %v3561
        %v3563 = vrot.slane %v3547, %v3562
        %v3565 = vunpack.c.l.s4 1966171168
        %v3566 = vunpack.c.0.s8 %v3565
        %v3567 = vlaneseq
        %v3568 = vshrl.u32 %v3567, 7
        %v3569 = vsub.s32 %v3566, %v3568
        %v3570 = vrot.slane %v3548, %v3569
        %v3572 = vunpack.c.l.s4 1966171168
        %v3573 = vunpack.c.0.s8 %v3572
        %v3574 = vlaneseq
        %v3575 = vshrl.u32 %v3574, 7
        %v3576 = vsub.s32 %v3573, %v3575
        %v3577 = vrot.slane %v3549, %v3576
        %v3578 = vcombine.high %v3556, %v3556
        %v3579 = vcombine.high %v3563, %v3563
        %v3580 = vcombine.high %v3570, %v3570
        %v3581 = vcombine.high %v3577, %v3577
        %v3583 = vunpack.c.l.s4 1966171168
        %v3584 = vunpack.c.0.s8 %v3583
        %v3585 = vlaneseq
        %v3586 = vshrl.u32 %v3585, 7
        %v3587 = vsub.s32 %v3584, %v3586
        %v3588 = vrot.slane %v3148, %v3587
        %v3589 = vcombine.high %v3588, %v3588
        %v3591 = vunpack.c.l.s4 1966171168
        %v3592 = vunpack.c.0.s8 %v3591
        %v3593 = vlaneseq
        %v3594 = vshrl.u32 %v3593, 7
        %v3595 = vsub.s32 %v3592, %v3594
        %v3596 = vrot.slane %v3588, %v3595
        %v3598 = vunpack.c.l.s4 1966171168
        %v3599 = vunpack.c.0.s8 %v3598
        %v3600 = vlaneseq
        %v3601 = vshrl.u32 %v3600, 7
        %v3602 = vsub.s32 %v3599, %v3601
        %v3603 = vrot.slane %v3589, %v3602
        %v3604 = vcombine.high %v3596, %v3596
        %v3605 = vcombine.high %v3603, %v3603
        %v3946 = vunpack.c.l.b16 %v3149
        %v3947 = vunpack.c.h.b16 %v3149
        %v3948 = vunpack.c.l.b16 %v3150
        %v3949 = vunpack.c.h.b16 %v3150
        %v3950 = vunpack.c.l.b16 %v3151
        %v3951 = vunpack.c.h.b16 %v3151
        %v3952 = vunpack.c.l.b16 %v3152
        %v3953 = vunpack.c.h.b16 %v3152
        %v3954 = vunpack.c.l.b16 %v3153
        %v3955 = vunpack.c.h.b16 %v3153
        %v3956 = vunpack.c.l.b16 %v3154
        %v3957 = vunpack.c.h.b16 %v3154
        %v3958 = vunpack.c.l.b16 %v3155
        %v3959 = vunpack.c.h.b16 %v3155
        %v3960 = vunpack.c.l.b16 %v3156
        %v3961 = vunpack.c.h.b16 %v3156
        %v3962 = vunpack.c.l.b16 %v3157
        %v3963 = vunpack.c.h.b16 %v3157
        %v3964 = vunpack.c.l.b16 %v3158
        %v3965 = vunpack.c.h.b16 %v3158
        %v3966 = vunpack.c.l.b16 %v3159
        %v3967 = vunpack.c.h.b16 %v3159
        %v3968 = vunpack.c.l.b16 %v3160
        %v3969 = vunpack.c.h.b16 %v3160
        %v3970 = vunpack.c.l.b16 %v3161
        %v3971 = vunpack.c.h.b16 %v3161
        %v3972 = vunpack.c.l.b16 %v3162
        %v3973 = vunpack.c.h.b16 %v3162
        %v3974 = vunpack.c.l.b16 %v3163
        %v3975 = vunpack.c.h.b16 %v3163
        %v3976 = vunpack.c.l.b16 %v3164
        %v3977 = vunpack.c.h.b16 %v3164
        %v3978 = vunpack.c.l.b16 %v3165
        %v3979 = vunpack.c.h.b16 %v3165
        %v3980 = vunpack.c.l.b16 %v3166
        %v3981 = vunpack.c.h.b16 %v3166
        %v3982 = vunpack.c.l.b16 %v3167
        %v3983 = vunpack.c.h.b16 %v3167
        %v3984 = vunpack.c.l.b16 %v3168
        %v3985 = vunpack.c.h.b16 %v3168
        %v3986 = vunpack.c.l.b16 %v3169
        %v3987 = vunpack.c.h.b16 %v3169
        %v3988 = vunpack.c.l.b16 %v3170
        %v3989 = vunpack.c.h.b16 %v3170
        %v3990 = vunpack.c.l.b16 %v3171
        %v3991 = vunpack.c.h.b16 %v3171
        %v3992 = vunpack.c.l.b16 %v3172
        %v3993 = vunpack.c.h.b16 %v3172
        %v3994 = vunpack.c.l.b16 %v3173
        %v3995 = vunpack.c.h.b16 %v3173
        %v3996 = vunpack.c.l.b16 %v3174
        %v3997 = vunpack.c.h.b16 %v3174
        %v3998 = vunpack.c.l.b16 %v3175
        %v3999 = vunpack.c.h.b16 %v3175
        %v4000 = vunpack.c.l.b16 %v3176
        %v4001 = vunpack.c.h.b16 %v3176
        %v4002 = vunpack.c.l.b16 %v3177
        %v4003 = vunpack.c.h.b16 %v3177
        %v4004 = vunpack.c.l.b16 %v3178
        %v4005 = vunpack.c.h.b16 %v3178
        %v4006 = vunpack.c.l.b16 %v3179
        %v4007 = vunpack.c.h.b16 %v3179
        %v4008 = vunpack.c.l.b16 %v3180
        %v4009 = vunpack.c.h.b16 %v3180
        %v4010 = vunpack.c.l.b16 %v3181
        %v4011 = vunpack.c.h.b16 %v3181
        %v4012 = vunpack.c.l.b16 %v3182
        %v4013 = vunpack.c.h.b16 %v3182
        %v4014 = vunpack.c.l.b16 %v3183
        %v4015 = vunpack.c.h.b16 %v3183
        %v4016 = vunpack.c.l.b16 %v3184
        %v4017 = vunpack.c.h.b16 %v3184
        %v4018 = vunpack.c.l.b16 %v3185
        %v4019 = vunpack.c.h.b16 %v3185
        %v4020 = vunpack.c.l.b16 %v3186
        %v4021 = vunpack.c.h.b16 %v3186
        %v4022 = vunpack.c.l.b16 %v3187
        %v4023 = vunpack.c.h.b16 %v3187
        %v4024 = vunpack.c.l.b16 %v3188
        %v4025 = vunpack.c.h.b16 %v3188
        %v4026 = vunpack.c.l.b16 %v3189
        %v4027 = vunpack.c.h.b16 %v3189
        %v4028 = vunpack.c.l.b16 %v3190
        %v4029 = vunpack.c.h.b16 %v3190
        %v4030 = vunpack.c.l.b16 %v3191
        %v4031 = vunpack.c.h.b16 %v3191
        %v4032 = vunpack.c.l.b16 %v3192
        %v4033 = vunpack.c.h.b16 %v3192
        %v4034 = vunpack.c.l.b16 %v3193
        %v4035 = vunpack.c.h.b16 %v3193
        %v4036 = vunpack.c.l.b16 %v3194
        %v4037 = vunpack.c.h.b16 %v3194
        %v4038 = vunpack.c.l.b16 %v3195
        %v4039 = vunpack.c.h.b16 %v3195
        %v4040 = vunpack.c.l.b16 %v3196
        %v4041 = vunpack.c.h.b16 %v3196
        %v4042 = vunpack.c.l.b16 %v3197
        %v4043 = vunpack.c.h.b16 %v3197
        %v4044 = vunpack.c.l.b16 %v3198
        %v4045 = vunpack.c.h.b16 %v3198
        %v4046 = vunpack.c.l.b16 %v3199
        %v4047 = vunpack.c.h.b16 %v3199
        %v4048 = vunpack.c.l.b16 %v3200
        %v4049 = vunpack.c.h.b16 %v3200
        %v4050 = vunpack.c.l.b16 %v3201
        %v4051 = vunpack.c.h.b16 %v3201
        %v4052 = vunpack.c.l.b16 %v3202
        %v4053 = vunpack.c.h.b16 %v3202
        %v4054 = vunpack.c.l.b16 %v3203
        %v4055 = vunpack.c.h.b16 %v3203
        %v4056 = vunpack.c.l.b16 %v3204
        %v4057 = vunpack.c.h.b16 %v3204
        %v4058 = vunpack.c.l.b16 %v3205
        %v4059 = vunpack.c.h.b16 %v3205
        %v4060 = vunpack.c.l.b16 %v3206
        %v4061 = vunpack.c.h.b16 %v3206
        %v4062 = vunpack.c.l.b16 %v3207
        %v4063 = vunpack.c.h.b16 %v3207
        %v4064 = vunpack.c.l.b16 %v3208
        %v4065 = vunpack.c.h.b16 %v3208
        %v4066 = vunpack.c.l.b16 %v3209
        %v4067 = vunpack.c.h.b16 %v3209
        %v4068 = vunpack.c.l.b16 %v3210
        %v4069 = vunpack.c.h.b16 %v3210
        %v4070 = vunpack.c.l.b16 %v3211
        %v4071 = vunpack.c.h.b16 %v3211
        %v4072 = vunpack.c.l.b16 %v3212
        %v4073 = vunpack.c.h.b16 %v3212
        %v4074 = vunpack.c.l.b16 %v3213
        %v4075 = vunpack.c.h.b16 %v3213
        %v4076 = vunpack.c.l.b16 %v3214
        %v4077 = vunpack.c.h.b16 %v3214
        %v4078 = vunpack.c.l.b16 %v3215
        %v4079 = vunpack.c.h.b16 %v3215
        %v4080 = vunpack.c.l.b16 %v3216
        %v4081 = vunpack.c.h.b16 %v3216
        %v4082 = vunpack.c.l.b16 %v3217
        %v4083 = vunpack.c.h.b16 %v3217
        %v4084 = vunpack.c.l.b16 %v3218
        %v4085 = vunpack.c.h.b16 %v3218
        %v4086 = vunpack.c.l.b16 %v3219
        %v4087 = vunpack.c.h.b16 %v3219
        %v4088 = vunpack.c.l.b16 %v3220
        %v4089 = vunpack.c.h.b16 %v3220
        %v4090 = vunpack.c.l.b16 %v3221
        %v4091 = vunpack.c.h.b16 %v3221
        %v4092 = vunpack.c.l.b16 %v3222
        %v4093 = vunpack.c.h.b16 %v3222
        %v4094 = vunpack.c.l.b16 %v3223
        %v4095 = vunpack.c.h.b16 %v3223
        %v4096 = vunpack.c.l.b16 %v3224
        %v4097 = vunpack.c.h.b16 %v3224
        %v4098 = vunpack.c.l.b16 %v3225
        %v4099 = vunpack.c.h.b16 %v3225
        %v4100 = vunpack.c.l.b16 %v3226
        %v4101 = vunpack.c.h.b16 %v3226
        %v4102 = vunpack.c.l.b16 %v3227
        %v4103 = vunpack.c.h.b16 %v3227
        %v4104 = vunpack.c.l.b16 %v3228
        %v4105 = vunpack.c.h.b16 %v3228
        %v4106 = vunpack.c.l.b16 %v3229
        %v4107 = vunpack.c.h.b16 %v3229
        %v4108 = vunpack.c.l.b16 %v3230
        %v4109 = vunpack.c.h.b16 %v3230
        %v4110 = vunpack.c.l.b16 %v3231
        %v4111 = vunpack.c.h.b16 %v3231
        %v4112 = vunpack.c.l.b16 %v3232
        %v4113 = vunpack.c.h.b16 %v3232
        %v4114 = vunpack.c.l.b16 %v3233
        %v4115 = vunpack.c.h.b16 %v3233
        %v4116 = vunpack.c.l.b16 %v3234
        %v4117 = vunpack.c.h.b16 %v3234
        %v4118 = vunpack.c.l.b16 %v3235
        %v4119 = vunpack.c.h.b16 %v3235
        %v4120 = vunpack.c.l.b16 %v3236
        %v4121 = vunpack.c.h.b16 %v3236
        %v4122 = vunpack.c.l.b16 %v3237
        %v4123 = vunpack.c.h.b16 %v3237
        %v4124 = vunpack.c.l.b16 %v3238
        %v4125 = vunpack.c.h.b16 %v3238
        %v4126 = vunpack.c.l.b16 %v3239
        %v4127 = vunpack.c.h.b16 %v3239
        %v4128 = vunpack.c.l.b16 %v3240
        %v4129 = vunpack.c.h.b16 %v3240
        %v4130 = vunpack.c.l.b16 %v3241
        %v4131 = vunpack.c.h.b16 %v3241
        %v4132 = vunpack.c.l.b16 %v3242
        %v4133 = vunpack.c.h.b16 %v3242
        %v4134 = vunpack.c.l.b16 %v3243
        %v4135 = vunpack.c.h.b16 %v3243
        %v4136 = vunpack.c.l.b16 %v3244
        %v4137 = vunpack.c.h.b16 %v3244
        %v4138 = vunpack.c.l.b16 %v3245
        %v4139 = vunpack.c.h.b16 %v3245
        %v4140 = vunpack.c.l.b16 %v3246
        %v4141 = vunpack.c.h.b16 %v3246
        %v4142 = vunpack.c.l.b16 %v3247
        %v4143 = vunpack.c.h.b16 %v3247
        %v4144 = vunpack.c.l.b16 %v3248
        %v4145 = vunpack.c.h.b16 %v3248
        %v4146 = vunpack.c.l.b16 %v3249
        %v4147 = vunpack.c.h.b16 %v3249
        %v4148 = vunpack.c.l.b16 %v3250
        %v4149 = vunpack.c.h.b16 %v3250
        %v4150 = vunpack.c.l.b16 %v3251
        %v4151 = vunpack.c.h.b16 %v3251
        %v4152 = vunpack.c.l.b16 %v3252
        %v4153 = vunpack.c.h.b16 %v3252
        %v4154 = vunpack.c.l.b16 %v3253
        %v4155 = vunpack.c.h.b16 %v3253
        %v4156 = vunpack.c.l.b16 %v3254
        %v4157 = vunpack.c.h.b16 %v3254
        %v4158 = vunpack.c.l.b16 %v3255
        %v4159 = vunpack.c.h.b16 %v3255
        %v4160 = vunpack.c.l.b16 %v3256
        %v4161 = vunpack.c.h.b16 %v3256
        %v4162 = vunpack.c.l.b16 %v3257
        %v4163 = vunpack.c.h.b16 %v3257
        %v4164 = vunpack.c.l.b16 %v3258
        %v4165 = vunpack.c.h.b16 %v3258
        %v4166 = vunpack.c.l.b16 %v3259
        %v4167 = vunpack.c.h.b16 %v3259
        %v4168 = vunpack.c.l.b16 %v3260
        %v4169 = vunpack.c.h.b16 %v3260
        %v4170 = vunpack.c.l.b16 %v3261
        %v4171 = vunpack.c.h.b16 %v3261
        %v4172 = vunpack.c.l.b16 %v3262
        %v4173 = vunpack.c.h.b16 %v3262
        %v4174 = vunpack.c.l.b16 %v3263
        %v4175 = vunpack.c.h.b16 %v3263
        %v4176 = vunpack.c.l.b16 %v3264
        %v4177 = vunpack.c.h.b16 %v3264
        %v4178 = vunpack.c.l.b16 %v3265
        %v4179 = vunpack.c.h.b16 %v3265
        %v4180 = vunpack.c.l.b16 %v3266
        %v4181 = vunpack.c.h.b16 %v3266
        %v4182 = vunpack.c.l.b16 %v3267
        %v4183 = vunpack.c.h.b16 %v3267
        %v4184 = vunpack.c.l.b16 %v3268
        %v4185 = vunpack.c.h.b16 %v3268
        %v4186 = vunpack.c.l.b16 %v3269
        %v4187 = vunpack.c.h.b16 %v3269
        %v4188 = vunpack.c.l.b16 %v3270
        %v4189 = vunpack.c.h.b16 %v3270
        %v4190 = vunpack.c.l.b16 %v3271
        %v4191 = vunpack.c.h.b16 %v3271
        %v4192 = vunpack.c.l.b16 %v3272
        %v4193 = vunpack.c.h.b16 %v3272
        %v4194 = vunpack.c.l.b16 %v3273
        %v4195 = vunpack.c.h.b16 %v3273
        %v4196 = vunpack.c.l.b16 %v3274
        %v4197 = vunpack.c.h.b16 %v3274
        %v4198 = vunpack.c.l.b16 %v3275
        %v4199 = vunpack.c.h.b16 %v3275
        %v4200 = vunpack.c.l.b16 %v3276
        %v4201 = vunpack.c.h.b16 %v3276
        %v4202 = vunpack.c.l.b16 %v3277
        %v4203 = vunpack.c.h.b16 %v3277
        %v4204 = vunpack.c.l.b16 %v3278
        %v4205 = vunpack.c.h.b16 %v3278
        %v4206 = vunpack.c.l.b16 %v3279
        %v4207 = vunpack.c.h.b16 %v3279
        %v4208 = vunpack.c.l.b16 %v3280
        %v4209 = vunpack.c.h.b16 %v3280
        %v4210 = vunpack.c.l.b16 %v3281
        %v4211 = vunpack.c.h.b16 %v3281
        %v4212 = vunpack.c.l.b16 %v3282
        %v4213 = vunpack.c.h.b16 %v3282
        %v4214 = vunpack.c.l.b16 %v3283
        %v4215 = vunpack.c.h.b16 %v3283
        %v4216 = vunpack.c.l.b16 %v3284
        %v4217 = vunpack.c.h.b16 %v3284
        %v4218 = vunpack.c.l.b16 %v3285
        %v4219 = vunpack.c.h.b16 %v3285
        %v4220 = vunpack.c.l.b16 %v3286
        %v4221 = vunpack.c.h.b16 %v3286
        %v4222 = vunpack.c.l.b16 %v3287
        %v4223 = vunpack.c.h.b16 %v3287
        %v4224 = vunpack.c.l.b16 %v3288
        %v4225 = vunpack.c.h.b16 %v3288
        %v4226 = vunpack.c.l.b16 %v3289
        %v4227 = vunpack.c.h.b16 %v3289
        %v4228 = vunpack.c.l.b16 %v3290
        %v4229 = vunpack.c.h.b16 %v3290
        %v4230 = vunpack.c.l.b16 %v3291
        %v4231 = vunpack.c.h.b16 %v3291
        %v4232 = vunpack.c.l.b16 %v3292
        %v4233 = vunpack.c.h.b16 %v3292
        %v4234 = vunpack.c.l.b16 %v3293
        %v4235 = vunpack.c.h.b16 %v3293
        %v4236 = vunpack.c.l.b16 %v3294
        %v4237 = vunpack.c.h.b16 %v3294
        %v4238 = vunpack.c.l.b16 %v3295
        %v4239 = vunpack.c.h.b16 %v3295
        %v4240 = vunpack.c.l.b16 %v3296
        %v4241 = vunpack.c.h.b16 %v3296
        %v4242 = vunpack.c.l.b16 %v3297
        %v4243 = vunpack.c.h.b16 %v3297
        %v4244 = vunpack.c.l.b16 %v3298
        %v4245 = vunpack.c.h.b16 %v3298
        %v4246 = vunpack.c.l.b16 %v3299
        %v4247 = vunpack.c.h.b16 %v3299
        %v4248 = vunpack.c.l.b16 %v3300
        %v4249 = vunpack.c.h.b16 %v3300
        %v4250 = vunpack.c.l.b16 %v3301
        %v4251 = vunpack.c.h.b16 %v3301
        %v4252 = vunpack.c.l.b16 %v3302
        %v4253 = vunpack.c.h.b16 %v3302
        %v4254 = vunpack.c.l.b16 %v3303
        %v4255 = vunpack.c.h.b16 %v3303
        %v4256 = vunpack.c.l.b16 %v3304
        %v4257 = vunpack.c.h.b16 %v3304
        %v4258 = vunpack.c.l.b16 %v3305
        %v4259 = vunpack.c.h.b16 %v3305
        %v4260 = vunpack.c.l.b16 %v3306
        %v4261 = vunpack.c.h.b16 %v3306
        %v4262 = vunpack.c.l.b16 %v3307
        %v4263 = vunpack.c.h.b16 %v3307
        %v4264 = vunpack.c.l.b16 %v3308
        %v4265 = vunpack.c.h.b16 %v3308
        %v4266 = vunpack.c.l.b16 %v3309
        %v4267 = vunpack.c.h.b16 %v3309
        %v4268 = vunpack.c.l.b16 %v3310
        %v4269 = vunpack.c.h.b16 %v3310
        %v4270 = vunpack.c.l.b16 %v3311
        %v4271 = vunpack.c.h.b16 %v3311
        %v4272 = vunpack.c.l.b16 %v3312
        %v4273 = vunpack.c.h.b16 %v3312
        %v4274 = vunpack.c.l.b16 %v3313
        %v4275 = vunpack.c.h.b16 %v3313
        %v4276 = vunpack.c.l.b16 %v3314
        %v4277 = vunpack.c.h.b16 %v3314
        %v4278 = vunpack.c.l.b16 %v3315
        %v4279 = vunpack.c.h.b16 %v3315
        %v4280 = vunpack.c.l.b16 %v3316
        %v4281 = vunpack.c.h.b16 %v3316
        %v4282 = vunpack.c.l.b16 %v3317
        %v4283 = vunpack.c.h.b16 %v3317
        %v4284 = vunpack.c.l.b16 %v3318
        %v4285 = vunpack.c.h.b16 %v3318
        %v4286 = vunpack.c.l.b16 %v3319
        %v4287 = vunpack.c.h.b16 %v3319
        %v4288 = vunpack.c.l.b16 %v3320
        %v4289 = vunpack.c.h.b16 %v3320
        %v4290 = vunpack.c.l.b16 %v3321
        %v4291 = vunpack.c.h.b16 %v3321
        %v4292 = vunpack.c.l.b16 %v3322
        %v4293 = vunpack.c.h.b16 %v3322
        %v4294 = vunpack.c.l.b16 %v3323
        %v4295 = vunpack.c.h.b16 %v3323
        %v4296 = vunpack.c.l.b16 %v3324
        %v4297 = vunpack.c.h.b16 %v3324
        %v4298 = vunpack.c.l.b16 %v3325
        %v4299 = vunpack.c.h.b16 %v3325
        %v4300 = vunpack.c.l.b16 %v3326
        %v4301 = vunpack.c.h.b16 %v3326
        %v4302 = vunpack.c.l.b16 %v3327
        %v4303 = vunpack.c.h.b16 %v3327
        %v4304 = vunpack.c.l.b16 %v3328
        %v4305 = vunpack.c.h.b16 %v3328
        %v4306 = vunpack.c.l.b16 %v3329
        %v4307 = vunpack.c.h.b16 %v3329
        %v4308 = vunpack.c.l.b16 %v3330
        %v4309 = vunpack.c.h.b16 %v3330
        %v4310 = vunpack.c.l.b16 %v3331
        %v4311 = vunpack.c.h.b16 %v3331
        %v4312 = vunpack.c.l.b16 %v3332
        %v4313 = vunpack.c.h.b16 %v3332
        %v4314 = vunpack.c.l.b16 %v3333
        %v4315 = vunpack.c.h.b16 %v3333
        %v4316 = vunpack.c.l.b16 %v3334
        %v4317 = vunpack.c.h.b16 %v3334
        %v4318 = vunpack.c.l.b16 %v3335
        %v4319 = vunpack.c.h.b16 %v3335
        %v4320 = vunpack.c.l.b16 %v3336
        %v4321 = vunpack.c.h.b16 %v3336
        %v4322 = vunpack.c.l.b16 %v3337
        %v4323 = vunpack.c.h.b16 %v3337
        %v4324 = vunpack.c.l.b16 %v3338
        %v4325 = vunpack.c.h.b16 %v3338
        %v4326 = vunpack.c.l.b16 %v3339
        %v4327 = vunpack.c.h.b16 %v3339
        %v4328 = vunpack.c.l.b16 %v3340
        %v4329 = vunpack.c.h.b16 %v3340
        %v4330 = vunpack.c.l.b16 %v3341
        %v4331 = vunpack.c.h.b16 %v3341
        %v4332 = vunpack.c.l.b16 %v3342
        %v4333 = vunpack.c.h.b16 %v3342
        %v4334 = vunpack.c.l.b16 %v3343
        %v4335 = vunpack.c.h.b16 %v3343
        %v4336 = vunpack.c.l.b16 %v3344
        %v4337 = vunpack.c.h.b16 %v3344
        %v4338 = vunpack.c.l.b16 %v3345
        %v4339 = vunpack.c.h.b16 %v3345
        %v4340 = vunpack.c.l.b16 %v3346
        %v4341 = vunpack.c.h.b16 %v3346
        %v4342 = vunpack.c.l.b16 %v3347
        %v4343 = vunpack.c.h.b16 %v3347
        %v4344 = vunpack.c.l.b16 %v3348
        %v4345 = vunpack.c.h.b16 %v3348
        %v4346 = vunpack.c.l.b16 %v3349
        %v4347 = vunpack.c.h.b16 %v3349
        %v4348 = vunpack.c.l.b16 %v3350
        %v4349 = vunpack.c.h.b16 %v3350
        %v4350 = vunpack.c.l.b16 %v3351
        %v4351 = vunpack.c.h.b16 %v3351
        %v4352 = vunpack.c.l.b16 %v3352
        %v4353 = vunpack.c.h.b16 %v3352
        %v4354 = vunpack.c.l.b16 %v3353
        %v4355 = vunpack.c.h.b16 %v3353
        %v4356 = vunpack.c.l.b16 %v3354
        %v4357 = vunpack.c.h.b16 %v3354
        %v4358 = vunpack.c.l.b16 %v3355
        %v4359 = vunpack.c.h.b16 %v3355
        %v4360 = vunpack.c.l.b16 %v3356
        %v4361 = vunpack.c.h.b16 %v3356
        %v4362 = vunpack.c.l.b16 %v3357
        %v4363 = vunpack.c.h.b16 %v3357
        %v4364 = vunpack.c.l.b16 %v3358
        %v4365 = vunpack.c.h.b16 %v3358
        %v4366 = vunpack.c.l.b16 %v3359
        %v4367 = vunpack.c.h.b16 %v3359
        %v4368 = vunpack.c.l.b16 %v3360
        %v4369 = vunpack.c.h.b16 %v3360
        %v4370 = vunpack.c.l.b16 %v3361
        %v4371 = vunpack.c.h.b16 %v3361
        %v4372 = vunpack.c.l.b16 %v3362
        %v4373 = vunpack.c.h.b16 %v3362
        %v4374 = vunpack.c.l.b16 %v3363
        %v4375 = vunpack.c.h.b16 %v3363
        %v4376 = vunpack.c.l.b16 %v3364
        %v4377 = vunpack.c.h.b16 %v3364
        %v4378 = vunpack.c.l.b16 %v3365
        %v4379 = vunpack.c.h.b16 %v3365
        %v4380 = vunpack.c.l.b16 %v3366
        %v4381 = vunpack.c.h.b16 %v3366
        %v4382 = vunpack.c.l.b16 %v3367
        %v4383 = vunpack.c.h.b16 %v3367
        %v4384 = vunpack.c.l.b16 %v3368
        %v4385 = vunpack.c.h.b16 %v3368
        %v4386 = vunpack.c.l.b16 %v3369
        %v4387 = vunpack.c.h.b16 %v3369
        %v4388 = vunpack.c.l.b16 %v3370
        %v4389 = vunpack.c.h.b16 %v3370
        %v4390 = vunpack.c.l.b16 %v3371
        %v4391 = vunpack.c.h.b16 %v3371
        %v4392 = vunpack.c.l.b16 %v3372
        %v4393 = vunpack.c.h.b16 %v3372
        %v4394 = vunpack.c.l.b16 %v3373
        %v4395 = vunpack.c.h.b16 %v3373
        %v4396 = vunpack.c.l.b16 %v3374
        %v4397 = vunpack.c.h.b16 %v3374
        %v4398 = vunpack.c.l.b16 %v3375
        %v4399 = vunpack.c.h.b16 %v3375
        %v4400 = vunpack.c.l.b16 %v3376
        %v4401 = vunpack.c.h.b16 %v3376
        %v4402 = vunpack.c.l.b16 %v3377
        %v4403 = vunpack.c.h.b16 %v3377
        %v4404 = vunpack.c.l.b16 %v3378
        %v4405 = vunpack.c.h.b16 %v3378
        %v4406 = vunpack.c.l.b16 %v3379
        %v4407 = vunpack.c.h.b16 %v3379
        %v4408 = vunpack.c.l.b16 %v3380
        %v4409 = vunpack.c.h.b16 %v3380
        %v4410 = vunpack.c.l.b16 %v3381
        %v4411 = vunpack.c.h.b16 %v3381
        %v4412 = vunpack.c.l.b16 %v3382
        %v4413 = vunpack.c.h.b16 %v3382
        %v4414 = vunpack.c.l.b16 %v3383
        %v4415 = vunpack.c.h.b16 %v3383
        %v4416 = vunpack.c.l.b16 %v3384
        %v4417 = vunpack.c.h.b16 %v3384
        %v4418 = vunpack.c.l.b16 %v3385
        %v4419 = vunpack.c.h.b16 %v3385
        %v4420 = vunpack.c.l.b16 %v3386
        %v4421 = vunpack.c.h.b16 %v3386
        %v4422 = vunpack.c.l.b16 %v3387
        %v4423 = vunpack.c.h.b16 %v3387
        %v4424 = vunpack.c.l.b16 %v3388
        %v4425 = vunpack.c.h.b16 %v3388
        %v4426 = vunpack.c.l.b16 %v3389
        %v4427 = vunpack.c.h.b16 %v3389
        %v4428 = vunpack.c.l.b16 %v3390
        %v4429 = vunpack.c.h.b16 %v3390
        %v4430 = vunpack.c.l.b16 %v3391
        %v4431 = vunpack.c.h.b16 %v3391
        %v4432 = vunpack.c.l.b16 %v3392
        %v4433 = vunpack.c.h.b16 %v3392
        %v4434 = vunpack.c.l.b16 %v3393
        %v4435 = vunpack.c.h.b16 %v3393
        %v4436 = vunpack.c.l.b16 %v3394
        %v4437 = vunpack.c.h.b16 %v3394
        %v4438 = vunpack.c.l.b16 %v3395
        %v4439 = vunpack.c.h.b16 %v3395
        %v4440 = vunpack.c.l.b16 %v3396
        %v4441 = vunpack.c.h.b16 %v3396
        %v4442 = vunpack.c.l.b16 %v3397
        %v4443 = vunpack.c.h.b16 %v3397
        %v4444 = vunpack.c.l.b16 %v3398
        %v4445 = vunpack.c.h.b16 %v3398
        %v4446 = vunpack.c.l.b16 %v3399
        %v4447 = vunpack.c.h.b16 %v3399
        %v4448 = vunpack.c.l.b16 %v3400
        %v4449 = vunpack.c.h.b16 %v3400
        %v4450 = vunpack.c.l.b16 %v3401
        %v4451 = vunpack.c.h.b16 %v3401
        %v4452 = vunpack.c.l.b16 %v3402
        %v4453 = vunpack.c.h.b16 %v3402
        %v4454 = vunpack.c.l.b16 %v3403
        %v4455 = vunpack.c.h.b16 %v3403
        %v4456 = vunpack.c.l.b16 %v3404
        %v4457 = vunpack.c.h.b16 %v3404
        %v4458 = vunpack.c.l.b16 %v3405
        %v4459 = vunpack.c.h.b16 %v3405
        %v4460 = vunpack.c.l.b16 %v3406
        %v4461 = vunpack.c.h.b16 %v3406
        %v4462 = vunpack.c.l.b16 %v3407
        %v4463 = vunpack.c.h.b16 %v3407
        %v4464 = vunpack.c.l.b16 %v3408
        %v4465 = vunpack.c.h.b16 %v3408
        %v4466 = vunpack.c.l.b16 %v3409
        %v4467 = vunpack.c.h.b16 %v3409
        %v4468 = vunpack.c.l.b16 %v3410
        %v4469 = vunpack.c.h.b16 %v3410
        %v4470 = vunpack.c.l.b16 %v3411
        %v4471 = vunpack.c.h.b16 %v3411
        %v4472 = vunpack.c.l.b16 %v3412
        %v4473 = vunpack.c.h.b16 %v3412
        %v4474 = vunpack.c.l.b16 %v3413
        %v4475 = vunpack.c.h.b16 %v3413
        %v4476 = vunpack.c.l.b16 %v3414
        %v4477 = vunpack.c.h.b16 %v3414
        %v4478 = vunpack.c.l.b16 %v3415
        %v4479 = vunpack.c.h.b16 %v3415
        %v4480 = vunpack.c.l.b16 %v3416
        %v4481 = vunpack.c.h.b16 %v3416
        %v4482 = vunpack.c.l.b16 %v3417
        %v4483 = vunpack.c.h.b16 %v3417
        %v4484 = vunpack.c.l.b16 %v3418
        %v4485 = vunpack.c.h.b16 %v3418
        %v4486 = vunpack.c.l.b16 %v3419
        %v4487 = vunpack.c.h.b16 %v3419
        %v4488 = vunpack.c.l.b16 %v3420
        %v4489 = vunpack.c.h.b16 %v3420
        %v4490 = vunpack.c.l.b16 %v3421
        %v4491 = vunpack.c.h.b16 %v3421
        %v4492 = vunpack.c.l.b16 %v3422
        %v4493 = vunpack.c.h.b16 %v3422
        %v4494 = vunpack.c.l.b16 %v3423
        %v4495 = vunpack.c.h.b16 %v3423
        %v4496 = vunpack.c.l.b16 %v3424
        %v4497 = vunpack.c.h.b16 %v3424
        %v4498 = vunpack.c.l.b16 %v3425
        %v4499 = vunpack.c.h.b16 %v3425
        %v4500 = vunpack.c.l.b16 %v3426
        %v4501 = vunpack.c.h.b16 %v3426
        %v4502 = vunpack.c.l.b16 %v3427
        %v4503 = vunpack.c.h.b16 %v3427
        %v4504 = vunpack.c.l.b16 %v3428
        %v4505 = vunpack.c.h.b16 %v3428
        %v4506 = vunpack.c.l.b16 %v3429
        %v4507 = vunpack.c.h.b16 %v3429
        %v4508 = vunpack.c.l.b16 %v3430
        %v4509 = vunpack.c.h.b16 %v3430
        %v4510 = vunpack.c.l.b16 %v3431
        %v4511 = vunpack.c.h.b16 %v3431
        %v4512 = vunpack.c.l.b16 %v3432
        %v4513 = vunpack.c.h.b16 %v3432
        %v4514 = vunpack.c.l.b16 %v3433
        %v4515 = vunpack.c.h.b16 %v3433
        %v4516 = vunpack.c.l.b16 %v3434
        %v4517 = vunpack.c.h.b16 %v3434
        %v4518 = vunpack.c.l.b16 %v3435
        %v4519 = vunpack.c.h.b16 %v3435
        %v4520 = vunpack.c.l.b16 %v3436
        %v4521 = vunpack.c.h.b16 %v3436
        %v4522 = vunpack.c.l.b16 %v3437
        %v4523 = vunpack.c.h.b16 %v3437
        %v4524 = vunpack.c.l.b16 %v3438
        %v4525 = vunpack.c.h.b16 %v3438
        %v4526 = vunpack.c.l.b16 %v3439
        %v4527 = vunpack.c.h.b16 %v3439
        %v4528 = vunpack.c.l.b16 %v3440
        %v4529 = vunpack.c.h.b16 %v3440
        %v4530 = vunpack.c.l.b16 %v3441
        %v4531 = vunpack.c.h.b16 %v3441
        %v4532 = vunpack.c.l.b16 %v3442
        %v4533 = vunpack.c.h.b16 %v3442
        %v4534 = vunpack.c.l.b16 %v3443
        %v4535 = vunpack.c.h.b16 %v3443
        %v4536 = vunpack.c.l.b16 %v3444
        %v4537 = vunpack.c.h.b16 %v3444
        %v4538 = vunpack.c.l.b16 %v3445
        %v4539 = vunpack.c.h.b16 %v3445
        %v4540 = vunpack.c.l.b16 %v3446
        %v4541 = vunpack.c.h.b16 %v3446
        %v4542 = vunpack.c.l.b16 %v3447
        %v4543 = vunpack.c.h.b16 %v3447
        %v4544 = vunpack.c.l.b16 %v3448
        %v4545 = vunpack.c.h.b16 %v3448
        %v4546 = vunpack.c.l.b16 %v3449
        %v4547 = vunpack.c.h.b16 %v3449
        %v4548 = vunpack.c.l.b16 %v3450
        %v4549 = vunpack.c.h.b16 %v3450
        %v4550 = vunpack.c.l.b16 %v3451
        %v4551 = vunpack.c.h.b16 %v3451
        %v4552 = vunpack.c.l.b16 %v3452
        %v4553 = vunpack.c.h.b16 %v3452
        %v4554 = vunpack.c.l.b16 %v3453
        %v4555 = vunpack.c.h.b16 %v3453
        %v4556 = vunpack.c.l.b16 %v3454
        %v4557 = vunpack.c.h.b16 %v3454
        %v4558 = vunpack.c.l.b16 %v3455
        %v4559 = vunpack.c.h.b16 %v3455
        %v4560 = vunpack.c.l.b16 %v3456
        %v4561 = vunpack.c.h.b16 %v3456
        %v4562 = vunpack.c.l.b16 %v3457
        %v4563 = vunpack.c.h.b16 %v3457
        %v4564 = vunpack.c.l.b16 %v3458
        %v4565 = vunpack.c.h.b16 %v3458
        %v4566 = vunpack.c.l.b16 %v3459
        %v4567 = vunpack.c.h.b16 %v3459
        %v4568 = vunpack.c.l.b16 %v3460
        %v4569 = vunpack.c.h.b16 %v3460
        %v4570 = vunpack.c.l.b16 %v3461
        %v4571 = vunpack.c.h.b16 %v3461
        %v4572 = vunpack.c.l.b16 %v3462
        %v4573 = vunpack.c.h.b16 %v3462
        %v4574 = vunpack.c.l.b16 %v3463
        %v4575 = vunpack.c.h.b16 %v3463
        %v4576 = vunpack.c.l.b16 %v3464
        %v4577 = vunpack.c.h.b16 %v3464
        %v4578 = vunpack.c.l.b16 %v3465
        %v4579 = vunpack.c.h.b16 %v3465
        %v4580 = vunpack.c.l.b16 %v3466
        %v4581 = vunpack.c.h.b16 %v3466
        %v4582 = vunpack.c.l.b16 %v3467
        %v4583 = vunpack.c.h.b16 %v3467
        %v4584 = vunpack.c.l.b16 %v3468
        %v4585 = vunpack.c.h.b16 %v3468
        %v4586 = vpack.c.b16 %v3948, %v3946
        %v4587 = vpack.c.b16 %v3949, %v3947
        %v4588 = vpack.c.b16 %v3952, %v3950
        %v4589 = vpack.c.b16 %v3953, %v3951
        %v4590 = vpack.c.b16 %v3956, %v3954
        %v4591 = vpack.c.b16 %v3957, %v3955
        %v4592 = vpack.c.b16 %v3960, %v3958
        %v4593 = vpack.c.b16 %v3961, %v3959
        %v4594 = vpack.c.b16 %v3964, %v3962
        %v4595 = vpack.c.b16 %v3965, %v3963
        %v4596 = vpack.c.b16 %v3968, %v3966
        %v4597 = vpack.c.b16 %v3969, %v3967
        %v4598 = vpack.c.b16 %v3972, %v3970
        %v4599 = vpack.c.b16 %v3973, %v3971
        %v4600 = vpack.c.b16 %v3976, %v3974
        %v4601 = vpack.c.b16 %v3977, %v3975
        %v4602 = vpack.c.b16 %v3980, %v3978
        %v4603 = vpack.c.b16 %v3981, %v3979
        %v4604 = vpack.c.b16 %v3984, %v3982
        %v4605 = vpack.c.b16 %v3985, %v3983
        %v4606 = vpack.c.b16 %v3988, %v3986
        %v4607 = vpack.c.b16 %v3989, %v3987
        %v4608 = vpack.c.b16 %v3992, %v3990
        %v4609 = vpack.c.b16 %v3993, %v3991
        %v4610 = vpack.c.b16 %v3996, %v3994
        %v4611 = vpack.c.b16 %v3997, %v3995
        %v4612 = vpack.c.b16 %v4000, %v3998
        %v4613 = vpack.c.b16 %v4001, %v3999
        %v4614 = vpack.c.b16 %v4004, %v4002
        %v4615 = vpack.c.b16 %v4005, %v4003
        %v4616 = vpack.c.b16 %v4008, %v4006
        %v4617 = vpack.c.b16 %v4009, %v4007
        %v4618 = vpack.c.b16 %v4012, %v4010
        %v4619 = vpack.c.b16 %v4013, %v4011
        %v4620 = vpack.c.b16 %v4016, %v4014
        %v4621 = vpack.c.b16 %v4017, %v4015
        %v4622 = vpack.c.b16 %v4020, %v4018
        %v4623 = vpack.c.b16 %v4021, %v4019
        %v4624 = vpack.c.b16 %v4024, %v4022
        %v4625 = vpack.c.b16 %v4025, %v4023
        %v4626 = vpack.c.b16 %v4028, %v4026
        %v4627 = vpack.c.b16 %v4029, %v4027
        %v4628 = vpack.c.b16 %v4032, %v4030
        %v4629 = vpack.c.b16 %v4033, %v4031
        %v4630 = vpack.c.b16 %v4036, %v4034
        %v4631 = vpack.c.b16 %v4037, %v4035
        %v4632 = vpack.c.b16 %v4040, %v4038
        %v4633 = vpack.c.b16 %v4041, %v4039
        %v4634 = vpack.c.b16 %v4044, %v4042
        %v4635 = vpack.c.b16 %v4045, %v4043
        %v4636 = vpack.c.b16 %v4048, %v4046
        %v4637 = vpack.c.b16 %v4049, %v4047
        %v4638 = vpack.c.b16 %v4052, %v4050
        %v4639 = vpack.c.b16 %v4053, %v4051
        %v4640 = vpack.c.b16 %v4056, %v4054
        %v4641 = vpack.c.b16 %v4057, %v4055
        %v4642 = vpack.c.b16 %v4060, %v4058
        %v4643 = vpack.c.b16 %v4061, %v4059
        %v4644 = vpack.c.b16 %v4064, %v4062
        %v4645 = vpack.c.b16 %v4065, %v4063
        %v4646 = vpack.c.b16 %v4068, %v4066
        %v4647 = vpack.c.b16 %v4069, %v4067
        %v4648 = vpack.c.b16 %v4072, %v4070
        %v4649 = vpack.c.b16 %v4073, %v4071
        %v4650 = vpack.c.b16 %v4076, %v4074
        %v4651 = vpack.c.b16 %v4077, %v4075
        %v4652 = vpack.c.b16 %v4080, %v4078
        %v4653 = vpack.c.b16 %v4081, %v4079
        %v4654 = vpack.c.b16 %v4084, %v4082
        %v4655 = vpack.c.b16 %v4085, %v4083
        %v4656 = vpack.c.b16 %v4088, %v4086
        %v4657 = vpack.c.b16 %v4089, %v4087
        %v4658 = vpack.c.b16 %v4092, %v4090
        %v4659 = vpack.c.b16 %v4093, %v4091
        %v4660 = vpack.c.b16 %v4096, %v4094
        %v4661 = vpack.c.b16 %v4097, %v4095
        %v4662 = vpack.c.b16 %v4100, %v4098
        %v4663 = vpack.c.b16 %v4101, %v4099
        %v4664 = vpack.c.b16 %v4104, %v4102
        %v4665 = vpack.c.b16 %v4105, %v4103
        %v4666 = vpack.c.b16 %v4108, %v4106
        %v4667 = vpack.c.b16 %v4109, %v4107
        %v4668 = vpack.c.b16 %v4112, %v4110
        %v4669 = vpack.c.b16 %v4113, %v4111
        %v4670 = vpack.c.b16 %v4116, %v4114
        %v4671 = vpack.c.b16 %v4117, %v4115
        %v4672 = vpack.c.b16 %v4120, %v4118
        %v4673 = vpack.c.b16 %v4121, %v4119
        %v4674 = vpack.c.b16 %v4124, %v4122
        %v4675 = vpack.c.b16 %v4125, %v4123
        %v4676 = vpack.c.b16 %v4128, %v4126
        %v4677 = vpack.c.b16 %v4129, %v4127
        %v4678 = vpack.c.b16 %v4132, %v4130
        %v4679 = vpack.c.b16 %v4133, %v4131
        %v4680 = vpack.c.b16 %v4136, %v4134
        %v4681 = vpack.c.b16 %v4137, %v4135
        %v4682 = vpack.c.b16 %v4140, %v4138
        %v4683 = vpack.c.b16 %v4141, %v4139
        %v4684 = vpack.c.b16 %v4144, %v4142
        %v4685 = vpack.c.b16 %v4145, %v4143
        %v4686 = vpack.c.b16 %v4148, %v4146
        %v4687 = vpack.c.b16 %v4149, %v4147
        %v4688 = vpack.c.b16 %v4152, %v4150
        %v4689 = vpack.c.b16 %v4153, %v4151
        %v4690 = vpack.c.b16 %v4156, %v4154
        %v4691 = vpack.c.b16 %v4157, %v4155
        %v4692 = vpack.c.b16 %v4160, %v4158
        %v4693 = vpack.c.b16 %v4161, %v4159
        %v4694 = vpack.c.b16 %v4164, %v4162
        %v4695 = vpack.c.b16 %v4165, %v4163
        %v4696 = vpack.c.b16 %v4168, %v4166
        %v4697 = vpack.c.b16 %v4169, %v4167
        %v4698 = vpack.c.b16 %v4172, %v4170
        %v4699 = vpack.c.b16 %v4173, %v4171
        %v4700 = vpack.c.b16 %v4176, %v4174
        %v4701 = vpack.c.b16 %v4177, %v4175
        %v4702 = vpack.c.b16 %v4180, %v4178
        %v4703 = vpack.c.b16 %v4181, %v4179
        %v4704 = vpack.c.b16 %v4184, %v4182
        %v4705 = vpack.c.b16 %v4185, %v4183
        %v4706 = vpack.c.b16 %v4188, %v4186
        %v4707 = vpack.c.b16 %v4189, %v4187
        %v4708 = vpack.c.b16 %v4192, %v4190
        %v4709 = vpack.c.b16 %v4193, %v4191
        %v4710 = vpack.c.b16 %v4196, %v4194
        %v4711 = vpack.c.b16 %v4197, %v4195
        %v4712 = vpack.c.b16 %v4200, %v4198
        %v4713 = vpack.c.b16 %v4201, %v4199
        %v4714 = vpack.c.b16 %v4204, %v4202
        %v4715 = vpack.c.b16 %v4205, %v4203
        %v4716 = vpack.c.b16 %v4208, %v4206
        %v4717 = vpack.c.b16 %v4209, %v4207
        %v4718 = vpack.c.b16 %v4212, %v4210
        %v4719 = vpack.c.b16 %v4213, %v4211
        %v4720 = vpack.c.b16 %v4216, %v4214
        %v4721 = vpack.c.b16 %v4217, %v4215
        %v4722 = vpack.c.b16 %v4220, %v4218
        %v4723 = vpack.c.b16 %v4221, %v4219
        %v4724 = vpack.c.b16 %v4224, %v4222
        %v4725 = vpack.c.b16 %v4225, %v4223
        %v4726 = vpack.c.b16 %v4228, %v4226
        %v4727 = vpack.c.b16 %v4229, %v4227
        %v4728 = vpack.c.b16 %v4232, %v4230
        %v4729 = vpack.c.b16 %v4233, %v4231
        %v4730 = vpack.c.b16 %v4236, %v4234
        %v4731 = vpack.c.b16 %v4237, %v4235
        %v4732 = vpack.c.b16 %v4240, %v4238
        %v4733 = vpack.c.b16 %v4241, %v4239
        %v4734 = vpack.c.b16 %v4244, %v4242
        %v4735 = vpack.c.b16 %v4245, %v4243
        %v4736 = vpack.c.b16 %v4248, %v4246
        %v4737 = vpack.c.b16 %v4249, %v4247
        %v4738 = vpack.c.b16 %v4252, %v4250
        %v4739 = vpack.c.b16 %v4253, %v4251
        %v4740 = vpack.c.b16 %v4256, %v4254
        %v4741 = vpack.c.b16 %v4257, %v4255
        %v4742 = vpack.c.b16 %v4260, %v4258
        %v4743 = vpack.c.b16 %v4261, %v4259
        %v4744 = vpack.c.b16 %v4264, %v4262
        %v4745 = vpack.c.b16 %v4265, %v4263
        %v4746 = vpack.c.b16 %v4268, %v4266
        %v4747 = vpack.c.b16 %v4269, %v4267
        %v4748 = vpack.c.b16 %v4272, %v4270
        %v4749 = vpack.c.b16 %v4273, %v4271
        %v4750 = vpack.c.b16 %v4276, %v4274
        %v4751 = vpack.c.b16 %v4277, %v4275
        %v4752 = vpack.c.b16 %v4280, %v4278
        %v4753 = vpack.c.b16 %v4281, %v4279
        %v4754 = vpack.c.b16 %v4284, %v4282
        %v4755 = vpack.c.b16 %v4285, %v4283
        %v4756 = vpack.c.b16 %v4288, %v4286
        %v4757 = vpack.c.b16 %v4289, %v4287
        %v4758 = vpack.c.b16 %v4292, %v4290
        %v4759 = vpack.c.b16 %v4293, %v4291
        %v4760 = vpack.c.b16 %v4296, %v4294
        %v4761 = vpack.c.b16 %v4297, %v4295
        %v4762 = vpack.c.b16 %v4300, %v4298
        %v4763 = vpack.c.b16 %v4301, %v4299
        %v4764 = vpack.c.b16 %v4304, %v4302
        %v4765 = vpack.c.b16 %v4305, %v4303
        %v4766 = vpack.c.b16 %v4308, %v4306
        %v4767 = vpack.c.b16 %v4309, %v4307
        %v4768 = vpack.c.b16 %v4312, %v4310
        %v4769 = vpack.c.b16 %v4313, %v4311
        %v4770 = vpack.c.b16 %v4316, %v4314
        %v4771 = vpack.c.b16 %v4317, %v4315
        %v4772 = vpack.c.b16 %v4320, %v4318
        %v4773 = vpack.c.b16 %v4321, %v4319
        %v4774 = vpack.c.b16 %v4324, %v4322
        %v4775 = vpack.c.b16 %v4325, %v4323
        %v4776 = vpack.c.b16 %v4328, %v4326
        %v4777 = vpack.c.b16 %v4329, %v4327
        %v4778 = vpack.c.b16 %v4332, %v4330
        %v4779 = vpack.c.b16 %v4333, %v4331
        %v4780 = vpack.c.b16 %v4336, %v4334
        %v4781 = vpack.c.b16 %v4337, %v4335
        %v4782 = vpack.c.b16 %v4340, %v4338
        %v4783 = vpack.c.b16 %v4341, %v4339
        %v4784 = vpack.c.b16 %v4344, %v4342
        %v4785 = vpack.c.b16 %v4345, %v4343
        %v4786 = vpack.c.b16 %v4348, %v4346
        %v4787 = vpack.c.b16 %v4349, %v4347
        %v4788 = vpack.c.b16 %v4352, %v4350
        %v4789 = vpack.c.b16 %v4353, %v4351
        %v4790 = vpack.c.b16 %v4356, %v4354
        %v4791 = vpack.c.b16 %v4357, %v4355
        %v4792 = vpack.c.b16 %v4360, %v4358
        %v4793 = vpack.c.b16 %v4361, %v4359
        %v4794 = vpack.c.b16 %v4364, %v4362
        %v4795 = vpack.c.b16 %v4365, %v4363
        %v4796 = vpack.c.b16 %v4368, %v4366
        %v4797 = vpack.c.b16 %v4369, %v4367
        %v4798 = vpack.c.b16 %v4372, %v4370
        %v4799 = vpack.c.b16 %v4373, %v4371
        %v4800 = vpack.c.b16 %v4376, %v4374
        %v4801 = vpack.c.b16 %v4377, %v4375
        %v4802 = vpack.c.b16 %v4380, %v4378
        %v4803 = vpack.c.b16 %v4381, %v4379
        %v4804 = vpack.c.b16 %v4384, %v4382
        %v4805 = vpack.c.b16 %v4385, %v4383
        %v4806 = vpack.c.b16 %v4388, %v4386
        %v4807 = vpack.c.b16 %v4389, %v4387
        %v4808 = vpack.c.b16 %v4392, %v4390
        %v4809 = vpack.c.b16 %v4393, %v4391
        %v4810 = vpack.c.b16 %v4396, %v4394
        %v4811 = vpack.c.b16 %v4397, %v4395
        %v4812 = vpack.c.b16 %v4400, %v4398
        %v4813 = vpack.c.b16 %v4401, %v4399
        %v4814 = vpack.c.b16 %v4404, %v4402
        %v4815 = vpack.c.b16 %v4405, %v4403
        %v4816 = vpack.c.b16 %v4408, %v4406
        %v4817 = vpack.c.b16 %v4409, %v4407
        %v4818 = vpack.c.b16 %v4412, %v4410
        %v4819 = vpack.c.b16 %v4413, %v4411
        %v4820 = vpack.c.b16 %v4416, %v4414
        %v4821 = vpack.c.b16 %v4417, %v4415
        %v4822 = vpack.c.b16 %v4420, %v4418
        %v4823 = vpack.c.b16 %v4421, %v4419
        %v4824 = vpack.c.b16 %v4424, %v4422
        %v4825 = vpack.c.b16 %v4425, %v4423
        %v4826 = vpack.c.b16 %v4428, %v4426
        %v4827 = vpack.c.b16 %v4429, %v4427
        %v4828 = vpack.c.b16 %v4432, %v4430
        %v4829 = vpack.c.b16 %v4433, %v4431
        %v4830 = vpack.c.b16 %v4436, %v4434
        %v4831 = vpack.c.b16 %v4437, %v4435
        %v4832 = vpack.c.b16 %v4440, %v4438
        %v4833 = vpack.c.b16 %v4441, %v4439
        %v4834 = vpack.c.b16 %v4444, %v4442
        %v4835 = vpack.c.b16 %v4445, %v4443
        %v4836 = vpack.c.b16 %v4448, %v4446
        %v4837 = vpack.c.b16 %v4449, %v4447
        %v4838 = vpack.c.b16 %v4452, %v4450
        %v4839 = vpack.c.b16 %v4453, %v4451
        %v4840 = vpack.c.b16 %v4456, %v4454
        %v4841 = vpack.c.b16 %v4457, %v4455
        %v4842 = vpack.c.b16 %v4460, %v4458
        %v4843 = vpack.c.b16 %v4461, %v4459
        %v4844 = vpack.c.b16 %v4464, %v4462
        %v4845 = vpack.c.b16 %v4465, %v4463
        %v4846 = vpack.c.b16 %v4468, %v4466
        %v4847 = vpack.c.b16 %v4469, %v4467
        %v4848 = vpack.c.b16 %v4472, %v4470
        %v4849 = vpack.c.b16 %v4473, %v4471
        %v4850 = vpack.c.b16 %v4476, %v4474
        %v4851 = vpack.c.b16 %v4477, %v4475
        %v4852 = vpack.c.b16 %v4480, %v4478
        %v4853 = vpack.c.b16 %v4481, %v4479
        %v4854 = vpack.c.b16 %v4484, %v4482
        %v4855 = vpack.c.b16 %v4485, %v4483
        %v4856 = vpack.c.b16 %v4488, %v4486
        %v4857 = vpack.c.b16 %v4489, %v4487
        %v4858 = vpack.c.b16 %v4492, %v4490
        %v4859 = vpack.c.b16 %v4493, %v4491
        %v4860 = vpack.c.b16 %v4496, %v4494
        %v4861 = vpack.c.b16 %v4497, %v4495
        %v4862 = vpack.c.b16 %v4500, %v4498
        %v4863 = vpack.c.b16 %v4501, %v4499
        %v4864 = vpack.c.b16 %v4504, %v4502
        %v4865 = vpack.c.b16 %v4505, %v4503
        %v4866 = vpack.c.b16 %v4508, %v4506
        %v4867 = vpack.c.b16 %v4509, %v4507
        %v4868 = vpack.c.b16 %v4512, %v4510
        %v4869 = vpack.c.b16 %v4513, %v4511
        %v4870 = vpack.c.b16 %v4516, %v4514
        %v4871 = vpack.c.b16 %v4517, %v4515
        %v4872 = vpack.c.b16 %v4520, %v4518
        %v4873 = vpack.c.b16 %v4521, %v4519
        %v4874 = vpack.c.b16 %v4524, %v4522
        %v4875 = vpack.c.b16 %v4525, %v4523
        %v4876 = vpack.c.b16 %v4528, %v4526
        %v4877 = vpack.c.b16 %v4529, %v4527
        %v4878 = vpack.c.b16 %v4532, %v4530
        %v4879 = vpack.c.b16 %v4533, %v4531
        %v4880 = vpack.c.b16 %v4536, %v4534
        %v4881 = vpack.c.b16 %v4537, %v4535
        %v4882 = vpack.c.b16 %v4540, %v4538
        %v4883 = vpack.c.b16 %v4541, %v4539
        %v4884 = vpack.c.b16 %v4544, %v4542
        %v4885 = vpack.c.b16 %v4545, %v4543
        %v4886 = vpack.c.b16 %v4548, %v4546
        %v4887 = vpack.c.b16 %v4549, %v4547
        %v4888 = vpack.c.b16 %v4552, %v4550
        %v4889 = vpack.c.b16 %v4553, %v4551
        %v4890 = vpack.c.b16 %v4556, %v4554
        %v4891 = vpack.c.b16 %v4557, %v4555
        %v4892 = vpack.c.b16 %v4560, %v4558
        %v4893 = vpack.c.b16 %v4561, %v4559
        %v4894 = vpack.c.b16 %v4564, %v4562
        %v4895 = vpack.c.b16 %v4565, %v4563
        %v4896 = vpack.c.b16 %v4568, %v4566
        %v4897 = vpack.c.b16 %v4569, %v4567
        %v4898 = vpack.c.b16 %v4572, %v4570
        %v4899 = vpack.c.b16 %v4573, %v4571
        %v4900 = vpack.c.b16 %v4576, %v4574
        %v4901 = vpack.c.b16 %v4577, %v4575
        %v4902 = vpack.c.b16 %v4580, %v4578
        %v4903 = vpack.c.b16 %v4581, %v4579
        %v4904 = vpack.c.b16 %v4584, %v4582
        %v4905 = vpack.c.b16 %v4585, %v4583
        %5226 = vmatprep.subr.bf16.mxu0 %v4587
        %5227 = vmatpush1.bf16.msra.mxu0 %v4586
        %5228 = vmatprep.subr.bf16.mxu0 %v4589
        %5229 = vmatpush1.bf16.msra.mxu0 %v4588
        %5230 = vmatprep.subr.bf16.mxu0 %v4591
        %5231 = vmatpush1.bf16.msra.mxu0 %v4590
        %5232 = vmatprep.subr.bf16.mxu0 %v4593
        %5233 = vmatpush1.bf16.msra.mxu0 %v4592
        %5234 = vmatprep.subr.bf16.mxu0 %v4595
        %5235 = vmatpush1.bf16.msra.mxu0 %v4594
        %5236 = vmatprep.subr.bf16.mxu0 %v4597
        %5237 = vmatpush1.bf16.msra.mxu0 %v4596
        %5238 = vmatprep.subr.bf16.mxu0 %v4599
        %5239 = vmatpush1.bf16.msra.mxu0 %v4598
        %5240 = vmatprep.subr.bf16.mxu0 %v4601
        %5241 = vmatpush1.bf16.msra.mxu0 %v4600
        %5242 = vmatprep.subr.bf16.mxu0 %v4603
        %5243 = vmatpush1.bf16.msra.mxu0 %v4602
        %5244 = vmatprep.subr.bf16.mxu0 %v4605
        %5245 = vmatpush1.bf16.msra.mxu0 %v4604
        %5246 = vmatprep.subr.bf16.mxu0 %v4607
        %5247 = vmatpush1.bf16.msra.mxu0 %v4606
        %5248 = vmatprep.subr.bf16.mxu0 %v4609
        %5249 = vmatpush1.bf16.msra.mxu0 %v4608
        %5250 = vmatprep.subr.bf16.mxu0 %v4611
        %5251 = vmatpush1.bf16.msra.mxu0 %v4610
        %5252 = vmatprep.subr.bf16.mxu0 %v4613
        %5253 = vmatpush1.bf16.msra.mxu0 %v4612
        %5254 = vmatprep.subr.bf16.mxu0 %v4615
        %5255 = vmatpush1.bf16.msra.mxu0 %v4614
        %5256 = vmatprep.subr.bf16.mxu0 %v4617
        %5257 = vmatpush1.bf16.msra.mxu0 %v4616
        %5258 = vmatprep.mubr.bf16.mxu0 %v3521
        %5259 = vmatmul.mubr.bf16.gmra.mrb[0].mxu0 %v3507
        %v5260 = vpop.f32.mrb[0].mxu0
        %v5261 = vadd.f32 %v3474, %v5260
        %v5262 = vpop.f32.mrb[0].mxu0
        %v5263 = vadd.f32 %v3478, %v5262
        %v5264 = vpop.f32.mrb[0].mxu0
        %v5265 = vpop.f32.mrb[0].mxu0
        %5266 = vdwg.mxu0
        %5267 = vmatprep.subr.bf16.mxu0 %v4619
        %5268 = vmatpush1.bf16.msra.mxu0 %v4618
        %5269 = vmatprep.subr.bf16.mxu0 %v4621
        %5270 = vmatpush1.bf16.msra.mxu0 %v4620
        %5271 = vmatprep.subr.bf16.mxu0 %v4623
        %5272 = vmatpush1.bf16.msra.mxu0 %v4622
        %5273 = vmatprep.subr.bf16.mxu0 %v4625
        %5274 = vmatpush1.bf16.msra.mxu0 %v4624
        %5275 = vmatprep.subr.bf16.mxu0 %v4627
        %5276 = vmatpush1.bf16.msra.mxu0 %v4626
        %5277 = vmatprep.subr.bf16.mxu0 %v4629
        %5278 = vmatpush1.bf16.msra.mxu0 %v4628
        %5279 = vmatprep.subr.bf16.mxu0 %v4631
        %5280 = vmatpush1.bf16.msra.mxu0 %v4630
        %5281 = vmatprep.subr.bf16.mxu0 %v4633
        %5282 = vmatpush1.bf16.msra.mxu0 %v4632
        %5283 = vmatprep.subr.bf16.mxu0 %v4635
        %5284 = vmatpush1.bf16.msra.mxu0 %v4634
        %5285 = vmatprep.subr.bf16.mxu0 %v4637
        %5286 = vmatpush1.bf16.msra.mxu0 %v4636
        %5287 = vmatprep.subr.bf16.mxu0 %v4639
        %5288 = vmatpush1.bf16.msra.mxu0 %v4638
        %5289 = vmatprep.subr.bf16.mxu0 %v4641
        %5290 = vmatpush1.bf16.msra.mxu0 %v4640
        %5291 = vmatprep.subr.bf16.mxu0 %v4643
        %5292 = vmatpush1.bf16.msra.mxu0 %v4642
        %5293 = vmatprep.subr.bf16.mxu0 %v4645
        %5294 = vmatpush1.bf16.msra.mxu0 %v4644
        %5295 = vmatprep.subr.bf16.mxu0 %v4647
        %5296 = vmatpush1.bf16.msra.mxu0 %v4646
        %5297 = vmatprep.subr.bf16.mxu0 %v4649
        %5298 = vmatpush1.bf16.msra.mxu0 %v4648
        %5299 = vmatprep.mubr.bf16.mxu0 %v3531
        %5300 = vmatmul.mubr.bf16.gmra.mrb[0].mxu0 %v3529
        %v5301 = vpop.f32.mrb[0].mxu0
        %v5302 = vadd.f32 %v5261, %v5301
        %v5303 = vpop.f32.mrb[0].mxu0
        %v5304 = vadd.f32 %v5263, %v5303
        %v5305 = vpop.f32.mrb[0].mxu0
        %v5306 = vpop.f32.mrb[0].mxu0
        %5307 = vdwg.mxu0
        %5308 = vmatprep.subr.bf16.mxu0 %v4651
        %5309 = vmatpush1.bf16.msra.mxu0 %v4650
        %5310 = vmatprep.subr.bf16.mxu0 %v4653
        %5311 = vmatpush1.bf16.msra.mxu0 %v4652
        %5312 = vmatprep.subr.bf16.mxu0 %v4655
        %5313 = vmatpush1.bf16.msra.mxu0 %v4654
        %5314 = vmatprep.subr.bf16.mxu0 %v4657
        %5315 = vmatpush1.bf16.msra.mxu0 %v4656
        %5316 = vmatprep.subr.bf16.mxu0 %v4659
        %5317 = vmatpush1.bf16.msra.mxu0 %v4658
        %5318 = vmatprep.subr.bf16.mxu0 %v4661
        %5319 = vmatpush1.bf16.msra.mxu0 %v4660
        %5320 = vmatprep.subr.bf16.mxu0 %v4663
        %5321 = vmatpush1.bf16.msra.mxu0 %v4662
        %5322 = vmatprep.subr.bf16.mxu0 %v4665
        %5323 = vmatpush1.bf16.msra.mxu0 %v4664
        %5324 = vmatprep.subr.bf16.mxu0 %v4667
        %5325 = vmatpush1.bf16.msra.mxu0 %v4666
        %5326 = vmatprep.subr.bf16.mxu0 %v4669
        %5327 = vmatpush1.bf16.msra.mxu0 %v4668
        %5328 = vmatprep.subr.bf16.mxu0 %v4671
        %5329 = vmatpush1.bf16.msra.mxu0 %v4670
        %5330 = vmatprep.subr.bf16.mxu0 %v4673
        %5331 = vmatpush1.bf16.msra.mxu0 %v4672
        %5332 = vmatprep.subr.bf16.mxu0 %v4675
        %5333 = vmatpush1.bf16.msra.mxu0 %v4674
        %5334 = vmatprep.subr.bf16.mxu0 %v4677
        %5335 = vmatpush1.bf16.msra.mxu0 %v4676
        %5336 = vmatprep.subr.bf16.mxu0 %v4679
        %5337 = vmatpush1.bf16.msra.mxu0 %v4678
        %5338 = vmatprep.subr.bf16.mxu0 %v4681
        %5339 = vmatpush1.bf16.msra.mxu0 %v4680
        %5340 = vmatprep.mubr.bf16.mxu0 %v3528
        %5341 = vmatmul.mubr.bf16.gmra.mrb[0].mxu0 %v3514
        %v5342 = vpop.f32.mrb[0].mxu0
        %v5343 = vadd.f32 %v5302, %v5342
        %v5344 = vpop.f32.mrb[0].mxu0
        %v5345 = vadd.f32 %v5304, %v5344
        %v5346 = vpop.f32.mrb[0].mxu0
        %v5347 = vpop.f32.mrb[0].mxu0
        %5348 = vdwg.mxu0
        %5349 = vmatprep.subr.bf16.mxu0 %v4683
        %5350 = vmatpush1.bf16.msra.mxu0 %v4682
        %5351 = vmatprep.subr.bf16.mxu0 %v4685
        %5352 = vmatpush1.bf16.msra.mxu0 %v4684
        %5353 = vmatprep.subr.bf16.mxu0 %v4687
        %5354 = vmatpush1.bf16.msra.mxu0 %v4686
        %5355 = vmatprep.subr.bf16.mxu0 %v4689
        %5356 = vmatpush1.bf16.msra.mxu0 %v4688
        %5357 = vmatprep.subr.bf16.mxu0 %v4691
        %5358 = vmatpush1.bf16.msra.mxu0 %v4690
        %5359 = vmatprep.subr.bf16.mxu0 %v4693
        %5360 = vmatpush1.bf16.msra.mxu0 %v4692
        %5361 = vmatprep.subr.bf16.mxu0 %v4695
        %5362 = vmatpush1.bf16.msra.mxu0 %v4694
        %5363 = vmatprep.subr.bf16.mxu0 %v4697
        %5364 = vmatpush1.bf16.msra.mxu0 %v4696
        %5365 = vmatprep.subr.bf16.mxu0 %v4699
        %5366 = vmatpush1.bf16.msra.mxu0 %v4698
        %5367 = vmatprep.subr.bf16.mxu0 %v4701
        %5368 = vmatpush1.bf16.msra.mxu0 %v4700
        %5369 = vmatprep.subr.bf16.mxu0 %v4703
        %5370 = vmatpush1.bf16.msra.mxu0 %v4702
        %5371 = vmatprep.subr.bf16.mxu0 %v4705
        %5372 = vmatpush1.bf16.msra.mxu0 %v4704
        %5373 = vmatprep.subr.bf16.mxu0 %v4707
        %5374 = vmatpush1.bf16.msra.mxu0 %v4706
        %5375 = vmatprep.subr.bf16.mxu0 %v4709
        %5376 = vmatpush1.bf16.msra.mxu0 %v4708
        %5377 = vmatprep.subr.bf16.mxu0 %v4711
        %5378 = vmatpush1.bf16.msra.mxu0 %v4710
        %5379 = vmatprep.subr.bf16.mxu0 %v4713
        %5380 = vmatpush1.bf16.msra.mxu0 %v4712
        %5381 = vmatprep.mubr.bf16.mxu0 %v3532
        %5382 = vmatmul.mubr.bf16.gmra.mrb[0].mxu0 %v3530
        %v5383 = vpop.f32.mrb[0].mxu0
        %v5384 = vadd.f32 %v5343, %v5383
        %v5385 = vpop.f32.mrb[0].mxu0
        %v5386 = vadd.f32 %v5345, %v5385
        %v5387 = vpop.f32.mrb[0].mxu0
        %v5388 = vpop.f32.mrb[0].mxu0
        %5389 = vdwg.mxu0
        %5390 = vmatprep.subr.bf16.mxu0 %v4715
        %5391 = vmatpush1.bf16.msra.mxu0 %v4714
        %5392 = vmatprep.subr.bf16.mxu0 %v4717
        %5393 = vmatpush1.bf16.msra.mxu0 %v4716
        %5394 = vmatprep.subr.bf16.mxu0 %v4719
        %5395 = vmatpush1.bf16.msra.mxu0 %v4718
        %5396 = vmatprep.subr.bf16.mxu0 %v4721
        %5397 = vmatpush1.bf16.msra.mxu0 %v4720
        %5398 = vmatprep.subr.bf16.mxu0 %v4723
        %5399 = vmatpush1.bf16.msra.mxu0 %v4722
        %5400 = vmatprep.subr.bf16.mxu0 %v4725
        %5401 = vmatpush1.bf16.msra.mxu0 %v4724
        %5402 = vmatprep.subr.bf16.mxu0 %v4727
        %5403 = vmatpush1.bf16.msra.mxu0 %v4726
        %5404 = vmatprep.subr.bf16.mxu0 %v4729
        %5405 = vmatpush1.bf16.msra.mxu0 %v4728
        %5406 = vmatprep.subr.bf16.mxu0 %v4731
        %5407 = vmatpush1.bf16.msra.mxu0 %v4730
        %5408 = vmatprep.subr.bf16.mxu0 %v4733
        %5409 = vmatpush1.bf16.msra.mxu0 %v4732
        %5410 = vmatprep.subr.bf16.mxu0 %v4735
        %5411 = vmatpush1.bf16.msra.mxu0 %v4734
        %5412 = vmatprep.subr.bf16.mxu0 %v4737
        %5413 = vmatpush1.bf16.msra.mxu0 %v4736
        %5414 = vmatprep.subr.bf16.mxu0 %v4739
        %5415 = vmatpush1.bf16.msra.mxu0 %v4738
        %5416 = vmatprep.subr.bf16.mxu0 %v4741
        %5417 = vmatpush1.bf16.msra.mxu0 %v4740
        %5418 = vmatprep.subr.bf16.mxu0 %v4743
        %5419 = vmatpush1.bf16.msra.mxu0 %v4742
        %5420 = vmatprep.subr.bf16.mxu0 %v4745
        %5421 = vmatpush1.bf16.msra.mxu0 %v4744
        %5422 = vmatprep.mubr.bf16.mxu0 %v3570
        %5423 = vmatmul.mubr.bf16.gmra.mrb[0].mxu0 %v3556
        %v5424 = vpop.f32.mrb[0].mxu0
        %v5425 = vadd.f32 %v5384, %v5424
        %v5426 = vpop.f32.mrb[0].mxu0
        %v5427 = vadd.f32 %v5386, %v5426
        %v5428 = vpop.f32.mrb[0].mxu0
        %v5429 = vpop.f32.mrb[0].mxu0
        %5430 = vdwg.mxu0
        %5431 = vmatprep.subr.bf16.mxu0 %v4747
        %5432 = vmatpush1.bf16.msra.mxu0 %v4746
        %5433 = vmatprep.subr.bf16.mxu0 %v4749
        %5434 = vmatpush1.bf16.msra.mxu0 %v4748
        %5435 = vmatprep.subr.bf16.mxu0 %v4751
        %5436 = vmatpush1.bf16.msra.mxu0 %v4750
        %5437 = vmatprep.subr.bf16.mxu0 %v4753
        %5438 = vmatpush1.bf16.msra.mxu0 %v4752
        %5439 = vmatprep.subr.bf16.mxu0 %v4755
        %5440 = vmatpush1.bf16.msra.mxu0 %v4754
        %5441 = vmatprep.subr.bf16.mxu0 %v4757
        %5442 = vmatpush1.bf16.msra.mxu0 %v4756
        %5443 = vmatprep.subr.bf16.mxu0 %v4759
        %5444 = vmatpush1.bf16.msra.mxu0 %v4758
        %5445 = vmatprep.subr.bf16.mxu0 %v4761
        %5446 = vmatpush1.bf16.msra.mxu0 %v4760
        %5447 = vmatprep.subr.bf16.mxu0 %v4763
        %5448 = vmatpush1.bf16.msra.mxu0 %v4762
        %5449 = vmatprep.subr.bf16.mxu0 %v4765
        %5450 = vmatpush1.bf16.msra.mxu0 %v4764
        %5451 = vmatprep.subr.bf16.mxu0 %v4767
        %5452 = vmatpush1.bf16.msra.mxu0 %v4766
        %5453 = vmatprep.subr.bf16.mxu0 %v4769
        %5454 = vmatpush1.bf16.msra.mxu0 %v4768
        %5455 = vmatprep.subr.bf16.mxu0 %v4771
        %5456 = vmatpush1.bf16.msra.mxu0 %v4770
        %5457 = vmatprep.subr.bf16.mxu0 %v4773
        %5458 = vmatpush1.bf16.msra.mxu0 %v4772
        %5459 = vmatprep.subr.bf16.mxu0 %v4775
        %5460 = vmatpush1.bf16.msra.mxu0 %v4774
        %5461 = vmatprep.subr.bf16.mxu0 %v4777
        %5462 = vmatpush1.bf16.msra.mxu0 %v4776
        %5463 = vmatprep.mubr.bf16.mxu0 %v3580
        %5464 = vmatmul.mubr.bf16.gmra.mrb[0].mxu0 %v3578
        %v5465 = vpop.f32.mrb[0].mxu0
        %v5466 = vadd.f32 %v5425, %v5465
        %v5467 = vpop.f32.mrb[0].mxu0
        %v5468 = vadd.f32 %v5427, %v5467
        %v5469 = vpop.f32.mrb[0].mxu0
        %v5470 = vpop.f32.mrb[0].mxu0
        %5471 = vdwg.mxu0
        %5472 = vmatprep.subr.bf16.mxu0 %v4779
        %5473 = vmatpush1.bf16.msra.mxu0 %v4778
        %5474 = vmatprep.subr.bf16.mxu0 %v4781
        %5475 = vmatpush1.bf16.msra.mxu0 %v4780
        %5476 = vmatprep.subr.bf16.mxu0 %v4783
        %5477 = vmatpush1.bf16.msra.mxu0 %v4782
        %5478 = vmatprep.subr.bf16.mxu0 %v4785
        %5479 = vmatpush1.bf16.msra.mxu0 %v4784
        %5480 = vmatprep.subr.bf16.mxu0 %v4787
        %5481 = vmatpush1.bf16.msra.mxu0 %v4786
        %5482 = vmatprep.subr.bf16.mxu0 %v4789
        %5483 = vmatpush1.bf16.msra.mxu0 %v4788
        %5484 = vmatprep.subr.bf16.mxu0 %v4791
        %5485 = vmatpush1.bf16.msra.mxu0 %v4790
        %5486 = vmatprep.subr.bf16.mxu0 %v4793
        %5487 = vmatpush1.bf16.msra.mxu0 %v4792
        %5488 = vmatprep.subr.bf16.mxu0 %v4795
        %5489 = vmatpush1.bf16.msra.mxu0 %v4794
        %5490 = vmatprep.subr.bf16.mxu0 %v4797
        %5491 = vmatpush1.bf16.msra.mxu0 %v4796
        %5492 = vmatprep.subr.bf16.mxu0 %v4799
        %5493 = vmatpush1.bf16.msra.mxu0 %v4798
        %5494 = vmatprep.subr.bf16.mxu0 %v4801
        %5495 = vmatpush1.bf16.msra.mxu0 %v4800
        %5496 = vmatprep.subr.bf16.mxu0 %v4803
        %5497 = vmatpush1.bf16.msra.mxu0 %v4802
        %5498 = vmatprep.subr.bf16.mxu0 %v4805
        %5499 = vmatpush1.bf16.msra.mxu0 %v4804
        %5500 = vmatprep.subr.bf16.mxu0 %v4807
        %5501 = vmatpush1.bf16.msra.mxu0 %v4806
        %5502 = vmatprep.subr.bf16.mxu0 %v4809
        %5503 = vmatpush1.bf16.msra.mxu0 %v4808
        %5504 = vmatprep.mubr.bf16.mxu0 %v3577
        %5505 = vmatmul.mubr.bf16.gmra.mrb[0].mxu0 %v3563
        %v5506 = vpop.f32.mrb[0].mxu0
        %v5507 = vadd.f32 %v5466, %v5506
        %v5508 = vpop.f32.mrb[0].mxu0
        %v5509 = vadd.f32 %v5468, %v5508
        %v5510 = vpop.f32.mrb[0].mxu0
        %v5511 = vpop.f32.mrb[0].mxu0
        %5512 = vdwg.mxu0
        %5513 = vmatprep.subr.bf16.mxu0 %v4811
        %5514 = vmatpush1.bf16.msra.mxu0 %v4810
        %5515 = vmatprep.subr.bf16.mxu0 %v4813
        %5516 = vmatpush1.bf16.msra.mxu0 %v4812
        %5517 = vmatprep.subr.bf16.mxu0 %v4815
        %5518 = vmatpush1.bf16.msra.mxu0 %v4814
        %5519 = vmatprep.subr.bf16.mxu0 %v4817
        %5520 = vmatpush1.bf16.msra.mxu0 %v4816
        %5521 = vmatprep.subr.bf16.mxu0 %v4819
        %5522 = vmatpush1.bf16.msra.mxu0 %v4818
        %5523 = vmatprep.subr.bf16.mxu0 %v4821
        %5524 = vmatpush1.bf16.msra.mxu0 %v4820
        %5525 = vmatprep.subr.bf16.mxu0 %v4823
        %5526 = vmatpush1.bf16.msra.mxu0 %v4822
        %5527 = vmatprep.subr.bf16.mxu0 %v4825
        %5528 = vmatpush1.bf16.msra.mxu0 %v4824
        %5529 = vmatprep.subr.bf16.mxu0 %v4827
        %5530 = vmatpush1.bf16.msra.mxu0 %v4826
        %5531 = vmatprep.subr.bf16.mxu0 %v4829
        %5532 = vmatpush1.bf16.msra.mxu0 %v4828
        %5533 = vmatprep.subr.bf16.mxu0 %v4831
        %5534 = vmatpush1.bf16.msra.mxu0 %v4830
        %5535 = vmatprep.subr.bf16.mxu0 %v4833
        %5536 = vmatpush1.bf16.msra.mxu0 %v4832
        %5537 = vmatprep.subr.bf16.mxu0 %v4835
        %5538 = vmatpush1.bf16.msra.mxu0 %v4834
        %5539 = vmatprep.subr.bf16.mxu0 %v4837
        %5540 = vmatpush1.bf16.msra.mxu0 %v4836
        %5541 = vmatprep.subr.bf16.mxu0 %v4839
        %5542 = vmatpush1.bf16.msra.mxu0 %v4838
        %5543 = vmatprep.subr.bf16.mxu0 %v4841
        %5544 = vmatpush1.bf16.msra.mxu0 %v4840
        %5545 = vmatprep.mubr.bf16.mxu0 %v3581
        %5546 = vmatmul.mubr.bf16.gmra.mrb[0].mxu0 %v3579
        %v5547 = vpop.f32.mrb[0].mxu0
        %v5548 = vadd.f32 %v5507, %v5547
        %v5549 = vpop.f32.mrb[0].mxu0
        %v5550 = vadd.f32 %v5509, %v5549
        %v5551 = vpop.f32.mrb[0].mxu0
        %v5552 = vpop.f32.mrb[0].mxu0
        %5553 = vdwg.mxu0
        %5554 = vmatprep.subr.bf16.mxu0 %v4843
        %5555 = vmatpush1.bf16.msra.mxu0 %v4842
        %5556 = vmatprep.subr.bf16.mxu0 %v4845
        %5557 = vmatpush1.bf16.msra.mxu0 %v4844
        %5558 = vmatprep.subr.bf16.mxu0 %v4847
        %5559 = vmatpush1.bf16.msra.mxu0 %v4846
        %5560 = vmatprep.subr.bf16.mxu0 %v4849
        %5561 = vmatpush1.bf16.msra.mxu0 %v4848
        %5562 = vmatprep.subr.bf16.mxu0 %v4851
        %5563 = vmatpush1.bf16.msra.mxu0 %v4850
        %5564 = vmatprep.subr.bf16.mxu0 %v4853
        %5565 = vmatpush1.bf16.msra.mxu0 %v4852
        %5566 = vmatprep.subr.bf16.mxu0 %v4855
        %5567 = vmatpush1.bf16.msra.mxu0 %v4854
        %5568 = vmatprep.subr.bf16.mxu0 %v4857
        %5569 = vmatpush1.bf16.msra.mxu0 %v4856
        %5570 = vmatprep.subr.bf16.mxu0 %v4859
        %5571 = vmatpush1.bf16.msra.mxu0 %v4858
        %5572 = vmatprep.subr.bf16.mxu0 %v4861
        %5573 = vmatpush1.bf16.msra.mxu0 %v4860
        %5574 = vmatprep.subr.bf16.mxu0 %v4863
        %5575 = vmatpush1.bf16.msra.mxu0 %v4862
        %5576 = vmatprep.subr.bf16.mxu0 %v4865
        %5577 = vmatpush1.bf16.msra.mxu0 %v4864
        %5578 = vmatprep.subr.bf16.mxu0 %v4867
        %5579 = vmatpush1.bf16.msra.mxu0 %v4866
        %5580 = vmatprep.subr.bf16.mxu0 %v4869
        %5581 = vmatpush1.bf16.msra.mxu0 %v4868
        %5582 = vmatprep.subr.bf16.mxu0 %v4871
        %5583 = vmatpush1.bf16.msra.mxu0 %v4870
        %5584 = vmatprep.subr.bf16.mxu0 %v4873
        %5585 = vmatpush1.bf16.msra.mxu0 %v4872
        %5586 = vmatprep.mubr.bf16.mxu0 %v3603
        %5587 = vmatmul.mubr.bf16.gmra.mrb[0].mxu0 %v3596
        %v5588 = vpop.f32.mrb[0].mxu0
        %v5589 = vadd.f32 %v5548, %v5588
        %v5590 = vpop.f32.mrb[0].mxu0
        %v5591 = vadd.f32 %v5550, %v5590
        %v5592 = vpop.f32.mrb[0].mxu0
        %v5593 = vpop.f32.mrb[0].mxu0
        %5594 = vdwg.mxu0
        %5595 = vmatprep.subr.bf16.mxu0 %v4875
        %5596 = vmatpush1.bf16.msra.mxu0 %v4874
        %5597 = vmatprep.subr.bf16.mxu0 %v4877
        %5598 = vmatpush1.bf16.msra.mxu0 %v4876
        %5599 = vmatprep.subr.bf16.mxu0 %v4879
        %5600 = vmatpush1.bf16.msra.mxu0 %v4878
        %5601 = vmatprep.subr.bf16.mxu0 %v4881
        %5602 = vmatpush1.bf16.msra.mxu0 %v4880
        %5603 = vmatprep.subr.bf16.mxu0 %v4883
        %5604 = vmatpush1.bf16.msra.mxu0 %v4882
        %5605 = vmatprep.subr.bf16.mxu0 %v4885
        %5606 = vmatpush1.bf16.msra.mxu0 %v4884
        %5607 = vmatprep.subr.bf16.mxu0 %v4887
        %5608 = vmatpush1.bf16.msra.mxu0 %v4886
        %5609 = vmatprep.subr.bf16.mxu0 %v4889
        %5610 = vmatpush1.bf16.msra.mxu0 %v4888
        %5611 = vmatprep.subr.bf16.mxu0 %v4891
        %5612 = vmatpush1.bf16.msra.mxu0 %v4890
        %5613 = vmatprep.subr.bf16.mxu0 %v4893
        %5614 = vmatpush1.bf16.msra.mxu0 %v4892
        %5615 = vmatprep.subr.bf16.mxu0 %v4895
        %5616 = vmatpush1.bf16.msra.mxu0 %v4894
        %5617 = vmatprep.subr.bf16.mxu0 %v4897
        %5618 = vmatpush1.bf16.msra.mxu0 %v4896
        %5619 = vmatprep.subr.bf16.mxu0 %v4899
        %5620 = vmatpush1.bf16.msra.mxu0 %v4898
        %5621 = vmatprep.subr.bf16.mxu0 %v4901
        %5622 = vmatpush1.bf16.msra.mxu0 %v4900
        %5623 = vmatprep.subr.bf16.mxu0 %v4903
        %5624 = vmatpush1.bf16.msra.mxu0 %v4902
        %5625 = vmatprep.subr.bf16.mxu0 %v4905
        %5626 = vmatpush1.bf16.msra.mxu0 %v4904
        %5627 = vmatprep.mubr.bf16.mxu0 %v3605
        %5628 = vmatmul.mubr.bf16.gmra.mrb[0].mxu0 %v3604
        %v5629 = vpop.f32.mrb[0].mxu0
        %v5630 = vadd.f32 %v5589, %v5629
        %v5631 = vpop.f32.mrb[0].mxu0
        %v5632 = vadd.f32 %v5591, %v5631
        %v5633 = vpop.f32.mrb[0].mxu0
        %v5634 = vpop.f32.mrb[0].mxu0
        %5635 = vdwg.mxu0
        %v5636 = vmax.f32 %v5630, 0.0
        %v5637 = vmax.f32 %v5632, 0.0
        %v5638 = vld [vmem:[#allocation3] sm:$0xff]
        %v5639 = vpack.c.bf16 %v5636, %v5636
        %v5640 = vpack.c.bf16 %v5637, %v5637
        %v5641 = vld [vmem:[%s496] sm:$0xff]
        %v5642 = vld [vmem:[%s496 + $0x8] sm:$0xff]
        %v5643 = vld [vmem:[%s496 + $0x10] sm:$0xff]
        %v5644 = vld [vmem:[%s496 + $0x18] sm:$0xff]
        %v5645 = vld [vmem:[%s496 + $0x20] sm:$0xff]
        %v5646 = vld [vmem:[%s496 + $0x28] sm:$0xff]
        %v5647 = vld [vmem:[%s496 + $0x30] sm:$0xff]
        %v5648 = vld [vmem:[%s496 + $0x38] sm:$0xff]
        %v5649 = vld [vmem:[%s496 + $0x40] sm:$0xff]
        %v5650 = vld [vmem:[%s496 + $0x48] sm:$0xff]
        %v5651 = vld [vmem:[%s496 + $0x50] sm:$0xff]
        %v5652 = vld [vmem:[%s496 + $0x58] sm:$0xff]
        %v5653 = vld [vmem:[%s496 + $0x60] sm:$0xff]
        %v5654 = vld [vmem:[%s496 + $0x68] sm:$0xff]
        %v5655 = vld [vmem:[%s496 + $0x70] sm:$0xff]
        %v5656 = vld [vmem:[%s496 + $0x78] sm:$0xff]
        %v5657 = vld [vmem:[%s496 + $0x80] sm:$0xff]
        %v5658 = vld [vmem:[%s496 + $0x88] sm:$0xff]
        %v5659 = vld [vmem:[%s496 + $0x90] sm:$0xff]
        %v5660 = vld [vmem:[%s496 + $0x98] sm:$0xff]
        %v5661 = vld [vmem:[%s496 + $0xa0] sm:$0xff]
        %v5662 = vld [vmem:[%s496 + $0xa8] sm:$0xff]
        %v5663 = vld [vmem:[%s496 + $0xb0] sm:$0xff]
        %v5664 = vld [vmem:[%s496 + $0xb8] sm:$0xff]
        %v5665 = vld [vmem:[%s496 + $0xc0] sm:$0xff]
        %v5666 = vld [vmem:[%s496 + $0xc8] sm:$0xff]
        %v5667 = vld [vmem:[%s496 + $0xd0] sm:$0xff]
        %v5668 = vld [vmem:[%s496 + $0xd8] sm:$0xff]
        %v5669 = vld [vmem:[%s496 + $0xe0] sm:$0xff]
        %v5670 = vld [vmem:[%s496 + $0xe8] sm:$0xff]
        %v5671 = vld [vmem:[%s496 + $0xf0] sm:$0xff]
        %v5672 = vld [vmem:[%s496 + $0xf8] sm:$0xff]
        %v5673 = vld [vmem:[%s496 + $0x100] sm:$0xff]
        %v5674 = vld [vmem:[%s496 + $0x108] sm:$0xff]
        %v5675 = vld [vmem:[%s496 + $0x110] sm:$0xff]
        %v5676 = vld [vmem:[%s496 + $0x118] sm:$0xff]
        %v5677 = vld [vmem:[%s496 + $0x120] sm:$0xff]
        %v5678 = vld [vmem:[%s496 + $0x128] sm:$0xff]
        %v5679 = vld [vmem:[%s496 + $0x130] sm:$0xff]
        %v5680 = vld [vmem:[%s496 + $0x138] sm:$0xff]
        %v5681 = vld [vmem:[%s496 + $0x140] sm:$0xff]
        %v5682 = vld [vmem:[%s496 + $0x148] sm:$0xff]
        %v5683 = vld [vmem:[%s496 + $0x150] sm:$0xff]
        %v5684 = vld [vmem:[%s496 + $0x158] sm:$0xff]
        %v5685 = vld [vmem:[%s496 + $0x160] sm:$0xff]
        %v5686 = vld [vmem:[%s496 + $0x168] sm:$0xff]
        %v5687 = vld [vmem:[%s496 + $0x170] sm:$0xff]
        %v5688 = vld [vmem:[%s496 + $0x178] sm:$0xff]
        %v5689 = vld [vmem:[%s496 + $0x180] sm:$0xff]
        %v5690 = vld [vmem:[%s496 + $0x188] sm:$0xff]
        %v5691 = vld [vmem:[%s496 + $0x190] sm:$0xff]
        %v5692 = vld [vmem:[%s496 + $0x198] sm:$0xff]
        %v5693 = vld [vmem:[%s496 + $0x1a0] sm:$0xff]
        %v5694 = vld [vmem:[%s496 + $0x1a8] sm:$0xff]
        %v5695 = vld [vmem:[%s496 + $0x1b0] sm:$0xff]
        %v5696 = vld [vmem:[%s496 + $0x1b8] sm:$0xff]
        %v5697 = vld [vmem:[%s496 + $0x1c0] sm:$0xff]
        %v5698 = vld [vmem:[%s496 + $0x1c8] sm:$0xff]
        %v5699 = vld [vmem:[%s496 + $0x1d0] sm:$0xff]
        %v5700 = vld [vmem:[%s496 + $0x1d8] sm:$0xff]
        %v5701 = vld [vmem:[%s496 + $0x1e0] sm:$0xff]
        %v5702 = vld [vmem:[%s496 + $0x1e8] sm:$0xff]
        %v5703 = vld [vmem:[%s496 + $0x1f0] sm:$0xff]
        %v5704 = vld [vmem:[%s496 + $0x1f8] sm:$0xff]
        %v5769 = vunpack.c.l.b16 %v5641
        %v5770 = vunpack.c.h.b16 %v5641
        %v5771 = vunpack.c.l.b16 %v5642
        %v5772 = vunpack.c.h.b16 %v5642
        %v5773 = vunpack.c.l.b16 %v5643
        %v5774 = vunpack.c.h.b16 %v5643
        %v5775 = vunpack.c.l.b16 %v5644
        %v5776 = vunpack.c.h.b16 %v5644
        %v5777 = vunpack.c.l.b16 %v5645
        %v5778 = vunpack.c.h.b16 %v5645
        %v5779 = vunpack.c.l.b16 %v5646
        %v5780 = vunpack.c.h.b16 %v5646
        %v5781 = vunpack.c.l.b16 %v5647
        %v5782 = vunpack.c.h.b16 %v5647
        %v5783 = vunpack.c.l.b16 %v5648
        %v5784 = vunpack.c.h.b16 %v5648
        %v5785 = vunpack.c.l.b16 %v5649
        %v5786 = vunpack.c.h.b16 %v5649
        %v5787 = vunpack.c.l.b16 %v5650
        %v5788 = vunpack.c.h.b16 %v5650
        %v5789 = vunpack.c.l.b16 %v5651
        %v5790 = vunpack.c.h.b16 %v5651
        %v5791 = vunpack.c.l.b16 %v5652
        %v5792 = vunpack.c.h.b16 %v5652
        %v5793 = vunpack.c.l.b16 %v5653
        %v5794 = vunpack.c.h.b16 %v5653
        %v5795 = vunpack.c.l.b16 %v5654
        %v5796 = vunpack.c.h.b16 %v5654
        %v5797 = vunpack.c.l.b16 %v5655
        %v5798 = vunpack.c.h.b16 %v5655
        %v5799 = vunpack.c.l.b16 %v5656
        %v5800 = vunpack.c.h.b16 %v5656
        %v5801 = vunpack.c.l.b16 %v5657
        %v5802 = vunpack.c.h.b16 %v5657
        %v5803 = vunpack.c.l.b16 %v5658
        %v5804 = vunpack.c.h.b16 %v5658
        %v5805 = vunpack.c.l.b16 %v5659
        %v5806 = vunpack.c.h.b16 %v5659
        %v5807 = vunpack.c.l.b16 %v5660
        %v5808 = vunpack.c.h.b16 %v5660
        %v5809 = vunpack.c.l.b16 %v5661
        %v5810 = vunpack.c.h.b16 %v5661
        %v5811 = vunpack.c.l.b16 %v5662
        %v5812 = vunpack.c.h.b16 %v5662
        %v5813 = vunpack.c.l.b16 %v5663
        %v5814 = vunpack.c.h.b16 %v5663
        %v5815 = vunpack.c.l.b16 %v5664
        %v5816 = vunpack.c.h.b16 %v5664
        %v5817 = vunpack.c.l.b16 %v5665
        %v5818 = vunpack.c.h.b16 %v5665
        %v5819 = vunpack.c.l.b16 %v5666
        %v5820 = vunpack.c.h.b16 %v5666
        %v5821 = vunpack.c.l.b16 %v5667
        %v5822 = vunpack.c.h.b16 %v5667
        %v5823 = vunpack.c.l.b16 %v5668
        %v5824 = vunpack.c.h.b16 %v5668
        %v5825 = vunpack.c.l.b16 %v5669
        %v5826 = vunpack.c.h.b16 %v5669
        %v5827 = vunpack.c.l.b16 %v5670
        %v5828 = vunpack.c.h.b16 %v5670
        %v5829 = vunpack.c.l.b16 %v5671
        %v5830 = vunpack.c.h.b16 %v5671
        %v5831 = vunpack.c.l.b16 %v5672
        %v5832 = vunpack.c.h.b16 %v5672
        %v5833 = vunpack.c.l.b16 %v5673
        %v5834 = vunpack.c.h.b16 %v5673
        %v5835 = vunpack.c.l.b16 %v5674
        %v5836 = vunpack.c.h.b16 %v5674
        %v5837 = vunpack.c.l.b16 %v5675
        %v5838 = vunpack.c.h.b16 %v5675
        %v5839 = vunpack.c.l.b16 %v5676
        %v5840 = vunpack.c.h.b16 %v5676
        %v5841 = vunpack.c.l.b16 %v5677
        %v5842 = vunpack.c.h.b16 %v5677
        %v5843 = vunpack.c.l.b16 %v5678
        %v5844 = vunpack.c.h.b16 %v5678
        %v5845 = vunpack.c.l.b16 %v5679
        %v5846 = vunpack.c.h.b16 %v5679
        %v5847 = vunpack.c.l.b16 %v5680
        %v5848 = vunpack.c.h.b16 %v5680
        %v5849 = vunpack.c.l.b16 %v5681
        %v5850 = vunpack.c.h.b16 %v5681
        %v5851 = vunpack.c.l.b16 %v5682
        %v5852 = vunpack.c.h.b16 %v5682
        %v5853 = vunpack.c.l.b16 %v5683
        %v5854 = vunpack.c.h.b16 %v5683
        %v5855 = vunpack.c.l.b16 %v5684
        %v5856 = vunpack.c.h.b16 %v5684
        %v5857 = vunpack.c.l.b16 %v5685
        %v5858 = vunpack.c.h.b16 %v5685
        %v5859 = vunpack.c.l.b16 %v5686
        %v5860 = vunpack.c.h.b16 %v5686
        %v5861 = vunpack.c.l.b16 %v5687
        %v5862 = vunpack.c.h.b16 %v5687
        %v5863 = vunpack.c.l.b16 %v5688
        %v5864 = vunpack.c.h.b16 %v5688
        %v5865 = vunpack.c.l.b16 %v5689
        %v5866 = vunpack.c.h.b16 %v5689
        %v5867 = vunpack.c.l.b16 %v5690
        %v5868 = vunpack.c.h.b16 %v5690
        %v5869 = vunpack.c.l.b16 %v5691
        %v5870 = vunpack.c.h.b16 %v5691
        %v5871 = vunpack.c.l.b16 %v5692
        %v5872 = vunpack.c.h.b16 %v5692
        %v5873 = vunpack.c.l.b16 %v5693
        %v5874 = vunpack.c.h.b16 %v5693
        %v5875 = vunpack.c.l.b16 %v5694
        %v5876 = vunpack.c.h.b16 %v5694
        %v5877 = vunpack.c.l.b16 %v5695
        %v5878 = vunpack.c.h.b16 %v5695
        %v5879 = vunpack.c.l.b16 %v5696
        %v5880 = vunpack.c.h.b16 %v5696
        %v5881 = vunpack.c.l.b16 %v5697
        %v5882 = vunpack.c.h.b16 %v5697
        %v5883 = vunpack.c.l.b16 %v5698
        %v5884 = vunpack.c.h.b16 %v5698
        %v5885 = vunpack.c.l.b16 %v5699
        %v5886 = vunpack.c.h.b16 %v5699
        %v5887 = vunpack.c.l.b16 %v5700
        %v5888 = vunpack.c.h.b16 %v5700
        %v5889 = vunpack.c.l.b16 %v5701
        %v5890 = vunpack.c.h.b16 %v5701
        %v5891 = vunpack.c.l.b16 %v5702
        %v5892 = vunpack.c.h.b16 %v5702
        %v5893 = vunpack.c.l.b16 %v5703
        %v5894 = vunpack.c.h.b16 %v5703
        %v5895 = vunpack.c.l.b16 %v5704
        %v5896 = vunpack.c.h.b16 %v5704
        %v5897 = vpack.c.b16 %v5773, %v5769
        %v5898 = vpack.c.b16 %v5774, %v5770
        %v5899 = vpack.c.b16 %v5775, %v5771
        %v5900 = vpack.c.b16 %v5776, %v5772
        %v5901 = vpack.c.b16 %v5781, %v5777
        %v5902 = vpack.c.b16 %v5782, %v5778
        %v5903 = vpack.c.b16 %v5783, %v5779
        %v5904 = vpack.c.b16 %v5784, %v5780
        %v5905 = vpack.c.b16 %v5789, %v5785
        %v5906 = vpack.c.b16 %v5790, %v5786
        %v5907 = vpack.c.b16 %v5791, %v5787
        %v5908 = vpack.c.b16 %v5792, %v5788
        %v5909 = vpack.c.b16 %v5797, %v5793
        %v5910 = vpack.c.b16 %v5798, %v5794
        %v5911 = vpack.c.b16 %v5799, %v5795
        %v5912 = vpack.c.b16 %v5800, %v5796
        %v5913 = vpack.c.b16 %v5805, %v5801
        %v5914 = vpack.c.b16 %v5806, %v5802
        %v5915 = vpack.c.b16 %v5807, %v5803
        %v5916 = vpack.c.b16 %v5808, %v5804
        %v5917 = vpack.c.b16 %v5813, %v5809
        %v5918 = vpack.c.b16 %v5814, %v5810
        %v5919 = vpack.c.b16 %v5815, %v5811
        %v5920 = vpack.c.b16 %v5816, %v5812
        %v5921 = vpack.c.b16 %v5821, %v5817
        %v5922 = vpack.c.b16 %v5822, %v5818
        %v5923 = vpack.c.b16 %v5823, %v5819
        %v5924 = vpack.c.b16 %v5824, %v5820
        %v5925 = vpack.c.b16 %v5829, %v5825
        %v5926 = vpack.c.b16 %v5830, %v5826
        %v5927 = vpack.c.b16 %v5831, %v5827
        %v5928 = vpack.c.b16 %v5832, %v5828
        %v5929 = vpack.c.b16 %v5837, %v5833
        %v5930 = vpack.c.b16 %v5838, %v5834
        %v5931 = vpack.c.b16 %v5839, %v5835
        %v5932 = vpack.c.b16 %v5840, %v5836
        %v5933 = vpack.c.b16 %v5845, %v5841
        %v5934 = vpack.c.b16 %v5846, %v5842
        %v5935 = vpack.c.b16 %v5847, %v5843
        %v5936 = vpack.c.b16 %v5848, %v5844
        %v5937 = vpack.c.b16 %v5853, %v5849
        %v5938 = vpack.c.b16 %v5854, %v5850
        %v5939 = vpack.c.b16 %v5855, %v5851
        %v5940 = vpack.c.b16 %v5856, %v5852
        %v5941 = vpack.c.b16 %v5861, %v5857
        %v5942 = vpack.c.b16 %v5862, %v5858
        %v5943 = vpack.c.b16 %v5863, %v5859
        %v5944 = vpack.c.b16 %v5864, %v5860
        %v5945 = vpack.c.b16 %v5869, %v5865
        %v5946 = vpack.c.b16 %v5870, %v5866
        %v5947 = vpack.c.b16 %v5871, %v5867
        %v5948 = vpack.c.b16 %v5872, %v5868
        %v5949 = vpack.c.b16 %v5877, %v5873
        %v5950 = vpack.c.b16 %v5878, %v5874
        %v5951 = vpack.c.b16 %v5879, %v5875
        %v5952 = vpack.c.b16 %v5880, %v5876
        %v5953 = vpack.c.b16 %v5885, %v5881
        %v5954 = vpack.c.b16 %v5886, %v5882
        %v5955 = vpack.c.b16 %v5887, %v5883
        %v5956 = vpack.c.b16 %v5888, %v5884
        %v5957 = vpack.c.b16 %v5893, %v5889
        %v5958 = vpack.c.b16 %v5894, %v5890
        %v5959 = vpack.c.b16 %v5895, %v5891
        %v5960 = vpack.c.b16 %v5896, %v5892
        %6025 = vmatprep.subr.bf16.mxu0 %v5898
        %6026 = vmatpush1.bf16.msra.mxu0 %v5897
        %6027 = vmatprep.subr.bf16.mxu0 %v5902
        %6028 = vmatpush1.bf16.msra.mxu0 %v5901
        %6029 = vmatprep.subr.bf16.mxu0 %v5906
        %6030 = vmatpush1.bf16.msra.mxu0 %v5905
        %6031 = vmatprep.subr.bf16.mxu0 %v5910
        %6032 = vmatpush1.bf16.msra.mxu0 %v5909
        %6033 = vmatprep.subr.bf16.mxu0 %v5914
        %6034 = vmatpush1.bf16.msra.mxu0 %v5913
        %6035 = vmatprep.subr.bf16.mxu0 %v5918
        %6036 = vmatpush1.bf16.msra.mxu0 %v5917
        %6037 = vmatprep.subr.bf16.mxu0 %v5922
        %6038 = vmatpush1.bf16.msra.mxu0 %v5921
        %6039 = vmatprep.subr.bf16.mxu0 %v5926
        %6040 = vmatpush1.bf16.msra.mxu0 %v5925
        %6041 = vmatprep.subr.bf16.mxu0 %v5930
        %6042 = vmatpush1.bf16.msra.mxu0 %v5929
        %6043 = vmatprep.subr.bf16.mxu0 %v5934
        %6044 = vmatpush1.bf16.msra.mxu0 %v5933
        %6045 = vmatprep.subr.bf16.mxu0 %v5938
        %6046 = vmatpush1.bf16.msra.mxu0 %v5937
        %6047 = vmatprep.subr.bf16.mxu0 %v5942
        %6048 = vmatpush1.bf16.msra.mxu0 %v5941
        %6049 = vmatprep.subr.bf16.mxu0 %v5946
        %6050 = vmatpush1.bf16.msra.mxu0 %v5945
        %6051 = vmatprep.subr.bf16.mxu0 %v5950
        %6052 = vmatpush1.bf16.msra.mxu0 %v5949
        %6053 = vmatprep.subr.bf16.mxu0 %v5954
        %6054 = vmatpush1.bf16.msra.mxu0 %v5953
        %6055 = vmatprep.subr.bf16.mxu0 %v5958
        %6056 = vmatpush1.bf16.msra.mxu0 %v5957
        %6057 = vmatprep.mubr.bf16.mxu0 %v5640
        %6058 = vmatmul.mubr.bf16.gmra.mrb[0].mxu0 %v5639
        %v6059 = vpop.f32.mrb[0].mxu0
        %v6060 = vadd.f32 0.0, %v6059
        %v6061 = vpop.f32.mrb[0].mxu0
        %v6062 = vadd.f32 0.0, %v6061
        %v6063 = vpop.f32.mrb[0].mxu0
        %v6064 = vpop.f32.mrb[0].mxu0
        %6065 = vdwg.mxu0
        %6066 = vmatprep.subr.bf16.mxu0 %v5900
        %6067 = vmatpush1.bf16.msra.mxu0 %v5899
        %6068 = vmatprep.subr.bf16.mxu0 %v5904
        %6069 = vmatpush1.bf16.msra.mxu0 %v5903
        %6070 = vmatprep.subr.bf16.mxu0 %v5908
        %6071 = vmatpush1.bf16.msra.mxu0 %v5907
        %6072 = vmatprep.subr.bf16.mxu0 %v5912
        %6073 = vmatpush1.bf16.msra.mxu0 %v5911
        %6074 = vmatprep.subr.bf16.mxu0 %v5916
        %6075 = vmatpush1.bf16.msra.mxu0 %v5915
        %6076 = vmatprep.subr.bf16.mxu0 %v5920
        %6077 = vmatpush1.bf16.msra.mxu0 %v5919
        %6078 = vmatprep.subr.bf16.mxu0 %v5924
        %6079 = vmatpush1.bf16.msra.mxu0 %v5923
        %6080 = vmatprep.subr.bf16.mxu0 %v5928
        %6081 = vmatpush1.bf16.msra.mxu0 %v5927
        %6082 = vmatprep.subr.bf16.mxu0 %v5932
        %6083 = vmatpush1.bf16.msra.mxu0 %v5931
        %6084 = vmatprep.subr.bf16.mxu0 %v5936
        %6085 = vmatpush1.bf16.msra.mxu0 %v5935
        %6086 = vmatprep.subr.bf16.mxu0 %v5940
        %6087 = vmatpush1.bf16.msra.mxu0 %v5939
        %6088 = vmatprep.subr.bf16.mxu0 %v5944
        %6089 = vmatpush1.bf16.msra.mxu0 %v5943
        %6090 = vmatprep.subr.bf16.mxu0 %v5948
        %6091 = vmatpush1.bf16.msra.mxu0 %v5947
        %6092 = vmatprep.subr.bf16.mxu0 %v5952
        %6093 = vmatpush1.bf16.msra.mxu0 %v5951
        %6094 = vmatprep.subr.bf16.mxu0 %v5956
        %6095 = vmatpush1.bf16.msra.mxu0 %v5955
        %6096 = vmatprep.subr.bf16.mxu0 %v5960
        %6097 = vmatpush1.bf16.msra.mxu0 %v5959
        %6098 = vmatprep.mubr.bf16.mxu0 %v5640
        %6099 = vmatmul.mubr.bf16.gmra.mrb[0].mxu0 %v5639
        %v6100 = vpop.f32.mrb[0].mxu0
        %v6101 = vadd.f32 0.0, %v6100
        %v6102 = vpop.f32.mrb[0].mxu0
        %v6103 = vadd.f32 0.0, %v6102
        %v6104 = vpop.f32.mrb[0].mxu0
        %v6105 = vpop.f32.mrb[0].mxu0
        %6106 = vdwg.mxu0
        %v6111 = vcombine.low %v6060, %v6062
        %v6112 = vcombine.low %v6101, %v6103
        %v6114 = vunpack.c.l.s4 1983009808
        %v6115 = vunpack.c.0.s8 %v6114
        %v6116 = vlaneseq
        %v6117 = vshrl.u32 %v6116, 7
        %v6118 = vsub.s32 %v6115, %v6117
        %v6119 = vrot.slane %v6111, %v6118
        %v6121 = vunpack.c.l.s4 1983009808
        %v6122 = vunpack.c.0.s8 %v6121
        %v6123 = vlaneseq
        %v6124 = vshrl.u32 %v6123, 7
        %v6125 = vsub.s32 %v6122, %v6124
        %v6126 = vrot.slane %v6112, %v6125
        %v6127 = vcombine.low %v6119, %v6126
        %v6129 = vadd.f32 %v5638, %v6127
        %6130 = vst [vmem:[#allocation3] sm:$0xff] %v6129
        %p6131 = scmp.eq.s32.totalorder %s29, 3
        // Predicated region
        $region101: #{multimodal_emotic_forward.1} parent=59 // pred_check
          %p6132 = pneg %p6131
        $region102: #{multimodal_emotic_forward.1} parent=59 // pred_check_branch
          %6134 = sbr.rel (%p6132) target = $region104
        $region103: #{multimodal_emotic_forward.1} parent=59 // pred_region
          %v6135 = vld [vmem:[#allocation3] sm:$0xff]
          %v6136 = vld [vmem:[#allocation15] sm:$0xf]
          %v6138 = vlaneseq
          %v6139 = vshrl.u32 %v6138, 7
          %v6140 = vsub.s32 0, %v6139
          %v6141 = vrot.slane %v6136, %v6140
          %v6142 = vlaneseq
          %v6143 = vshrl.u32 %v6142, 7
          %v6144 = vsub.s32 1, %v6143
          %v6145 = vrot.slane %v6136, %v6144
          %v6146 = vlaneseq
          %v6147 = vshrl.u32 %v6146, 7
          %v6148 = vsub.s32 2, %v6147
          %v6149 = vrot.slane %v6136, %v6148
          %v6150 = vlaneseq
          %v6151 = vshrl.u32 %v6150, 7
          %v6152 = vsub.s32 3, %v6151
          %v6153 = vrot.slane %v6136, %v6152
          %v6154 = vcombine.low %v6141, %v6145
          %v6155 = vcombine.low %v6149, %v6153
          %v6157 = vunpack.c.l.s4 1983009808
          %v6158 = vunpack.c.0.s8 %v6157
          %v6159 = vlaneseq
          %v6160 = vshrl.u32 %v6159, 7
          %v6161 = vsub.s32 %v6158, %v6160
          %v6162 = vrot.slane %v6154, %v6161
          %v6164 = vunpack.c.l.s4 1983009808
          %v6165 = vunpack.c.0.s8 %v6164
          %v6166 = vlaneseq
          %v6167 = vshrl.u32 %v6166, 7
          %v6168 = vsub.s32 %v6165, %v6167
          %v6169 = vrot.slane %v6155, %v6168
          %v6170 = vcombine.low %v6162, %v6169
          %v6172 = vadd.f32 %v6135, %v6170
          %v6173 = vmax.f32 %v6172, 0.0
          %v6175 = vcombine.high %v6173, %v6173
          %v6177 = vunpack.c.l.s4 1983009808
          %v6178 = vunpack.c.0.s8 %v6177
          %v6179 = vlaneseq
          %v6180 = vshrl.u32 %v6179, 7
          %v6181 = vsub.s32 %v6178, %v6180
          %v6182 = vrot.slane %v6173, %v6181
          %v6184 = vunpack.c.l.s4 1983009808
          %v6185 = vunpack.c.0.s8 %v6184
          %v6186 = vlaneseq
          %v6187 = vshrl.u32 %v6186, 7
          %v6188 = vsub.s32 %v6185, %v6187
          %v6189 = vrot.slane %v6175, %v6188
          %v6190 = vcombine.high %v6182, %v6182
          %v6191 = vcombine.high %v6189, %v6189
          %v6196 = vpack.c.bf16 %v6182, %v6182
          %v6197 = vpack.c.bf16 %v6190, %v6190
          %v6198 = vpack.c.bf16 %v6189, %v6189
          %v6199 = vpack.c.bf16 %v6191, %v6191
          %v6200 = vld [vmem:[#allocation14] sm:$0xf]
          %v6201 = vld [vmem:[#allocation14 + $0x4] sm:$0xf]
          %v6202 = vld [vmem:[#allocation14 + $0x8] sm:$0xf]
          %v6203 = vld [vmem:[#allocation14 + $0xc] sm:$0xf]
          %v6204 = vld [vmem:[#allocation14 + $0x10] sm:$0xf]
          %v6205 = vld [vmem:[#allocation14 + $0x14] sm:$0xf]
          %v6206 = vld [vmem:[#allocation14 + $0x18] sm:$0xf]
          %v6207 = vld [vmem:[#allocation14 + $0x1c] sm:$0xf]
          %v6208 = vld [vmem:[#allocation14 + $0x20] sm:$0xf]
          %v6209 = vld [vmem:[#allocation14 + $0x24] sm:$0xf]
          %v6210 = vld [vmem:[#allocation14 + $0x28] sm:$0xf]
          %v6211 = vld [vmem:[#allocation14 + $0x2c] sm:$0xf]
          %v6212 = vld [vmem:[#allocation14 + $0x30] sm:$0xf]
          %v6213 = vld [vmem:[#allocation14 + $0x34] sm:$0xf]
          %v6214 = vld [vmem:[#allocation14 + $0x38] sm:$0xf]
          %v6215 = vld [vmem:[#allocation14 + $0x3c] sm:$0xf]
          %v6216 = vld [vmem:[#allocation14 + $0x40] sm:$0xf]
          %v6217 = vld [vmem:[#allocation14 + $0x44] sm:$0xf]
          %v6218 = vld [vmem:[#allocation14 + $0x48] sm:$0xf]
          %v6219 = vld [vmem:[#allocation14 + $0x4c] sm:$0xf]
          %v6220 = vld [vmem:[#allocation14 + $0x50] sm:$0xf]
          %v6221 = vld [vmem:[#allocation14 + $0x54] sm:$0xf]
          %v6222 = vld [vmem:[#allocation14 + $0x58] sm:$0xf]
          %v6223 = vld [vmem:[#allocation14 + $0x5c] sm:$0xf]
          %v6224 = vld [vmem:[#allocation14 + $0x60] sm:$0xf]
          %v6225 = vld [vmem:[#allocation14 + $0x64] sm:$0xf]
          %v6226 = vld [vmem:[#allocation14 + $0x68] sm:$0xf]
          %v6227 = vld [vmem:[#allocation14 + $0x6c] sm:$0xf]
          %v6228 = vld [vmem:[#allocation14 + $0x70] sm:$0xf]
          %v6229 = vld [vmem:[#allocation14 + $0x74] sm:$0xf]
          %v6230 = vld [vmem:[#allocation14 + $0x78] sm:$0xf]
          %v6231 = vld [vmem:[#allocation14 + $0x7c] sm:$0xf]
          %v6232 = vld [vmem:[#allocation14 + $0x80] sm:$0xf]
          %v6233 = vld [vmem:[#allocation14 + $0x84] sm:$0xf]
          %v6234 = vld [vmem:[#allocation14 + $0x88] sm:$0xf]
          %v6235 = vld [vmem:[#allocation14 + $0x8c] sm:$0xf]
          %v6236 = vld [vmem:[#allocation14 + $0x90] sm:$0xf]
          %v6237 = vld [vmem:[#allocation14 + $0x94] sm:$0xf]
          %v6238 = vld [vmem:[#allocation14 + $0x98] sm:$0xf]
          %v6239 = vld [vmem:[#allocation14 + $0x9c] sm:$0xf]
          %v6240 = vld [vmem:[#allocation14 + $0xa0] sm:$0xf]
          %v6241 = vld [vmem:[#allocation14 + $0xa4] sm:$0xf]
          %v6242 = vld [vmem:[#allocation14 + $0xa8] sm:$0xf]
          %v6243 = vld [vmem:[#allocation14 + $0xac] sm:$0xf]
          %v6244 = vld [vmem:[#allocation14 + $0xb0] sm:$0xf]
          %v6245 = vld [vmem:[#allocation14 + $0xb4] sm:$0xf]
          %v6246 = vld [vmem:[#allocation14 + $0xb8] sm:$0xf]
          %v6247 = vld [vmem:[#allocation14 + $0xbc] sm:$0xf]
          %v6248 = vld [vmem:[#allocation14 + $0xc0] sm:$0xf]
          %v6249 = vld [vmem:[#allocation14 + $0xc4] sm:$0xf]
          %v6250 = vld [vmem:[#allocation14 + $0xc8] sm:$0xf]
          %v6251 = vld [vmem:[#allocation14 + $0xcc] sm:$0xf]
          %v6252 = vld [vmem:[#allocation14 + $0xd0] sm:$0xf]
          %v6253 = vld [vmem:[#allocation14 + $0xd4] sm:$0xf]
          %v6254 = vld [vmem:[#allocation14 + $0xd8] sm:$0xf]
          %v6255 = vld [vmem:[#allocation14 + $0xdc] sm:$0xf]
          %v6256 = vld [vmem:[#allocation14 + $0xe0] sm:$0xf]
          %v6257 = vld [vmem:[#allocation14 + $0xe4] sm:$0xf]
          %v6258 = vld [vmem:[#allocation14 + $0xe8] sm:$0xf]
          %v6259 = vld [vmem:[#allocation14 + $0xec] sm:$0xf]
          %v6260 = vld [vmem:[#allocation14 + $0xf0] sm:$0xf]
          %v6261 = vld [vmem:[#allocation14 + $0xf4] sm:$0xf]
          %v6262 = vld [vmem:[#allocation14 + $0xf8] sm:$0xf]
          %v6263 = vld [vmem:[#allocation14 + $0xfc] sm:$0xf]
          %v6264 = vld [vmem:[#allocation15 + $0x4] sm:$0x1]
          %v6266 = vlaneseq
          %v6267 = vshrl.u32 %v6266, 7
          %v6268 = vsub.s32 0, %v6267
          %v6269 = vrot.slane %v6264, %v6268
          %v6335 = vunpack.c.l.b16 %v6200
          %v6336 = vunpack.c.l.b16 %v6201
          %v6337 = vunpack.c.l.b16 %v6202
          %v6338 = vunpack.c.l.b16 %v6203
          %v6339 = vunpack.c.l.b16 %v6204
          %v6340 = vunpack.c.l.b16 %v6205
          %v6341 = vunpack.c.l.b16 %v6206
          %v6342 = vunpack.c.l.b16 %v6207
          %v6343 = vunpack.c.l.b16 %v6208
          %v6344 = vunpack.c.l.b16 %v6209
          %v6345 = vunpack.c.l.b16 %v6210
          %v6346 = vunpack.c.l.b16 %v6211
          %v6347 = vunpack.c.l.b16 %v6212
          %v6348 = vunpack.c.l.b16 %v6213
          %v6349 = vunpack.c.l.b16 %v6214
          %v6350 = vunpack.c.l.b16 %v6215
          %v6351 = vunpack.c.l.b16 %v6216
          %v6352 = vunpack.c.l.b16 %v6217
          %v6353 = vunpack.c.l.b16 %v6218
          %v6354 = vunpack.c.l.b16 %v6219
          %v6355 = vunpack.c.l.b16 %v6220
          %v6356 = vunpack.c.l.b16 %v6221
          %v6357 = vunpack.c.l.b16 %v6222
          %v6358 = vunpack.c.l.b16 %v6223
          %v6359 = vunpack.c.l.b16 %v6224
          %v6360 = vunpack.c.l.b16 %v6225
          %v6361 = vunpack.c.l.b16 %v6226
          %v6362 = vunpack.c.l.b16 %v6227
          %v6363 = vunpack.c.l.b16 %v6228
          %v6364 = vunpack.c.l.b16 %v6229
          %v6365 = vunpack.c.l.b16 %v6230
          %v6366 = vunpack.c.l.b16 %v6231
          %v6367 = vunpack.c.l.b16 %v6232
          %v6368 = vunpack.c.l.b16 %v6233
          %v6369 = vunpack.c.l.b16 %v6234
          %v6370 = vunpack.c.l.b16 %v6235
          %v6371 = vunpack.c.l.b16 %v6236
          %v6372 = vunpack.c.l.b16 %v6237
          %v6373 = vunpack.c.l.b16 %v6238
          %v6374 = vunpack.c.l.b16 %v6239
          %v6375 = vunpack.c.l.b16 %v6240
          %v6376 = vunpack.c.l.b16 %v6241
          %v6377 = vunpack.c.l.b16 %v6242
          %v6378 = vunpack.c.l.b16 %v6243
          %v6379 = vunpack.c.l.b16 %v6244
          %v6380 = vunpack.c.l.b16 %v6245
          %v6381 = vunpack.c.l.b16 %v6246
          %v6382 = vunpack.c.l.b16 %v6247
          %v6383 = vunpack.c.l.b16 %v6248
          %v6384 = vunpack.c.l.b16 %v6249
          %v6385 = vunpack.c.l.b16 %v6250
          %v6386 = vunpack.c.l.b16 %v6251
          %v6387 = vunpack.c.l.b16 %v6252
          %v6388 = vunpack.c.l.b16 %v6253
          %v6389 = vunpack.c.l.b16 %v6254
          %v6390 = vunpack.c.l.b16 %v6255
          %v6391 = vunpack.c.l.b16 %v6256
          %v6392 = vunpack.c.l.b16 %v6257
          %v6393 = vunpack.c.l.b16 %v6258
          %v6394 = vunpack.c.l.b16 %v6259
          %v6395 = vunpack.c.l.b16 %v6260
          %v6396 = vunpack.c.l.b16 %v6261
          %v6397 = vunpack.c.l.b16 %v6262
          %v6398 = vunpack.c.l.b16 %v6263
          %v6399 = vpack.c.b16 %v6336, %v6335
          %v6400 = vpack.c.b16 %v6338, %v6337
          %v6401 = vpack.c.b16 %v6340, %v6339
          %v6402 = vpack.c.b16 %v6342, %v6341
          %v6403 = vpack.c.b16 %v6344, %v6343
          %v6404 = vpack.c.b16 %v6346, %v6345
          %v6405 = vpack.c.b16 %v6348, %v6347
          %v6406 = vpack.c.b16 %v6350, %v6349
          %v6407 = vpack.c.b16 %v6352, %v6351
          %v6408 = vpack.c.b16 %v6354, %v6353
          %v6409 = vpack.c.b16 %v6356, %v6355
          %v6410 = vpack.c.b16 %v6358, %v6357
          %v6411 = vpack.c.b16 %v6360, %v6359
          %v6412 = vpack.c.b16 %v6362, %v6361
          %v6413 = vpack.c.b16 %v6364, %v6363
          %v6414 = vpack.c.b16 %v6366, %v6365
          %v6415 = vpack.c.b16 %v6368, %v6367
          %v6416 = vpack.c.b16 %v6370, %v6369
          %v6417 = vpack.c.b16 %v6372, %v6371
          %v6418 = vpack.c.b16 %v6374, %v6373
          %v6419 = vpack.c.b16 %v6376, %v6375
          %v6420 = vpack.c.b16 %v6378, %v6377
          %v6421 = vpack.c.b16 %v6380, %v6379
          %v6422 = vpack.c.b16 %v6382, %v6381
          %v6423 = vpack.c.b16 %v6384, %v6383
          %v6424 = vpack.c.b16 %v6386, %v6385
          %v6425 = vpack.c.b16 %v6388, %v6387
          %v6426 = vpack.c.b16 %v6390, %v6389
          %v6427 = vpack.c.b16 %v6392, %v6391
          %v6428 = vpack.c.b16 %v6394, %v6393
          %v6429 = vpack.c.b16 %v6396, %v6395
          %v6430 = vpack.c.b16 %v6398, %v6397
          %6463 = vmatprep.subr.bf16.mxu0 0
          %6464 = vmatpush1.bf16.msra.mxu0 %v6399
          %6465 = vmatprep.subr.bf16.mxu0 0
          %6466 = vmatpush1.bf16.msra.mxu0 %v6400
          %6467 = vmatprep.subr.bf16.mxu0 0
          %6468 = vmatpush1.bf16.msra.mxu0 %v6401
          %6469 = vmatprep.subr.bf16.mxu0 0
          %6470 = vmatpush1.bf16.msra.mxu0 %v6402
          %6471 = vmatprep.subr.bf16.mxu0 0
          %6472 = vmatpush1.bf16.msra.mxu0 %v6403
          %6473 = vmatprep.subr.bf16.mxu0 0
          %6474 = vmatpush1.bf16.msra.mxu0 %v6404
          %6475 = vmatprep.subr.bf16.mxu0 0
          %6476 = vmatpush1.bf16.msra.mxu0 %v6405
          %6477 = vmatprep.subr.bf16.mxu0 0
          %6478 = vmatpush1.bf16.msra.mxu0 %v6406
          %6479 = vmatprep.subr.bf16.mxu0 0
          %6480 = vmatpush1.bf16.msra.mxu0 %v6407
          %6481 = vmatprep.subr.bf16.mxu0 0
          %6482 = vmatpush1.bf16.msra.mxu0 %v6408
          %6483 = vmatprep.subr.bf16.mxu0 0
          %6484 = vmatpush1.bf16.msra.mxu0 %v6409
          %6485 = vmatprep.subr.bf16.mxu0 0
          %6486 = vmatpush1.bf16.msra.mxu0 %v6410
          %6487 = vmatprep.subr.bf16.mxu0 0
          %6488 = vmatpush1.bf16.msra.mxu0 %v6411
          %6489 = vmatprep.subr.bf16.mxu0 0
          %6490 = vmatpush1.bf16.msra.mxu0 %v6412
          %6491 = vmatprep.subr.bf16.mxu0 0
          %6492 = vmatpush1.bf16.msra.mxu0 %v6413
          %6493 = vmatprep.subr.bf16.mxu0 0
          %6494 = vmatpush1.bf16.msra.mxu0 %v6414
          %6495 = vmatprep.mubr.bf16.mxu0 %v6197
          %6496 = vmatmul.mubr.bf16.gmra.mrb[0].mxu0 %v6196
          %v6497 = vpop.f32.mrb[0].mxu0
          %v6498 = vadd.f32 %v6269, %v6497
          %v6499 = vpop.f32.mrb[0].mxu0
          %v6500 = vpop.f32.mrb[0].mxu0
          %v6501 = vpop.f32.mrb[0].mxu0
          %6502 = vdwg.mxu0
          %6503 = vmatprep.subr.bf16.mxu0 0
          %6504 = vmatpush1.bf16.msra.mxu0 %v6415
          %6505 = vmatprep.subr.bf16.mxu0 0
          %6506 = vmatpush1.bf16.msra.mxu0 %v6416
          %6507 = vmatprep.subr.bf16.mxu0 0
          %6508 = vmatpush1.bf16.msra.mxu0 %v6417
          %6509 = vmatprep.subr.bf16.mxu0 0
          %6510 = vmatpush1.bf16.msra.mxu0 %v6418
          %6511 = vmatprep.subr.bf16.mxu0 0
          %6512 = vmatpush1.bf16.msra.mxu0 %v6419
          %6513 = vmatprep.subr.bf16.mxu0 0
          %6514 = vmatpush1.bf16.msra.mxu0 %v6420
          %6515 = vmatprep.subr.bf16.mxu0 0
          %6516 = vmatpush1.bf16.msra.mxu0 %v6421
          %6517 = vmatprep.subr.bf16.mxu0 0
          %6518 = vmatpush1.bf16.msra.mxu0 %v6422
          %6519 = vmatprep.subr.bf16.mxu0 0
          %6520 = vmatpush1.bf16.msra.mxu0 %v6423
          %6521 = vmatprep.subr.bf16.mxu0 0
          %6522 = vmatpush1.bf16.msra.mxu0 %v6424
          %6523 = vmatprep.subr.bf16.mxu0 0
          %6524 = vmatpush1.bf16.msra.mxu0 %v6425
          %6525 = vmatprep.subr.bf16.mxu0 0
          %6526 = vmatpush1.bf16.msra.mxu0 %v6426
          %6527 = vmatprep.subr.bf16.mxu0 0
          %6528 = vmatpush1.bf16.msra.mxu0 %v6427
          %6529 = vmatprep.subr.bf16.mxu0 0
          %6530 = vmatpush1.bf16.msra.mxu0 %v6428
          %6531 = vmatprep.subr.bf16.mxu0 0
          %6532 = vmatpush1.bf16.msra.mxu0 %v6429
          %6533 = vmatprep.subr.bf16.mxu0 0
          %6534 = vmatpush1.bf16.msra.mxu0 %v6430
          %6535 = vmatprep.mubr.bf16.mxu0 %v6199
          %6536 = vmatmul.mubr.bf16.gmra.mrb[0].mxu0 %v6198
          %v6537 = vpop.f32.mrb[0].mxu0
          %v6538 = vadd.f32 %v6498, %v6537
          %v6539 = vpop.f32.mrb[0].mxu0
          %v6540 = vpop.f32.mrb[0].mxu0
          %v6541 = vpop.f32.mrb[0].mxu0
          %6542 = vdwg.mxu0
          %6543 = vst [vmem:[%s567] sm:$0x3] %v6538
        $region104: #{multimodal_emotic_forward.1} parent=59 // pred_fallthru
          _
        %p6544 = scmp.lt.s32.totalorder %s28, 0
        %s6545 = scalar_select %p6544, %s28, 0
        %s6546 = smul.addr %s6545, 2
        %s6547 = scalar_lea.vmem %s10, %s6546
        // Predicated region
        $region105: #{multimodal_emotic_forward.1} parent=59 // pred_check
          %p6548 = pneg %p284
        $region106: #{multimodal_emotic_forward.1} parent=59 // pred_check_branch
          %6550 = sbr.rel (%p6548) target = $region108
        $region107: #{multimodal_emotic_forward.1} parent=59 // pred_region
          _
        $region108: #{multimodal_emotic_forward.1} parent=59 // pred_fallthru
          _
        // Predicated region
        $region109: #{multimodal_emotic_forward.1} parent=59 // pred_check
          %p6551 = pneg %p284
        $region110: #{multimodal_emotic_forward.1} parent=59 // pred_check_branch
          %6553 = sbr.rel (%p6551) target = $region112
        $region111: #{multimodal_emotic_forward.1} parent=59 // pred_region
          %p6554 = scmp.lt.s32.totalorder %s28, 0
          %s6555 = scalar_select %p6554, %s28, 0
          %s6556 = smul.addr %s6555, 2
          %s6557 = scalar_lea.vmem %s10, %s6556
        $region112: #{multimodal_emotic_forward.1} parent=59 // pred_fallthru
          _
      $region60: #{multimodal_emotic_forward.1} parent=5 // pred_fallthru
        _
      %p6558 = scmp.le.s32.totalorder 2, %s19
      // Predicated region
      $region113: #{multimodal_emotic_forward.1} parent=5 // pred_check
        %p6559 = pneg %p6558
      $region114: #{multimodal_emotic_forward.1} parent=5 // pred_check_branch
        %6561 = sbr.rel (%p6559) target = $region116
      $region115: #{multimodal_emotic_forward.1} parent=5 // pred_region
        %s6562 = ssub.s32 %s19, 2
      $region116: #{multimodal_emotic_forward.1} parent=5 // pred_fallthru
        _
    $region6: #{multimodal_emotic_forward.1} parent=1 // loop_footer
      %s23 = sadd.s32 1, %s19
    $region7: #{multimodal_emotic_forward.1} parent=1 // loop_footer_branch
      %18 = sbr.rel target = $region3
    $region8: #{multimodal_emotic_forward.1} parent=1 // loop_exit
      _
    %6563 = vsyncpa [#allocation5], 1
    %s6564 = scalar_lea.sflag [#allocation5], 1
    %6565 = vsyncpa %s6564, 1
    %6566 = vsyncpa [#allocation7], 1
    %6567 = vsyncpa [#allocation10], 1

</llo_original>
